<compile_context>
chip_gen: v6e
topology: v6e:2x2x1
jax: 0.10.0
libtpu: 0.0.40
codegen_flags: <defaults>
</compile_context>

<pallas_src>
import functools

import jax
import jax.numpy as jnp
from jax.experimental import pallas as pl
from jax.experimental.pallas import tpu as pltpu

LANE = 128     # lane width: hidden dim padded to a multiple of this
SUBLANE = 8    # f32 sublane: batch tiles are multiples of this


def _round_up(x, m):
    return ((x + m - 1) // m) * m


@functools.lru_cache(maxsize=1)
def _hw_budget():
    """Generation-aware (tb_max, vmem_limit_bytes).

    v5e/v6e: 128 MiB physical VMEM -> larger batch tiles + 64 MiB scoped budget.
    v7x (64 MiB physical) or unknown: conservative 512-row tiles / 32 MiB.
    """
    try:
        vmem = pltpu.get_tpu_info().vmem_capacity_bytes
    except Exception:
        vmem = 64 * 1024 * 1024
    if vmem >= 100 * 1024 * 1024:          # v5e / v6e
        return 1024, 64 * 1024 * 1024
    return 512, 32 * 1024 * 1024           # v7x / unknown


def mlp_kernel(x_ref, w1_ref, b1_ref, w2_ref, b2_ref, o_ref):
    """Fused (TB,in) @ (in,Hp) -> +b -> SiLU -> @ (Hp,out) -> +b, all in VMEM."""
    w1 = w1_ref[...]
    w2 = w2_ref[...]
    # Trace-time choice: full-precision MXU passes for f32 weights (exact
    # module semantics); native single-pass bf16 otherwise.
    prec = jax.lax.Precision.HIGHEST if w1.dtype == jnp.float32 else None

    x = x_ref[...].astype(w1.dtype)
    h = jnp.dot(x, w1, preferred_element_type=jnp.float32, precision=prec)
    h = h + b1_ref[...]
    h = h * jax.nn.sigmoid(h)              # SiLU in f32 (exp rides the EUP slot)

    o = jnp.dot(h.astype(w2.dtype), w2,
                preferred_element_type=jnp.float32, precision=prec)
    o = o + b2_ref[...]
    o_ref[...] = o.astype(o_ref.dtype)


def prepare_params(params, compute_dtype=jnp.bfloat16):
    """One-time conversion of PyTorch-layout params -> kernel layout.

    PyTorch nn.Linear stores W as (out, in), b as (out,).  We transpose to
    (in, out), zero-pad the hidden dim to a multiple of 128 lanes (padding is
    mathematically inert: pad bias = 0 -> SiLU(0) = 0 -> contributes 0), and
    cast weights to the compute dtype (bf16 by default; biases stay f32).
    The output dim is NOT padded (block last-dim == full array dim is legal),
    so no post-kernel slice is ever needed.  Returned dict contains arrays
    only, so it is a clean jit pytree.
    """
    hidden, in_dim = params["w1"].shape
    out_dim = params["w2"].shape[0]
    hp = _round_up(hidden, LANE)

    w1 = jnp.zeros((in_dim, hp), compute_dtype)
    w1 = w1.at[:, :hidden].set(params["w1"].T.astype(compute_dtype))
    b1 = jnp.zeros((1, hp), jnp.float32).at[:, :hidden].set(params["b1"])
    w2 = jnp.zeros((hp, out_dim), compute_dtype)
    w2 = w2.at[:hidden, :].set(params["w2"].T.astype(compute_dtype))
    b2 = params["b2"].reshape(1, out_dim).astype(jnp.float32)
    return {"w1": w1, "b1": b1, "w2": w2, "b2": b2}


def _resident_spec(shape, single_buffered):
    """Grid-invariant operand: constant index_map; single buffer if supported."""
    idx = lambda i: (0, 0)
    if single_buffered:
        return pl.BlockSpec(shape, idx, pipeline_mode=pl.Buffered(1))
    return pl.BlockSpec(shape, idx)


@functools.partial(
    jax.jit,
    static_argnames=("tb_max", "vmem_limit_bytes", "single_buffer_weights"))
def _mlp_forward(x, prep, *, tb_max, vmem_limit_bytes, single_buffer_weights):
    B, in_dim = x.shape
    hp = prep["w1"].shape[1]
    out_dim = prep["w2"].shape[1]

    # Batch tile: sublane-aligned, capped at tb_max, and chosen so the grid
    # has >= 2 steps whenever possible (lets "parallel" shard across v7x's
    # two TensorCores; harmless on single-TC v5e/v6e).
    tb = min(tb_max, max(SUBLANE, _round_up(pl.cdiv(B, 2), SUBLANE)))
    grid = (pl.cdiv(B, tb),)   # ragged final block handled by Pallas (no jnp.pad)

    out = pl.pallas_call(
        mlp_kernel,
        out_shape=jax.ShapeDtypeStruct((B, out_dim), x.dtype),
        grid_spec=pltpu.PrefetchScalarGridSpec(
            num_scalar_prefetch=0,
            grid=grid,
            in_specs=[
                pl.BlockSpec((tb, in_dim), lambda i: (i, 0)),      # x: streamed rows
                _resident_spec((in_dim, hp), single_buffer_weights),   # w1
                _resident_spec((1, hp), single_buffer_weights),        # b1
                _resident_spec((hp, out_dim), single_buffer_weights),  # w2
                _resident_spec((1, out_dim), single_buffer_weights),   # b2
            ],
            out_specs=pl.BlockSpec((tb, out_dim), lambda i: (i, 0)),
        ),
        compiler_params=pltpu.CompilerParams(
            dimension_semantics=("parallel",),       # megacore-shardable on v7x
            vmem_limit_bytes=vmem_limit_bytes,       # generation-aware budget
        ),
    )(x, prep["w1"], prep["b1"], prep["w2"], prep["b2"])
    return out


def mlp_forward(x, prep):
    """x: (B, in_dim), any float dtype (stream bf16 for best HBM use).
    prep: output of prepare_params.  Output dtype follows x."""
    tb_max, vmem_limit = _hw_budget()
    try:
        return _mlp_forward(x, prep, tb_max=tb_max, vmem_limit_bytes=vmem_limit,
                            single_buffer_weights=True)
    except Exception:
        # pl.Buffered(1) not supported on this jax version -> default buffering.
        return _mlp_forward(x, prep, tb_max=tb_max, vmem_limit_bytes=vmem_limit,
                            single_buffer_weights=False)


def init_params(key, shp):
    """Deterministic init matching nn.Linear parameter shapes: W (out,in), b (out,)."""
    in_dim, hidden, out_dim = shp
    k1, k2, k3, k4 = jax.random.split(key, 4)
    lim1 = 1.0 / jnp.sqrt(in_dim)
    lim2 = 1.0 / jnp.sqrt(hidden)
    return {
        "w1": jax.random.uniform(k1, (hidden, in_dim), jnp.float32, -lim1, lim1),
        "b1": jax.random.uniform(k2, (hidden,), jnp.float32, -lim1, lim1),
        "w2": jax.random.uniform(k3, (out_dim, hidden), jnp.float32, -lim2, lim2),
        "b2": jax.random.uniform(k4, (out_dim,), jnp.float32, -lim2, lim2),
    }
    # TODO(synk): the module's unused `embedding` Parameter is not modeled (never read in forward).


if __name__ == "__main__":
    # shp = [in_dim, w, out_dim] with depth=2 (the module's structure).
    shp = (32, 64, 16)
    batch = 256

    key = jax.random.PRNGKey(0)
    kx, kp = jax.random.split(key)
    x = jax.random.normal(kx, (batch, shp[0]), dtype=jnp.float32)
    params = init_params(kp, shp)

    # Pure-JAX reference (same math as the PyTorch forward, full f32 precision).
    hi = jax.lax.Precision.HIGHEST
    h_ref = jnp.dot(x, params["w1"].T, precision=hi) + params["b1"]
    h_ref = h_ref * jax.nn.sigmoid(h_ref)
    ref = jnp.dot(h_ref, params["w2"].T, precision=hi) + params["b2"]

    # f32 path: exact module semantics (HIGHEST-precision MXU passes).
    prep_f32 = prepare_params(params, compute_dtype=jnp.float32)
    out_f32 = jax.block_until_ready(mlp_forward(x, prep_f32))
    assert out_f32.shape == (batch, shp[-1]) and out_f32.dtype == jnp.float32
    assert jnp.allclose(out_f32, ref, atol=1e-4, rtol=1e-4)

    # Ragged batch (B % tb != 0): exercises the cdiv grid / masked final block.
    out_ragged = jax.block_until_ready(mlp_forward(x[:200], prep_f32))
    assert out_ragged.shape == (200, shp[-1])
    assert jnp.allclose(out_ragged, ref[:200], atol=1e-4, rtol=1e-4)

    # Default bf16 streaming path: bf16 weights + bf16 activations, f32 accumulate.
    prep_bf16 = prepare_params(params)                       # bf16 by default
    out_bf16 = jax.block_until_ready(mlp_forward(x.astype(jnp.bfloat16), prep_bf16))
    assert out_bf16.shape == (batch, shp[-1]) and out_bf16.dtype == jnp.bfloat16
    assert jnp.allclose(out_bf16.astype(jnp.float32), ref, atol=5e-2, rtol=5e-2)

    print("KERNEL_OK")
</pallas_src>

<mosaic_0001>
module attributes {stable_mosaic.version = 11 : i64} {
  func.func @mlp_kernel(%arg0: i32, %arg1: memref<128x32xf32, #tpu.memory_space<vmem>>, %arg2: memref<32x128xf32, #tpu.memory_space<vmem>>, %arg3: memref<1x128xf32, #tpu.memory_space<vmem>>, %arg4: memref<128x16xf32, #tpu.memory_space<vmem>>, %arg5: memref<1x16xf32, #tpu.memory_space<vmem>>, %arg6: memref<128x16xf32, #tpu.memory_space<vmem>>) attributes {dimension_semantics = [#tpu.dimension_semantics<parallel>], iteration_bounds = array<i64: 2>, scalar_prefetch = 0 : i64, scratch_operands = 0 : i64, tpu.core_type = #tpu.core_type<tc>, window_params = [{transform_indices = @transform_0, window_bounds = array<i64: 128, 32>}, {pipeline_mode = #tpu.pipeline_mode<synchronous>, transform_indices = @transform_1, window_bounds = array<i64: 32, 128>}, {pipeline_mode = #tpu.pipeline_mode<synchronous>, transform_indices = @transform_2, window_bounds = array<i64: 1, 128>}, {pipeline_mode = #tpu.pipeline_mode<synchronous>, transform_indices = @transform_3, window_bounds = array<i64: 128, 16>}, {pipeline_mode = #tpu.pipeline_mode<synchronous>, transform_indices = @transform_4, window_bounds = array<i64: 1, 16>}, {transform_indices = @transform_5, window_bounds = array<i64: 128, 16>}]} {
    %c0 = arith.constant 0 : index
    %c0_0 = arith.constant 0 : index
    %0 = vector.load %arg2[%c0, %c0_0] : memref<32x128xf32, #tpu.memory_space<vmem>>, vector<32x128xf32>
    %c0_1 = arith.constant 0 : index
    %c0_2 = arith.constant 0 : index
    %1 = vector.load %arg4[%c0_1, %c0_2] : memref<128x16xf32, #tpu.memory_space<vmem>>, vector<128x16xf32>
    %c0_3 = arith.constant 0 : index
    %c0_4 = arith.constant 0 : index
    %2 = vector.load %arg1[%c0_3, %c0_4] : memref<128x32xf32, #tpu.memory_space<vmem>>, vector<128x32xf32>
    %cst = arith.constant dense<0.000000e+00> : vector<128x128xf32>
    %3 = tpu.matmul %2, %0, %cst {dimension_numbers = #tpu.dot_dimension_numbers<[1], [0], [0], [1], [0, 0, 1, 1], [], []>, precision = #tpu.contract_precision<fp32>} : vector<128x32xf32>, vector<32x128xf32>, vector<128x128xf32> -> vector<128x128xf32>
    %c0_5 = arith.constant 0 : index
    %c0_6 = arith.constant 0 : index
    %4 = vector.load %arg3[%c0_5, %c0_6] : memref<1x128xf32, #tpu.memory_space<vmem>>, vector<1x128xf32>
    %5 = vector.broadcast %4 : vector<1x128xf32> to vector<128x128xf32>
    %6 = arith.addf %3, %5 : vector<128x128xf32>
    %7 = arith.negf %6 : vector<128x128xf32>
    %8 = math.exp %7 : vector<128x128xf32>
    %cst_7 = arith.constant 1.000000e+00 : f32
    %9 = vector.broadcast %cst_7 : f32 to vector<128x128xf32>
    %10 = arith.addf %9, %8 : vector<128x128xf32>
    %11 = arith.divf %9, %10 : vector<128x128xf32>
    %12 = arith.mulf %6, %11 : vector<128x128xf32>
    %cst_8 = arith.constant dense<0.000000e+00> : vector<128x16xf32>
    %13 = tpu.matmul %12, %1, %cst_8 {dimension_numbers = #tpu.dot_dimension_numbers<[1], [0], [0], [1], [0, 0, 1, 1], [], []>, precision = #tpu.contract_precision<fp32>} : vector<128x128xf32>, vector<128x16xf32>, vector<128x16xf32> -> vector<128x16xf32>
    %c0_9 = arith.constant 0 : index
    %c0_10 = arith.constant 0 : index
    %14 = vector.load %arg5[%c0_9, %c0_10] : memref<1x16xf32, #tpu.memory_space<vmem>>, vector<1x16xf32>
    %15 = vector.broadcast %14 : vector<1x16xf32> to vector<128x16xf32>
    %16 = arith.addf %13, %15 : vector<128x16xf32>
    %c0_11 = arith.constant 0 : index
    %c0_12 = arith.constant 0 : index
    %17 = vector.load %arg6[%c0_11, %c0_12] : memref<128x16xf32, #tpu.memory_space<vmem>>, vector<128x16xf32>
    tpu.vector_store %arg6[%c0_11, %c0_12], %16 {strides = array<i32>} : memref<128x16xf32, #tpu.memory_space<vmem>>, vector<128x16xf32>,
    return
  }
  func.func @transform_0(%arg0: i32) -> (i32, i32) {
    %c0_i32 = arith.constant 0 : i32
    %c0_i32_0 = arith.constant 0 : i32
    return %arg0, %c0_i32 : i32, i32
  }
  func.func @transform_1(%arg0: i32) -> (i32, i32) {
    %c0_i32 = arith.constant 0 : i32
    %c0_i32_0 = arith.constant 0 : i32
    %c0_i32_1 = arith.constant 0 : i32
    return %c0_i32, %c0_i32_0 : i32, i32
  }
  func.func @transform_2(%arg0: i32) -> (i32, i32) {
    %c0_i32 = arith.constant 0 : i32
    %c0_i32_0 = arith.constant 0 : i32
    %c0_i32_1 = arith.constant 0 : i32
    return %c0_i32, %c0_i32_0 : i32, i32
  }
  func.func @transform_3(%arg0: i32) -> (i32, i32) {
    %c0_i32 = arith.constant 0 : i32
    %c0_i32_0 = arith.constant 0 : i32
    %c0_i32_1 = arith.constant 0 : i32
    return %c0_i32, %c0_i32_0 : i32, i32
  }
  func.func @transform_4(%arg0: i32) -> (i32, i32) {
    %c0_i32 = arith.constant 0 : i32
    %c0_i32_0 = arith.constant 0 : i32
    %c0_i32_1 = arith.constant 0 : i32
    return %c0_i32, %c0_i32_0 : i32, i32
  }
  func.func @transform_5(%arg0: i32) -> (i32, i32) {
    %c0_i32 = arith.constant 0 : i32
    %c0_i32_0 = arith.constant 0 : i32
    return %arg0, %c0_i32 : i32, i32
  }
}

module attributes {stable_mosaic.version = 11 : i64} {
  func.func @mlp_kernel(%arg0: i32, %arg1: memref<128x32xf32, #tpu.memory_space<vmem>>, %arg2: memref<32x128xf32, #tpu.memory_space<vmem>>, %arg3: memref<1x128xf32, #tpu.memory_space<vmem>>, %arg4: memref<128x16xf32, #tpu.memory_space<vmem>>, %arg5: memref<1x16xf32, #tpu.memory_space<vmem>>, %arg6: memref<128x16xf32, #tpu.memory_space<vmem>>) attributes {dimension_semantics = [#tpu.dimension_semantics<parallel>], iteration_bounds = array<i64: 2>, scalar_prefetch = 0 : i64, scratch_operands = 0 : i64, tpu.core_type = #tpu.core_type<tc>, window_params = [{transform_indices = @transform_0, window_bounds = array<i64: 128, 32>}, {pipeline_mode = #tpu.pipeline_mode<synchronous>, transform_indices = @transform_1, window_bounds = array<i64: 32, 128>}, {pipeline_mode = #tpu.pipeline_mode<synchronous>, transform_indices = @transform_2, window_bounds = array<i64: 1, 128>}, {pipeline_mode = #tpu.pipeline_mode<synchronous>, transform_indices = @transform_3, window_bounds = array<i64: 128, 16>}, {pipeline_mode = #tpu.pipeline_mode<synchronous>, transform_indices = @transform_4, window_bounds = array<i64: 1, 16>}, {transform_indices = @transform_5, window_bounds = array<i64: 128, 16>}]} {
    %c0 = arith.constant 0 : index
    %c0_0 = arith.constant 0 : index
    %0 = vector.load %arg2[%c0, %c0_0] : memref<32x128xf32, #tpu.memory_space<vmem>>, vector<32x128xf32>
    %c0_1 = arith.constant 0 : index
    %c0_2 = arith.constant 0 : index
    %1 = vector.load %arg4[%c0_1, %c0_2] : memref<128x16xf32, #tpu.memory_space<vmem>>, vector<128x16xf32>
    %c0_3 = arith.constant 0 : index
    %c0_4 = arith.constant 0 : index
    %2 = vector.load %arg1[%c0_3, %c0_4] : memref<128x32xf32, #tpu.memory_space<vmem>>, vector<128x32xf32>
    %cst = arith.constant dense<0.000000e+00> : vector<128x128xf32>
    %3 = tpu.matmul %2, %0, %cst {dimension_numbers = #tpu.dot_dimension_numbers<[1], [0], [0], [1], [0, 0, 1, 1], [], []>, precision = #tpu.contract_precision<fp32>} : vector<128x32xf32>, vector<32x128xf32>, vector<128x128xf32> -> vector<128x128xf32>
    %c0_5 = arith.constant 0 : index
    %c0_6 = arith.constant 0 : index
    %4 = vector.load %arg3[%c0_5, %c0_6] : memref<1x128xf32, #tpu.memory_space<vmem>>, vector<1x128xf32>
    %5 = vector.broadcast %4 : vector<1x128xf32> to vector<128x128xf32>
    %6 = arith.addf %3, %5 : vector<128x128xf32>
    %7 = arith.negf %6 : vector<128x128xf32>
    %8 = math.exp %7 : vector<128x128xf32>
    %cst_7 = arith.constant 1.000000e+00 : f32
    %9 = vector.broadcast %cst_7 : f32 to vector<128x128xf32>
    %10 = arith.addf %9, %8 : vector<128x128xf32>
    %11 = arith.divf %9, %10 : vector<128x128xf32>
    %12 = arith.mulf %6, %11 : vector<128x128xf32>
    %cst_8 = arith.constant dense<0.000000e+00> : vector<128x16xf32>
    %13 = tpu.matmul %12, %1, %cst_8 {dimension_numbers = #tpu.dot_dimension_numbers<[1], [0], [0], [1], [0, 0, 1, 1], [], []>, precision = #tpu.contract_precision<fp32>} : vector<128x128xf32>, vector<128x16xf32>, vector<128x16xf32> -> vector<128x16xf32>
    %c0_9 = arith.constant 0 : index
    %c0_10 = arith.constant 0 : index
    %14 = vector.load %arg5[%c0_9, %c0_10] : memref<1x16xf32, #tpu.memory_space<vmem>>, vector<1x16xf32>
    %15 = vector.broadcast %14 : vector<1x16xf32> to vector<128x16xf32>
    %16 = arith.addf %13, %15 : vector<128x16xf32>
    %c0_11 = arith.constant 0 : index
    %c0_12 = arith.constant 0 : index
    %17 = vector.load %arg6[%c0_11, %c0_12] : memref<128x16xf32, #tpu.memory_space<vmem>>, vector<128x16xf32>
    tpu.vector_store %arg6[%c0_11, %c0_12], %16 {strides = array<i32>} : memref<128x16xf32, #tpu.memory_space<vmem>>, vector<128x16xf32>,
    return
  }
  func.func @transform_0(%arg0: i32) -> (i32, i32) {
    %c0_i32 = arith.constant 0 : i32
    %c0_i32_0 = arith.constant 0 : i32
    return %arg0, %c0_i32 : i32, i32
  }
  func.func @transform_1(%arg0: i32) -> (i32, i32) {
    %c0_i32 = arith.constant 0 : i32
    %c0_i32_0 = arith.constant 0 : i32
    %c0_i32_1 = arith.constant 0 : i32
    return %c0_i32, %c0_i32_0 : i32, i32
  }
  func.func @transform_2(%arg0: i32) -> (i32, i32) {
    %c0_i32 = arith.constant 0 : i32
    %c0_i32_0 = arith.constant 0 : i32
    %c0_i32_1 = arith.constant 0 : i32
    return %c0_i32, %c0_i32_0 : i32, i32
  }
  func.func @transform_3(%arg0: i32) -> (i32, i32) {
    %c0_i32 = arith.constant 0 : i32
    %c0_i32_0 = arith.constant 0 : i32
    %c0_i32_1 = arith.constant 0 : i32
    return %c0_i32, %c0_i32_0 : i32, i32
  }
  func.func @transform_4(%arg0: i32) -> (i32, i32) {
    %c0_i32 = arith.constant 0 : i32
    %c0_i32_0 = arith.constant 0 : i32
    %c0_i32_1 = arith.constant 0 : i32
    return %c0_i32, %c0_i32_0 : i32, i32
  }
  func.func @transform_5(%arg0: i32) -> (i32, i32) {
    %c0_i32 = arith.constant 0 : i32
    %c0_i32_0 = arith.constant 0 : i32
    return %arg0, %c0_i32 : i32, i32
  }
}

</mosaic_0001>

<llo_original>
// kernel: _mlp_forward.1
$region0: #{_mlp_forward.1}
  #allocation0 [shape = 'u32[]', space=smem, size = 0x4, offset = 0x4, fixed_abs, tag = 'smem constant byte address 0x4 - core index']
  #allocation1 [shape = 'u32[144,128]{1,0:T(1,128)}', space=vmem, size = 0x12000, scoped, tag = 'internal scratch']
  %s0 = inlined_call_operand.vmem [shape: f32[256,32], index: 0, kind: input, shape index: {}]
  %s1 = inlined_call_operand.vmem [shape: f32[32,128], index: 1, kind: input, shape index: {}]
  %s2 = inlined_call_operand.vmem [shape: f32[1,128], index: 2, kind: input, shape index: {}]
  %s3 = inlined_call_operand.vmem [shape: f32[128,16], index: 3, kind: input, shape index: {}]
  %s4 = inlined_call_operand.vmem [shape: f32[1,16], index: 4, kind: input, shape index: {}]
  %s5 = inlined_call_operand.vmem [shape: f32[256,16], index: 5, kind: output, shape index: {}]
  %s6 = sld [smem:[#allocation0]]
  $region53: #{_mlp_forward.1} parent=0
    _
  %s8 = ssub.s32 1, %s6
  %s9 = scalar_select 0, %s8, %s6
  loop: start=0, step=1, limit=4
  $region2: #{_mlp_forward.1} parent=0 // loop_pre_header
    _
  $region3: #{_mlp_forward.1} parent=0 // loop_header
    %s11 = sphi 0, %s15
    %p12 = scmp.ge.s32.totalorder %s11, 4
    %s21 = sphi 0, %s23
    %s24 = sphi 0, %s21
    %s25 = sphi 0, %s24
    %s41 = sphi 0, %s25
    %s45 = sphi 0, %s45
    %s47 = sphi 0, %s45
    %s48 = sphi 0, %s47
    %s62 = sphi 0, %s48
    %s66 = sphi 0, %s66
    %s68 = sphi 0, %s66
    %s69 = sphi 0, %s68
    %s83 = sphi 0, %s69
    %s87 = sphi 0, %s87
    %s89 = sphi 0, %s87
    %s90 = sphi 0, %s89
    %s104 = sphi 0, %s90
    %s108 = sphi 0, %s108
    %s110 = sphi 0, %s108
    %s111 = sphi 0, %s110
    %s125 = sphi 0, %s111
    %s131 = sphi 0, %s133
    %s134 = sphi 0, %s131
    %s135 = sphi 0, %s134
    %s151 = sphi 0, %s135
  $region4: #{_mlp_forward.1} parent=0 // loop_header_branch
    %14 = sbr.rel (%p12) target = $region8
  $region5: #{_mlp_forward.1} parent=0 // loop_body
    %s16 = ssub.s32 %s11, 1
    %s17 = ssub.s32 %s11, 2
    %s18 = sadd.s32 %s11, 1
    %s19 = ssub.s32 %s11, %s18
    %p20 = scmp.eq.s32.totalorder %s19, 0
    %s22 = sadd.s32 %s21, 1
    %s23 = scalar_select %p20, %s21, %s22
    %p26 = pneg %p20
    %p27 = scmp.eq.s32.totalorder %s11, 1
    %p28 = por %p26, %p27
    %p29 = scmp.ne.s32.totalorder %s21, %s24
    %p30 = scmp.eq.s32.totalorder %s11, 0
    %p31 = por %p29, %p30
    %p32 = scmp.ne.s32.totalorder %s21, %s24
    %p33 = scmp.eq.s32.totalorder %s16, 1
    %p34 = por %p32, %p33
    %p35 = scmp.ne.s32.totalorder %s24, %s25
    %p36 = scmp.eq.s32.totalorder %s16, 0
    %p37 = por %p35, %p36
    %p38 = scmp.ne.s32.totalorder %s24, %s25
    %p39 = scmp.eq.s32.totalorder %s17, 1
    %p40 = por %p38, %p39
    %p42 = scmp.ne.s32.totalorder %s25, %s41
    %p43 = scmp.eq.s32.totalorder %s17, 0
    %p44 = por %p42, %p43
    %s46 = sadd.s32 %s45, 1
    %p49 = scmp.eq.s32.totalorder %s11, 1
    %p50 = scmp.ne.s32.totalorder %s45, %s47
    %p51 = scmp.eq.s32.totalorder %s11, 0
    %p52 = por %p50, %p51
    %p53 = scmp.ne.s32.totalorder %s45, %s47
    %p54 = scmp.eq.s32.totalorder %s16, 1
    %p55 = por %p53, %p54
    %p56 = scmp.ne.s32.totalorder %s47, %s48
    %p57 = scmp.eq.s32.totalorder %s16, 0
    %p58 = por %p56, %p57
    %p59 = scmp.ne.s32.totalorder %s47, %s48
    %p60 = scmp.eq.s32.totalorder %s17, 1
    %p61 = por %p59, %p60
    %p63 = scmp.ne.s32.totalorder %s48, %s62
    %p64 = scmp.eq.s32.totalorder %s17, 0
    %p65 = por %p63, %p64
    %s67 = sadd.s32 %s66, 1
    %p70 = scmp.eq.s32.totalorder %s11, 1
    %p71 = scmp.ne.s32.totalorder %s66, %s68
    %p72 = scmp.eq.s32.totalorder %s11, 0
    %p73 = por %p71, %p72
    %p74 = scmp.ne.s32.totalorder %s66, %s68
    %p75 = scmp.eq.s32.totalorder %s16, 1
    %p76 = por %p74, %p75
    %p77 = scmp.ne.s32.totalorder %s68, %s69
    %p78 = scmp.eq.s32.totalorder %s16, 0
    %p79 = por %p77, %p78
    %p80 = scmp.ne.s32.totalorder %s68, %s69
    %p81 = scmp.eq.s32.totalorder %s17, 1
    %p82 = por %p80, %p81
    %p84 = scmp.ne.s32.totalorder %s69, %s83
    %p85 = scmp.eq.s32.totalorder %s17, 0
    %p86 = por %p84, %p85
    %s88 = sadd.s32 %s87, 1
    %p91 = scmp.eq.s32.totalorder %s11, 1
    %p92 = scmp.ne.s32.totalorder %s87, %s89
    %p93 = scmp.eq.s32.totalorder %s11, 0
    %p94 = por %p92, %p93
    %p95 = scmp.ne.s32.totalorder %s87, %s89
    %p96 = scmp.eq.s32.totalorder %s16, 1
    %p97 = por %p95, %p96
    %p98 = scmp.ne.s32.totalorder %s89, %s90
    %p99 = scmp.eq.s32.totalorder %s16, 0
    %p100 = por %p98, %p99
    %p101 = scmp.ne.s32.totalorder %s89, %s90
    %p102 = scmp.eq.s32.totalorder %s17, 1
    %p103 = por %p101, %p102
    %p105 = scmp.ne.s32.totalorder %s90, %s104
    %p106 = scmp.eq.s32.totalorder %s17, 0
    %p107 = por %p105, %p106
    %s109 = sadd.s32 %s108, 1
    %p112 = scmp.eq.s32.totalorder %s11, 1
    %p113 = scmp.ne.s32.totalorder %s108, %s110
    %p114 = scmp.eq.s32.totalorder %s11, 0
    %p115 = por %p113, %p114
    %p116 = scmp.ne.s32.totalorder %s108, %s110
    %p117 = scmp.eq.s32.totalorder %s16, 1
    %p118 = por %p116, %p117
    %p119 = scmp.ne.s32.totalorder %s110, %s111
    %p120 = scmp.eq.s32.totalorder %s16, 0
    %p121 = por %p119, %p120
    %p122 = scmp.ne.s32.totalorder %s110, %s111
    %p123 = scmp.eq.s32.totalorder %s17, 1
    %p124 = por %p122, %p123
    %p126 = scmp.ne.s32.totalorder %s111, %s125
    %p127 = scmp.eq.s32.totalorder %s17, 0
    %p128 = por %p126, %p127
    %s129 = ssub.s32 %s11, %s18
    %p130 = scmp.eq.s32.totalorder %s129, 0
    %s132 = sadd.s32 %s131, 1
    %s133 = scalar_select %p130, %s131, %s132
    %p136 = pneg %p130
    %p137 = scmp.eq.s32.totalorder %s11, 1
    %p138 = por %p136, %p137
    %p139 = scmp.ne.s32.totalorder %s131, %s134
    %p140 = scmp.eq.s32.totalorder %s11, 0
    %p141 = por %p139, %p140
    %p142 = scmp.ne.s32.totalorder %s131, %s134
    %p143 = scmp.eq.s32.totalorder %s16, 1
    %p144 = por %p142, %p143
    %p145 = scmp.ne.s32.totalorder %s134, %s135
    %p146 = scmp.eq.s32.totalorder %s16, 0
    %p147 = por %p145, %p146
    %p148 = scmp.ne.s32.totalorder %s134, %s135
    %p149 = scmp.eq.s32.totalorder %s17, 1
    %p150 = por %p148, %p149
    %p152 = scmp.ne.s32.totalorder %s135, %s151
    %p153 = scmp.eq.s32.totalorder %s17, 0
    %p154 = por %p152, %p153
    %p155 = scmp.le.s32.totalorder 1, %s11
    %p156 = scmp.lt.s32.totalorder %s11, 3
    %p157 = pnand %p155, %p156
    %p158 = pneg %p157
    // Predicated region
    $region9: #{_mlp_forward.1} parent=5 // pred_check
      _
    $region10: #{_mlp_forward.1} parent=5 // pred_check_branch
      %160 = sbr.rel (%p157) target = $region12
    $region11: #{_mlp_forward.1} parent=5 // pred_region
      %s161 = ssub.s32 %s11, 1
      // Predicated region
      $region13: #{_mlp_forward.1} parent=11 // pred_check
        %p162 = pneg %p58
      $region14: #{_mlp_forward.1} parent=11 // pred_check_branch
        %164 = sbr.rel (%p162) target = $region16
      $region15: #{_mlp_forward.1} parent=11 // pred_region
        _
      $region16: #{_mlp_forward.1} parent=11 // pred_fallthru
        _
      // Predicated region
      $region17: #{_mlp_forward.1} parent=11 // pred_check
        %p165 = pneg %p79
      $region18: #{_mlp_forward.1} parent=11 // pred_check_branch
        %167 = sbr.rel (%p165) target = $region20
      $region19: #{_mlp_forward.1} parent=11 // pred_region
        _
      $region20: #{_mlp_forward.1} parent=11 // pred_fallthru
        _
      // Predicated region
      $region21: #{_mlp_forward.1} parent=11 // pred_check
        %p168 = pneg %p100
      $region22: #{_mlp_forward.1} parent=11 // pred_check_branch
        %170 = sbr.rel (%p168) target = $region24
      $region23: #{_mlp_forward.1} parent=11 // pred_region
        _
      $region24: #{_mlp_forward.1} parent=11 // pred_fallthru
        _
      // Predicated region
      $region25: #{_mlp_forward.1} parent=11 // pred_check
        %p171 = pneg %p121
      $region26: #{_mlp_forward.1} parent=11 // pred_check_branch
        %173 = sbr.rel (%p171) target = $region28
      $region27: #{_mlp_forward.1} parent=11 // pred_region
        _
      $region28: #{_mlp_forward.1} parent=11 // pred_fallthru
        _
    $region12: #{_mlp_forward.1} parent=5 // pred_fallthru
      _
    %p174 = scmp.lt.s32.totalorder %s11, 2
    // Predicated region
    $region29: #{_mlp_forward.1} parent=5 // pred_check
      %p175 = pneg %p174
    $region30: #{_mlp_forward.1} parent=5 // pred_check_branch
      %177 = sbr.rel (%p175) target = $region32
    $region31: #{_mlp_forward.1} parent=5 // pred_region
      // Predicated region
      $region33: #{_mlp_forward.1} parent=31 // pred_check
        %p178 = pneg %p31
      $region34: #{_mlp_forward.1} parent=31 // pred_check_branch
        %180 = sbr.rel (%p178) target = $region36
      $region35: #{_mlp_forward.1} parent=31 // pred_region
        %s181 = smul.u32 16, %s11
        %p182 = scmp.lt.s32.totalorder %s181, 31
        %s183 = scalar_select %p182, %s181, 31
        %s184 = smul.addr %s183, 8
        %s185 = scalar_lea.vmem %s0, %s184
        %s186 = smul.u32 16, %s11
      $region36: #{_mlp_forward.1} parent=31 // pred_fallthru
        _
    $region32: #{_mlp_forward.1} parent=5 // pred_fallthru
      _
    %p187 = scmp.le.s32.totalorder 1, %s11
    %p188 = scmp.lt.s32.totalorder %s11, 3
    %p189 = pnand %p187, %p188
    %p190 = pneg %p189
    // Predicated region
    $region37: #{_mlp_forward.1} parent=5 // pred_check
      _
    $region38: #{_mlp_forward.1} parent=5 // pred_check_branch
      %192 = sbr.rel (%p189) target = $region40
    $region39: #{_mlp_forward.1} parent=5 // pred_region
      %s193 = ssub.s32 %s11, 1
      %s194 = smul.u32 16, %s16
      %p195 = scmp.lt.s32.totalorder %s194, 31
      %s196 = scalar_select %p195, %s194, 31
      %s197 = smul.addr %s196, 8
      %s198 = scalar_lea.vmem %s0, %s197
      %p199 = pneg %p37
      %p200 = pneg %p34
      %p201 = pneg %p58
      %p202 = pneg %p55
      %p203 = pneg %p79
      %p204 = pneg %p76
      %p205 = pneg %p100
      %p206 = pneg %p97
      %p207 = pneg %p121
      %p208 = pneg %p118
      %p209 = pneg %p147
      %p210 = pneg %p144
      %s211 = smul.u32 16, %s16
      %p212 = scmp.lt.s32.totalorder %s211, 31
      %s213 = scalar_select %p212, %s211, 31
      %s214 = smul.addr %s213, 8
      %s215 = scalar_lea.vmem %s5, %s214
      %s216 = smul.u32 16, %s16
      %p217 = scmp.lt.s32.totalorder %s216, 31
      %s218 = scalar_select %p217, %s216, 31
      %s219 = smul.addr %s218, 8
      %s220 = scalar_lea.vmem %s0, %s219
      %s221 = smul.u32 16, %s16
      %s222 = smul.u32 16, %s16
      %p223 = scmp.lt.s32.totalorder %s222, 31
      %s224 = scalar_select %p223, %s222, 31
      %s225 = smul.addr %s224, 8
      %s226 = scalar_lea.vmem %s5, %s225
      %s227 = smul.u32 16, %s16
      %v228 = vld [vmem:[%s1] sm:$0xff]
      %v229 = vld [vmem:[%s1 + $0x8] sm:$0xff]
      %v230 = vld [vmem:[%s1 + $0x10] sm:$0xff]
      %v231 = vld [vmem:[%s1 + $0x18] sm:$0xff]
      %v232 = vld [vmem:[%s3] sm:$0xff]
      %v233 = vld [vmem:[%s3 + $0x8] sm:$0xff]
      %v234 = vld [vmem:[%s3 + $0x10] sm:$0xff]
      %v235 = vld [vmem:[%s3 + $0x18] sm:$0xff]
      %v236 = vld [vmem:[%s3 + $0x20] sm:$0xff]
      %v237 = vld [vmem:[%s3 + $0x28] sm:$0xff]
      %v238 = vld [vmem:[%s3 + $0x30] sm:$0xff]
      %v239 = vld [vmem:[%s3 + $0x38] sm:$0xff]
      %v240 = vld [vmem:[%s3 + $0x40] sm:$0xff]
      %v241 = vld [vmem:[%s3 + $0x48] sm:$0xff]
      %v242 = vld [vmem:[%s3 + $0x50] sm:$0xff]
      %v243 = vld [vmem:[%s3 + $0x58] sm:$0xff]
      %v244 = vld [vmem:[%s3 + $0x60] sm:$0xff]
      %v245 = vld [vmem:[%s3 + $0x68] sm:$0xff]
      %v246 = vld [vmem:[%s3 + $0x70] sm:$0xff]
      %v247 = vld [vmem:[%s3 + $0x78] sm:$0xff]
      %v248 = vld [vmem:[%s220] sm:$0xff]
      %v249 = vld [vmem:[%s220 + $0x8] sm:$0xff]
      %v250 = vld [vmem:[%s220 + $0x10] sm:$0xff]
      %v251 = vld [vmem:[%s220 + $0x18] sm:$0xff]
      %v252 = vld [vmem:[%s220 + $0x20] sm:$0xff]
      %v253 = vld [vmem:[%s220 + $0x28] sm:$0xff]
      %v254 = vld [vmem:[%s220 + $0x30] sm:$0xff]
      %v255 = vld [vmem:[%s220 + $0x38] sm:$0xff]
      %v256 = vld [vmem:[%s220 + $0x40] sm:$0xff]
      %v257 = vld [vmem:[%s220 + $0x48] sm:$0xff]
      %v258 = vld [vmem:[%s220 + $0x50] sm:$0xff]
      %v259 = vld [vmem:[%s220 + $0x58] sm:$0xff]
      %v260 = vld [vmem:[%s220 + $0x60] sm:$0xff]
      %v261 = vld [vmem:[%s220 + $0x68] sm:$0xff]
      %v262 = vld [vmem:[%s220 + $0x70] sm:$0xff]
      %v263 = vld [vmem:[%s220 + $0x78] sm:$0xff]
      %v264 = vld [vmem:[%s2] sm:$0x1]
      %v266 = vlaneseq
      %v267 = vshrl.u32 %v266, 7
      %v268 = vsub.s32 0, %v267
      %v269 = vrot.slane %v264, %v268
      %vm271 = vcmask 261120
      %v273 = vsel %vm271, %v248, 0
      %v276 = vsel %vm271, %v249, 0
      %v279 = vsel %vm271, %v250, 0
      %v282 = vsel %vm271, %v251, 0
      %v285 = vsel %vm271, %v252, 0
      %v288 = vsel %vm271, %v253, 0
      %v291 = vsel %vm271, %v254, 0
      %v294 = vsel %vm271, %v255, 0
      %v297 = vsel %vm271, %v256, 0
      %v300 = vsel %vm271, %v257, 0
      %v303 = vsel %vm271, %v258, 0
      %v306 = vsel %vm271, %v259, 0
      %v309 = vsel %vm271, %v260, 0
      %v312 = vsel %vm271, %v261, 0
      %v315 = vsel %vm271, %v262, 0
      %v318 = vsel %vm271, %v263, 0
      %320 = vmatprep.subr.mxu0 0.0
      %321 = vmatpush1.msra.mxu0 0.0
      %322 = vmatprep.subr.mxu0 0.0
      %323 = vmatpush1.msra.mxu0 0.0
      %324 = vmatprep.subr.mxu0 0.0
      %325 = vmatpush1.msra.mxu0 0.0
      %326 = vmatprep.subr.mxu0 0.0
      %327 = vmatpush1.msra.mxu0 0.0
      %328 = vmatprep.subr.mxu0 0.0
      %329 = vmatpush1.msra.mxu0 0.0
      %330 = vmatprep.subr.mxu0 0.0
      %331 = vmatpush1.msra.mxu0 0.0
      %332 = vmatprep.subr.mxu0 0.0
      %333 = vmatpush1.msra.mxu0 0.0
      %334 = vmatprep.subr.mxu0 0.0
      %335 = vmatpush1.msra.mxu0 0.0
      %336 = vmatprep.subr.mxu0 0.0
      %337 = vmatpush1.msra.mxu0 0.0
      %338 = vmatprep.subr.mxu0 0.0
      %339 = vmatpush1.msra.mxu0 0.0
      %340 = vmatprep.subr.mxu0 0.0
      %341 = vmatpush1.msra.mxu0 0.0
      %342 = vmatprep.subr.mxu0 0.0
      %343 = vmatpush1.msra.mxu0 0.0
      %344 = vmatprep.subr.mxu0 0.0
      %v345 = vand.u32 %v231, 4294901760
      %346 = vmatpush1.msra.mxu0 %v345
      %347 = vmatprep.subr.mxu0 0.0
      %v348 = vand.u32 %v230, 4294901760
      %349 = vmatpush1.msra.mxu0 %v348
      %350 = vmatprep.subr.mxu0 0.0
      %v351 = vand.u32 %v229, 4294901760
      %352 = vmatpush1.msra.mxu0 %v351
      %353 = vmatprep.subr.mxu0 0.0
      %v354 = vand.u32 %v228, 4294901760
      %355 = vmatpush1.msra.mxu0 %v354
      %356 = vmatprep.subr.mxu0 0.0
      %357 = vmatpush2.msra.mxu0 0.0
      %358 = vmatprep.subr.mxu0 0.0
      %359 = vmatpush2.msra.mxu0 0.0
      %360 = vmatprep.subr.mxu0 0.0
      %361 = vmatpush2.msra.mxu0 0.0
      %362 = vmatprep.subr.mxu0 0.0
      %363 = vmatpush2.msra.mxu0 0.0
      %364 = vmatprep.subr.mxu0 0.0
      %365 = vmatpush2.msra.mxu0 0.0
      %366 = vmatprep.subr.mxu0 0.0
      %367 = vmatpush2.msra.mxu0 0.0
      %368 = vmatprep.subr.mxu0 0.0
      %369 = vmatpush2.msra.mxu0 0.0
      %370 = vmatprep.subr.mxu0 0.0
      %371 = vmatpush2.msra.mxu0 0.0
      %372 = vmatprep.subr.mxu0 0.0
      %373 = vmatpush2.msra.mxu0 0.0
      %374 = vmatprep.subr.mxu0 0.0
      %375 = vmatpush2.msra.mxu0 0.0
      %376 = vmatprep.subr.mxu0 0.0
      %377 = vmatpush2.msra.mxu0 0.0
      %378 = vmatprep.subr.mxu0 0.0
      %379 = vmatpush2.msra.mxu0 0.0
      %380 = vmatprep.subr.mxu0 0.0
      %381 = vmatpush2.msra.mxu0 0.0
      %382 = vmatprep.subr.mxu0 0.0
      %383 = vmatpush2.msra.mxu0 0.0
      %384 = vmatprep.subr.mxu0 0.0
      %385 = vmatpush2.msra.mxu0 0.0
      %386 = vmatprep.subr.mxu0 0.0
      %387 = vmatpush2.msra.mxu0 0.0
      %388 = vmatprep.mubr.f32.mxu0 0.0
      %v389 = vand.u32 %v273, 4294901760
      %v390 = vsub.f32 %v273, %v389
      %v391 = vand.u32 %v390, 4294901760
      %v392 = vsub.f32 %v390, %v391
      %v393 = vand.u32 %v392, 4294901760
      %394 = vmatmul.mubr.f32.gmra.mxu0 %v393
      %v395 = vpop.f32.mrf.mxu0
      %v396 = vadd.f32 %v269, %v395
      %v397 = vpop.f32.mrf.mxu0
      %398 = vmatprep.mubr.f32.mxu0 0.0
      %v399 = vand.u32 %v276, 4294901760
      %v400 = vsub.f32 %v276, %v399
      %v401 = vand.u32 %v400, 4294901760
      %v402 = vsub.f32 %v400, %v401
      %v403 = vand.u32 %v402, 4294901760
      %404 = vmatmul.mubr.f32.gmra.mxu0 %v403
      %v405 = vpop.f32.mrf.mxu0
      %v406 = vadd.f32 %v269, %v405
      %v407 = vpop.f32.mrf.mxu0
      %408 = vmatprep.mubr.f32.mxu0 0.0
      %v409 = vand.u32 %v279, 4294901760
      %v410 = vsub.f32 %v279, %v409
      %v411 = vand.u32 %v410, 4294901760
      %v412 = vsub.f32 %v410, %v411
      %v413 = vand.u32 %v412, 4294901760
      %414 = vmatmul.mubr.f32.gmra.mxu0 %v413
      %v415 = vpop.f32.mrf.mxu0
      %v416 = vadd.f32 %v269, %v415
      %v417 = vpop.f32.mrf.mxu0
      %418 = vmatprep.mubr.f32.mxu0 0.0
      %v419 = vand.u32 %v282, 4294901760
      %v420 = vsub.f32 %v282, %v419
      %v421 = vand.u32 %v420, 4294901760
      %v422 = vsub.f32 %v420, %v421
      %v423 = vand.u32 %v422, 4294901760
      %424 = vmatmul.mubr.f32.gmra.mxu0 %v423
      %v425 = vpop.f32.mrf.mxu0
      %v426 = vadd.f32 %v269, %v425
      %v427 = vpop.f32.mrf.mxu0
      %428 = vmatprep.mubr.f32.mxu0 0.0
      %v429 = vand.u32 %v285, 4294901760
      %v430 = vsub.f32 %v285, %v429
      %v431 = vand.u32 %v430, 4294901760
      %v432 = vsub.f32 %v430, %v431
      %v433 = vand.u32 %v432, 4294901760
      %434 = vmatmul.mubr.f32.gmra.mxu0 %v433
      %v435 = vpop.f32.mrf.mxu0
      %v436 = vadd.f32 %v269, %v435
      %v437 = vpop.f32.mrf.mxu0
      %438 = vmatprep.mubr.f32.mxu0 0.0
      %v439 = vand.u32 %v288, 4294901760
      %v440 = vsub.f32 %v288, %v439
      %v441 = vand.u32 %v440, 4294901760
      %v442 = vsub.f32 %v440, %v441
      %v443 = vand.u32 %v442, 4294901760
      %444 = vmatmul.mubr.f32.gmra.mxu0 %v443
      %v445 = vpop.f32.mrf.mxu0
      %v446 = vadd.f32 %v269, %v445
      %v447 = vpop.f32.mrf.mxu0
      %448 = vmatprep.mubr.f32.mxu0 0.0
      %v449 = vand.u32 %v291, 4294901760
      %v450 = vsub.f32 %v291, %v449
      %v451 = vand.u32 %v450, 4294901760
      %v452 = vsub.f32 %v450, %v451
      %v453 = vand.u32 %v452, 4294901760
      %454 = vmatmul.mubr.f32.gmra.mxu0 %v453
      %v455 = vpop.f32.mrf.mxu0
      %v456 = vadd.f32 %v269, %v455
      %v457 = vpop.f32.mrf.mxu0
      %458 = vmatprep.mubr.f32.mxu0 0.0
      %v459 = vand.u32 %v294, 4294901760
      %v460 = vsub.f32 %v294, %v459
      %v461 = vand.u32 %v460, 4294901760
      %v462 = vsub.f32 %v460, %v461
      %v463 = vand.u32 %v462, 4294901760
      %464 = vmatmul.mubr.f32.gmra.mxu0 %v463
      %v465 = vpop.f32.mrf.mxu0
      %v466 = vadd.f32 %v269, %v465
      %v467 = vpop.f32.mrf.mxu0
      %468 = vmatprep.mubr.f32.mxu0 0.0
      %v469 = vand.u32 %v297, 4294901760
      %v470 = vsub.f32 %v297, %v469
      %v471 = vand.u32 %v470, 4294901760
      %v472 = vsub.f32 %v470, %v471
      %v473 = vand.u32 %v472, 4294901760
      %474 = vmatmul.mubr.f32.gmra.mxu0 %v473
      %v475 = vpop.f32.mrf.mxu0
      %v476 = vadd.f32 %v269, %v475
      %v477 = vpop.f32.mrf.mxu0
      %478 = vmatprep.mubr.f32.mxu0 0.0
      %v479 = vand.u32 %v300, 4294901760
      %v480 = vsub.f32 %v300, %v479
      %v481 = vand.u32 %v480, 4294901760
      %v482 = vsub.f32 %v480, %v481
      %v483 = vand.u32 %v482, 4294901760
      %484 = vmatmul.mubr.f32.gmra.mxu0 %v483
      %v485 = vpop.f32.mrf.mxu0
      %v486 = vadd.f32 %v269, %v485
      %v487 = vpop.f32.mrf.mxu0
      %488 = vmatprep.mubr.f32.mxu0 0.0
      %v489 = vand.u32 %v303, 4294901760
      %v490 = vsub.f32 %v303, %v489
      %v491 = vand.u32 %v490, 4294901760
      %v492 = vsub.f32 %v490, %v491
      %v493 = vand.u32 %v492, 4294901760
      %494 = vmatmul.mubr.f32.gmra.mxu0 %v493
      %v495 = vpop.f32.mrf.mxu0
      %v496 = vadd.f32 %v269, %v495
      %v497 = vpop.f32.mrf.mxu0
      %498 = vmatprep.mubr.f32.mxu0 0.0
      %v499 = vand.u32 %v306, 4294901760
      %v500 = vsub.f32 %v306, %v499
      %v501 = vand.u32 %v500, 4294901760
      %v502 = vsub.f32 %v500, %v501
      %v503 = vand.u32 %v502, 4294901760
      %504 = vmatmul.mubr.f32.gmra.mxu0 %v503
      %v505 = vpop.f32.mrf.mxu0
      %v506 = vadd.f32 %v269, %v505
      %v507 = vpop.f32.mrf.mxu0
      %508 = vmatprep.mubr.f32.mxu0 0.0
      %v509 = vand.u32 %v309, 4294901760
      %v510 = vsub.f32 %v309, %v509
      %v511 = vand.u32 %v510, 4294901760
      %v512 = vsub.f32 %v510, %v511
      %v513 = vand.u32 %v512, 4294901760
      %514 = vmatmul.mubr.f32.gmra.mxu0 %v513
      %v515 = vpop.f32.mrf.mxu0
      %v516 = vadd.f32 %v269, %v515
      %v517 = vpop.f32.mrf.mxu0
      %518 = vmatprep.mubr.f32.mxu0 0.0
      %v519 = vand.u32 %v312, 4294901760
      %v520 = vsub.f32 %v312, %v519
      %v521 = vand.u32 %v520, 4294901760
      %v522 = vsub.f32 %v520, %v521
      %v523 = vand.u32 %v522, 4294901760
      %524 = vmatmul.mubr.f32.gmra.mxu0 %v523
      %v525 = vpop.f32.mrf.mxu0
      %v526 = vadd.f32 %v269, %v525
      %v527 = vpop.f32.mrf.mxu0
      %528 = vmatprep.mubr.f32.mxu0 0.0
      %v529 = vand.u32 %v315, 4294901760
      %v530 = vsub.f32 %v315, %v529
      %v531 = vand.u32 %v530, 4294901760
      %v532 = vsub.f32 %v530, %v531
      %v533 = vand.u32 %v532, 4294901760
      %534 = vmatmul.mubr.f32.gmra.mxu0 %v533
      %v535 = vpop.f32.mrf.mxu0
      %v536 = vadd.f32 %v269, %v535
      %v537 = vpop.f32.mrf.mxu0
      %538 = vmatprep.mubr.f32.mxu0 0.0
      %v539 = vand.u32 %v318, 4294901760
      %v540 = vsub.f32 %v318, %v539
      %v541 = vand.u32 %v540, 4294901760
      %v542 = vsub.f32 %v540, %v541
      %v543 = vand.u32 %v542, 4294901760
      %544 = vmatmul.mubr.f32.gmra.mxu0 %v543
      %v545 = vpop.f32.mrf.mxu0
      %v546 = vadd.f32 %v269, %v545
      %v547 = vpop.f32.mrf.mxu0
      %548 = vdwg.mxu0
      %549 = vmatprep.subr.mxu0 0.0
      %550 = vmatpush1.msra.mxu0 0.0
      %551 = vmatprep.subr.mxu0 0.0
      %552 = vmatpush1.msra.mxu0 0.0
      %553 = vmatprep.subr.mxu0 0.0
      %554 = vmatpush1.msra.mxu0 0.0
      %555 = vmatprep.subr.mxu0 0.0
      %556 = vmatpush1.msra.mxu0 0.0
      %557 = vmatprep.subr.mxu0 0.0
      %558 = vmatpush1.msra.mxu0 0.0
      %559 = vmatprep.subr.mxu0 0.0
      %560 = vmatpush1.msra.mxu0 0.0
      %561 = vmatprep.subr.mxu0 0.0
      %562 = vmatpush1.msra.mxu0 0.0
      %563 = vmatprep.subr.mxu0 0.0
      %564 = vmatpush1.msra.mxu0 0.0
      %565 = vmatprep.subr.mxu0 0.0
      %566 = vmatpush1.msra.mxu0 0.0
      %567 = vmatprep.subr.mxu0 0.0
      %568 = vmatpush1.msra.mxu0 0.0
      %569 = vmatprep.subr.mxu0 0.0
      %570 = vmatpush1.msra.mxu0 0.0
      %571 = vmatprep.subr.mxu0 0.0
      %572 = vmatpush1.msra.mxu0 0.0
      %573 = vmatprep.subr.mxu0 0.0
      %v574 = vand.u32 %v231, 4294901760
      %v575 = vsub.f32 %v231, %v574
      %v576 = vand.u32 %v575, 4294901760
      %v577 = vsub.f32 %v575, %v576
      %v578 = vand.u32 %v577, 4294901760
      %579 = vmatpush1.msra.mxu0 %v578
      %580 = vmatprep.subr.mxu0 0.0
      %v581 = vand.u32 %v230, 4294901760
      %v582 = vsub.f32 %v230, %v581
      %v583 = vand.u32 %v582, 4294901760
      %v584 = vsub.f32 %v582, %v583
      %v585 = vand.u32 %v584, 4294901760
      %586 = vmatpush1.msra.mxu0 %v585
      %587 = vmatprep.subr.mxu0 0.0
      %v588 = vand.u32 %v229, 4294901760
      %v589 = vsub.f32 %v229, %v588
      %v590 = vand.u32 %v589, 4294901760
      %v591 = vsub.f32 %v589, %v590
      %v592 = vand.u32 %v591, 4294901760
      %593 = vmatpush1.msra.mxu0 %v592
      %594 = vmatprep.subr.mxu0 0.0
      %v595 = vand.u32 %v228, 4294901760
      %v596 = vsub.f32 %v228, %v595
      %v597 = vand.u32 %v596, 4294901760
      %v598 = vsub.f32 %v596, %v597
      %v599 = vand.u32 %v598, 4294901760
      %600 = vmatpush1.msra.mxu0 %v599
      %601 = vmatprep.subr.mxu0 0.0
      %602 = vmatpush2.msra.mxu0 0.0
      %603 = vmatprep.subr.mxu0 0.0
      %604 = vmatpush2.msra.mxu0 0.0
      %605 = vmatprep.subr.mxu0 0.0
      %606 = vmatpush2.msra.mxu0 0.0
      %607 = vmatprep.subr.mxu0 0.0
      %608 = vmatpush2.msra.mxu0 0.0
      %609 = vmatprep.subr.mxu0 0.0
      %610 = vmatpush2.msra.mxu0 0.0
      %611 = vmatprep.subr.mxu0 0.0
      %612 = vmatpush2.msra.mxu0 0.0
      %613 = vmatprep.subr.mxu0 0.0
      %614 = vmatpush2.msra.mxu0 0.0
      %615 = vmatprep.subr.mxu0 0.0
      %616 = vmatpush2.msra.mxu0 0.0
      %617 = vmatprep.subr.mxu0 0.0
      %618 = vmatpush2.msra.mxu0 0.0
      %619 = vmatprep.subr.mxu0 0.0
      %620 = vmatpush2.msra.mxu0 0.0
      %621 = vmatprep.subr.mxu0 0.0
      %622 = vmatpush2.msra.mxu0 0.0
      %623 = vmatprep.subr.mxu0 0.0
      %624 = vmatpush2.msra.mxu0 0.0
      %625 = vmatprep.subr.mxu0 0.0
      %626 = vmatpush2.msra.mxu0 0.0
      %627 = vmatprep.subr.mxu0 0.0
      %628 = vmatpush2.msra.mxu0 0.0
      %629 = vmatprep.subr.mxu0 0.0
      %630 = vmatpush2.msra.mxu0 0.0
      %631 = vmatprep.subr.mxu0 0.0
      %632 = vmatpush2.msra.mxu0 0.0
      %633 = vmatprep.mubr.f32.mxu0 0.0
      %v634 = vand.u32 %v273, 4294901760
      %635 = vmatmul.mubr.f32.gmra.mxu0 %v634
      %v636 = vpop.f32.mrf.mxu0
      %v637 = vadd.f32 %v396, %v636
      %v638 = vpop.f32.mrf.mxu0
      %639 = vmatprep.mubr.f32.mxu0 0.0
      %v640 = vand.u32 %v276, 4294901760
      %641 = vmatmul.mubr.f32.gmra.mxu0 %v640
      %v642 = vpop.f32.mrf.mxu0
      %v643 = vadd.f32 %v406, %v642
      %v644 = vpop.f32.mrf.mxu0
      %645 = vmatprep.mubr.f32.mxu0 0.0
      %v646 = vand.u32 %v279, 4294901760
      %647 = vmatmul.mubr.f32.gmra.mxu0 %v646
      %v648 = vpop.f32.mrf.mxu0
      %v649 = vadd.f32 %v416, %v648
      %v650 = vpop.f32.mrf.mxu0
      %651 = vmatprep.mubr.f32.mxu0 0.0
      %v652 = vand.u32 %v282, 4294901760
      %653 = vmatmul.mubr.f32.gmra.mxu0 %v652
      %v654 = vpop.f32.mrf.mxu0
      %v655 = vadd.f32 %v426, %v654
      %v656 = vpop.f32.mrf.mxu0
      %657 = vmatprep.mubr.f32.mxu0 0.0
      %v658 = vand.u32 %v285, 4294901760
      %659 = vmatmul.mubr.f32.gmra.mxu0 %v658
      %v660 = vpop.f32.mrf.mxu0
      %v661 = vadd.f32 %v436, %v660
      %v662 = vpop.f32.mrf.mxu0
      %663 = vmatprep.mubr.f32.mxu0 0.0
      %v664 = vand.u32 %v288, 4294901760
      %665 = vmatmul.mubr.f32.gmra.mxu0 %v664
      %v666 = vpop.f32.mrf.mxu0
      %v667 = vadd.f32 %v446, %v666
      %v668 = vpop.f32.mrf.mxu0
      %669 = vmatprep.mubr.f32.mxu0 0.0
      %v670 = vand.u32 %v291, 4294901760
      %671 = vmatmul.mubr.f32.gmra.mxu0 %v670
      %v672 = vpop.f32.mrf.mxu0
      %v673 = vadd.f32 %v456, %v672
      %v674 = vpop.f32.mrf.mxu0
      %675 = vmatprep.mubr.f32.mxu0 0.0
      %v676 = vand.u32 %v294, 4294901760
      %677 = vmatmul.mubr.f32.gmra.mxu0 %v676
      %v678 = vpop.f32.mrf.mxu0
      %v679 = vadd.f32 %v466, %v678
      %v680 = vpop.f32.mrf.mxu0
      %681 = vmatprep.mubr.f32.mxu0 0.0
      %v682 = vand.u32 %v297, 4294901760
      %683 = vmatmul.mubr.f32.gmra.mxu0 %v682
      %v684 = vpop.f32.mrf.mxu0
      %v685 = vadd.f32 %v476, %v684
      %v686 = vpop.f32.mrf.mxu0
      %687 = vmatprep.mubr.f32.mxu0 0.0
      %v688 = vand.u32 %v300, 4294901760
      %689 = vmatmul.mubr.f32.gmra.mxu0 %v688
      %v690 = vpop.f32.mrf.mxu0
      %v691 = vadd.f32 %v486, %v690
      %v692 = vpop.f32.mrf.mxu0
      %693 = vmatprep.mubr.f32.mxu0 0.0
      %v694 = vand.u32 %v303, 4294901760
      %695 = vmatmul.mubr.f32.gmra.mxu0 %v694
      %v696 = vpop.f32.mrf.mxu0
      %v697 = vadd.f32 %v496, %v696
      %v698 = vpop.f32.mrf.mxu0
      %699 = vmatprep.mubr.f32.mxu0 0.0
      %v700 = vand.u32 %v306, 4294901760
      %701 = vmatmul.mubr.f32.gmra.mxu0 %v700
      %v702 = vpop.f32.mrf.mxu0
      %v703 = vadd.f32 %v506, %v702
      %v704 = vpop.f32.mrf.mxu0
      %705 = vmatprep.mubr.f32.mxu0 0.0
      %v706 = vand.u32 %v309, 4294901760
      %707 = vmatmul.mubr.f32.gmra.mxu0 %v706
      %v708 = vpop.f32.mrf.mxu0
      %v709 = vadd.f32 %v516, %v708
      %v710 = vpop.f32.mrf.mxu0
      %711 = vmatprep.mubr.f32.mxu0 0.0
      %v712 = vand.u32 %v312, 4294901760
      %713 = vmatmul.mubr.f32.gmra.mxu0 %v712
      %v714 = vpop.f32.mrf.mxu0
      %v715 = vadd.f32 %v526, %v714
      %v716 = vpop.f32.mrf.mxu0
      %717 = vmatprep.mubr.f32.mxu0 0.0
      %v718 = vand.u32 %v315, 4294901760
      %719 = vmatmul.mubr.f32.gmra.mxu0 %v718
      %v720 = vpop.f32.mrf.mxu0
      %v721 = vadd.f32 %v536, %v720
      %v722 = vpop.f32.mrf.mxu0
      %723 = vmatprep.mubr.f32.mxu0 0.0
      %v724 = vand.u32 %v318, 4294901760
      %725 = vmatmul.mubr.f32.gmra.mxu0 %v724
      %v726 = vpop.f32.mrf.mxu0
      %v727 = vadd.f32 %v546, %v726
      %v728 = vpop.f32.mrf.mxu0
      %729 = vdwg.mxu0
      %730 = vmatprep.subr.mxu0 0.0
      %731 = vmatpush1.msra.mxu0 0.0
      %732 = vmatprep.subr.mxu0 0.0
      %733 = vmatpush1.msra.mxu0 0.0
      %734 = vmatprep.subr.mxu0 0.0
      %735 = vmatpush1.msra.mxu0 0.0
      %736 = vmatprep.subr.mxu0 0.0
      %737 = vmatpush1.msra.mxu0 0.0
      %738 = vmatprep.subr.mxu0 0.0
      %739 = vmatpush1.msra.mxu0 0.0
      %740 = vmatprep.subr.mxu0 0.0
      %741 = vmatpush1.msra.mxu0 0.0
      %742 = vmatprep.subr.mxu0 0.0
      %743 = vmatpush1.msra.mxu0 0.0
      %744 = vmatprep.subr.mxu0 0.0
      %745 = vmatpush1.msra.mxu0 0.0
      %746 = vmatprep.subr.mxu0 0.0
      %747 = vmatpush1.msra.mxu0 0.0
      %748 = vmatprep.subr.mxu0 0.0
      %749 = vmatpush1.msra.mxu0 0.0
      %750 = vmatprep.subr.mxu0 0.0
      %751 = vmatpush1.msra.mxu0 0.0
      %752 = vmatprep.subr.mxu0 0.0
      %753 = vmatpush1.msra.mxu0 0.0
      %754 = vmatprep.subr.mxu0 0.0
      %v755 = vand.u32 %v231, 4294901760
      %v756 = vsub.f32 %v231, %v755
      %757 = vmatpush1.msra.mxu0 %v756
      %758 = vmatprep.subr.mxu0 0.0
      %v759 = vand.u32 %v230, 4294901760
      %v760 = vsub.f32 %v230, %v759
      %761 = vmatpush1.msra.mxu0 %v760
      %762 = vmatprep.subr.mxu0 0.0
      %v763 = vand.u32 %v229, 4294901760
      %v764 = vsub.f32 %v229, %v763
      %765 = vmatpush1.msra.mxu0 %v764
      %766 = vmatprep.subr.mxu0 0.0
      %v767 = vand.u32 %v228, 4294901760
      %v768 = vsub.f32 %v228, %v767
      %769 = vmatpush1.msra.mxu0 %v768
      %770 = vmatprep.subr.mxu0 0.0
      %771 = vmatpush2.msra.mxu0 0.0
      %772 = vmatprep.subr.mxu0 0.0
      %773 = vmatpush2.msra.mxu0 0.0
      %774 = vmatprep.subr.mxu0 0.0
      %775 = vmatpush2.msra.mxu0 0.0
      %776 = vmatprep.subr.mxu0 0.0
      %777 = vmatpush2.msra.mxu0 0.0
      %778 = vmatprep.subr.mxu0 0.0
      %779 = vmatpush2.msra.mxu0 0.0
      %780 = vmatprep.subr.mxu0 0.0
      %781 = vmatpush2.msra.mxu0 0.0
      %782 = vmatprep.subr.mxu0 0.0
      %783 = vmatpush2.msra.mxu0 0.0
      %784 = vmatprep.subr.mxu0 0.0
      %785 = vmatpush2.msra.mxu0 0.0
      %786 = vmatprep.subr.mxu0 0.0
      %787 = vmatpush2.msra.mxu0 0.0
      %788 = vmatprep.subr.mxu0 0.0
      %789 = vmatpush2.msra.mxu0 0.0
      %790 = vmatprep.subr.mxu0 0.0
      %791 = vmatpush2.msra.mxu0 0.0
      %792 = vmatprep.subr.mxu0 0.0
      %793 = vmatpush2.msra.mxu0 0.0
      %794 = vmatprep.subr.mxu0 0.0
      %795 = vmatpush2.msra.mxu0 0.0
      %796 = vmatprep.subr.mxu0 0.0
      %797 = vmatpush2.msra.mxu0 0.0
      %798 = vmatprep.subr.mxu0 0.0
      %799 = vmatpush2.msra.mxu0 0.0
      %800 = vmatprep.subr.mxu0 0.0
      %801 = vmatpush2.msra.mxu0 0.0
      %802 = vmatprep.mubr.f32.mxu0 0.0
      %v803 = vand.u32 %v273, 4294901760
      %v804 = vsub.f32 %v273, %v803
      %805 = vmatmul.mubr.f32.gmra.mxu0 %v804
      %v806 = vpop.f32.mrf.mxu0
      %v807 = vadd.f32 %v637, %v806
      %v808 = vpop.f32.mrf.mxu0
      %809 = vmatprep.mubr.f32.mxu0 0.0
      %v810 = vand.u32 %v276, 4294901760
      %v811 = vsub.f32 %v276, %v810
      %812 = vmatmul.mubr.f32.gmra.mxu0 %v811
      %v813 = vpop.f32.mrf.mxu0
      %v814 = vadd.f32 %v643, %v813
      %v815 = vpop.f32.mrf.mxu0
      %816 = vmatprep.mubr.f32.mxu0 0.0
      %v817 = vand.u32 %v279, 4294901760
      %v818 = vsub.f32 %v279, %v817
      %819 = vmatmul.mubr.f32.gmra.mxu0 %v818
      %v820 = vpop.f32.mrf.mxu0
      %v821 = vadd.f32 %v649, %v820
      %v822 = vpop.f32.mrf.mxu0
      %823 = vmatprep.mubr.f32.mxu0 0.0
      %v824 = vand.u32 %v282, 4294901760
      %v825 = vsub.f32 %v282, %v824
      %826 = vmatmul.mubr.f32.gmra.mxu0 %v825
      %v827 = vpop.f32.mrf.mxu0
      %v828 = vadd.f32 %v655, %v827
      %v829 = vpop.f32.mrf.mxu0
      %830 = vmatprep.mubr.f32.mxu0 0.0
      %v831 = vand.u32 %v285, 4294901760
      %v832 = vsub.f32 %v285, %v831
      %833 = vmatmul.mubr.f32.gmra.mxu0 %v832
      %v834 = vpop.f32.mrf.mxu0
      %v835 = vadd.f32 %v661, %v834
      %v836 = vpop.f32.mrf.mxu0
      %837 = vmatprep.mubr.f32.mxu0 0.0
      %v838 = vand.u32 %v288, 4294901760
      %v839 = vsub.f32 %v288, %v838
      %840 = vmatmul.mubr.f32.gmra.mxu0 %v839
      %v841 = vpop.f32.mrf.mxu0
      %v842 = vadd.f32 %v667, %v841
      %v843 = vpop.f32.mrf.mxu0
      %844 = vmatprep.mubr.f32.mxu0 0.0
      %v845 = vand.u32 %v291, 4294901760
      %v846 = vsub.f32 %v291, %v845
      %847 = vmatmul.mubr.f32.gmra.mxu0 %v846
      %v848 = vpop.f32.mrf.mxu0
      %v849 = vadd.f32 %v673, %v848
      %v850 = vpop.f32.mrf.mxu0
      %851 = vmatprep.mubr.f32.mxu0 0.0
      %v852 = vand.u32 %v294, 4294901760
      %v853 = vsub.f32 %v294, %v852
      %854 = vmatmul.mubr.f32.gmra.mxu0 %v853
      %v855 = vpop.f32.mrf.mxu0
      %v856 = vadd.f32 %v679, %v855
      %v857 = vpop.f32.mrf.mxu0
      %858 = vmatprep.mubr.f32.mxu0 0.0
      %v859 = vand.u32 %v297, 4294901760
      %v860 = vsub.f32 %v297, %v859
      %861 = vmatmul.mubr.f32.gmra.mxu0 %v860
      %v862 = vpop.f32.mrf.mxu0
      %v863 = vadd.f32 %v685, %v862
      %v864 = vpop.f32.mrf.mxu0
      %865 = vmatprep.mubr.f32.mxu0 0.0
      %v866 = vand.u32 %v300, 4294901760
      %v867 = vsub.f32 %v300, %v866
      %868 = vmatmul.mubr.f32.gmra.mxu0 %v867
      %v869 = vpop.f32.mrf.mxu0
      %v870 = vadd.f32 %v691, %v869
      %v871 = vpop.f32.mrf.mxu0
      %872 = vmatprep.mubr.f32.mxu0 0.0
      %v873 = vand.u32 %v303, 4294901760
      %v874 = vsub.f32 %v303, %v873
      %875 = vmatmul.mubr.f32.gmra.mxu0 %v874
      %v876 = vpop.f32.mrf.mxu0
      %v877 = vadd.f32 %v697, %v876
      %v878 = vpop.f32.mrf.mxu0
      %879 = vmatprep.mubr.f32.mxu0 0.0
      %v880 = vand.u32 %v306, 4294901760
      %v881 = vsub.f32 %v306, %v880
      %882 = vmatmul.mubr.f32.gmra.mxu0 %v881
      %v883 = vpop.f32.mrf.mxu0
      %v884 = vadd.f32 %v703, %v883
      %v885 = vpop.f32.mrf.mxu0
      %886 = vmatprep.mubr.f32.mxu0 0.0
      %v887 = vand.u32 %v309, 4294901760
      %v888 = vsub.f32 %v309, %v887
      %889 = vmatmul.mubr.f32.gmra.mxu0 %v888
      %v890 = vpop.f32.mrf.mxu0
      %v891 = vadd.f32 %v709, %v890
      %v892 = vpop.f32.mrf.mxu0
      %893 = vmatprep.mubr.f32.mxu0 0.0
      %v894 = vand.u32 %v312, 4294901760
      %v895 = vsub.f32 %v312, %v894
      %896 = vmatmul.mubr.f32.gmra.mxu0 %v895
      %v897 = vpop.f32.mrf.mxu0
      %v898 = vadd.f32 %v715, %v897
      %v899 = vpop.f32.mrf.mxu0
      %900 = vmatprep.mubr.f32.mxu0 0.0
      %v901 = vand.u32 %v315, 4294901760
      %v902 = vsub.f32 %v315, %v901
      %903 = vmatmul.mubr.f32.gmra.mxu0 %v902
      %v904 = vpop.f32.mrf.mxu0
      %v905 = vadd.f32 %v721, %v904
      %v906 = vpop.f32.mrf.mxu0
      %907 = vmatprep.mubr.f32.mxu0 0.0
      %v908 = vand.u32 %v318, 4294901760
      %v909 = vsub.f32 %v318, %v908
      %910 = vmatmul.mubr.f32.gmra.mxu0 %v909
      %v911 = vpop.f32.mrf.mxu0
      %v912 = vadd.f32 %v727, %v911
      %v913 = vpop.f32.mrf.mxu0
      %914 = vdwg.mxu0
      %915 = vmatprep.subr.mxu0 0.0
      %916 = vmatpush1.msra.mxu0 0.0
      %917 = vmatprep.subr.mxu0 0.0
      %918 = vmatpush1.msra.mxu0 0.0
      %919 = vmatprep.subr.mxu0 0.0
      %920 = vmatpush1.msra.mxu0 0.0
      %921 = vmatprep.subr.mxu0 0.0
      %922 = vmatpush1.msra.mxu0 0.0
      %923 = vmatprep.subr.mxu0 0.0
      %924 = vmatpush1.msra.mxu0 0.0
      %925 = vmatprep.subr.mxu0 0.0
      %926 = vmatpush1.msra.mxu0 0.0
      %927 = vmatprep.subr.mxu0 0.0
      %928 = vmatpush1.msra.mxu0 0.0
      %929 = vmatprep.subr.mxu0 0.0
      %930 = vmatpush1.msra.mxu0 0.0
      %931 = vmatprep.subr.mxu0 0.0
      %932 = vmatpush1.msra.mxu0 0.0
      %933 = vmatprep.subr.mxu0 0.0
      %934 = vmatpush1.msra.mxu0 0.0
      %935 = vmatprep.subr.mxu0 0.0
      %936 = vmatpush1.msra.mxu0 0.0
      %937 = vmatprep.subr.mxu0 0.0
      %938 = vmatpush1.msra.mxu0 0.0
      %939 = vmatprep.subr.mxu0 0.0
      %v940 = vand.u32 %v231, 4294901760
      %941 = vmatpush1.msra.mxu0 %v940
      %942 = vmatprep.subr.mxu0 0.0
      %v943 = vand.u32 %v230, 4294901760
      %944 = vmatpush1.msra.mxu0 %v943
      %945 = vmatprep.subr.mxu0 0.0
      %v946 = vand.u32 %v229, 4294901760
      %947 = vmatpush1.msra.mxu0 %v946
      %948 = vmatprep.subr.mxu0 0.0
      %v949 = vand.u32 %v228, 4294901760
      %950 = vmatpush1.msra.mxu0 %v949
      %951 = vmatprep.subr.mxu0 0.0
      %952 = vmatpush2.msra.mxu0 0.0
      %953 = vmatprep.subr.mxu0 0.0
      %954 = vmatpush2.msra.mxu0 0.0
      %955 = vmatprep.subr.mxu0 0.0
      %956 = vmatpush2.msra.mxu0 0.0
      %957 = vmatprep.subr.mxu0 0.0
      %958 = vmatpush2.msra.mxu0 0.0
      %959 = vmatprep.subr.mxu0 0.0
      %960 = vmatpush2.msra.mxu0 0.0
      %961 = vmatprep.subr.mxu0 0.0
      %962 = vmatpush2.msra.mxu0 0.0
      %963 = vmatprep.subr.mxu0 0.0
      %964 = vmatpush2.msra.mxu0 0.0
      %965 = vmatprep.subr.mxu0 0.0
      %966 = vmatpush2.msra.mxu0 0.0
      %967 = vmatprep.subr.mxu0 0.0
      %968 = vmatpush2.msra.mxu0 0.0
      %969 = vmatprep.subr.mxu0 0.0
      %970 = vmatpush2.msra.mxu0 0.0
      %971 = vmatprep.subr.mxu0 0.0
      %972 = vmatpush2.msra.mxu0 0.0
      %973 = vmatprep.subr.mxu0 0.0
      %974 = vmatpush2.msra.mxu0 0.0
      %975 = vmatprep.subr.mxu0 0.0
      %976 = vmatpush2.msra.mxu0 0.0
      %977 = vmatprep.subr.mxu0 0.0
      %978 = vmatpush2.msra.mxu0 0.0
      %979 = vmatprep.subr.mxu0 0.0
      %980 = vmatpush2.msra.mxu0 0.0
      %981 = vmatprep.subr.mxu0 0.0
      %982 = vmatpush2.msra.mxu0 0.0
      %983 = vmatprep.mubr.f32.mxu0 0.0
      %v984 = vand.u32 %v273, 4294901760
      %v985 = vsub.f32 %v273, %v984
      %v986 = vand.u32 %v985, 4294901760
      %987 = vmatmul.mubr.f32.gmra.mxu0 %v986
      %v988 = vpop.f32.mrf.mxu0
      %v989 = vadd.f32 %v807, %v988
      %v990 = vpop.f32.mrf.mxu0
      %991 = vmatprep.mubr.f32.mxu0 0.0
      %v992 = vand.u32 %v276, 4294901760
      %v993 = vsub.f32 %v276, %v992
      %v994 = vand.u32 %v993, 4294901760
      %995 = vmatmul.mubr.f32.gmra.mxu0 %v994
      %v996 = vpop.f32.mrf.mxu0
      %v997 = vadd.f32 %v814, %v996
      %v998 = vpop.f32.mrf.mxu0
      %999 = vmatprep.mubr.f32.mxu0 0.0
      %v1000 = vand.u32 %v279, 4294901760
      %v1001 = vsub.f32 %v279, %v1000
      %v1002 = vand.u32 %v1001, 4294901760
      %1003 = vmatmul.mubr.f32.gmra.mxu0 %v1002
      %v1004 = vpop.f32.mrf.mxu0
      %v1005 = vadd.f32 %v821, %v1004
      %v1006 = vpop.f32.mrf.mxu0
      %1007 = vmatprep.mubr.f32.mxu0 0.0
      %v1008 = vand.u32 %v282, 4294901760
      %v1009 = vsub.f32 %v282, %v1008
      %v1010 = vand.u32 %v1009, 4294901760
      %1011 = vmatmul.mubr.f32.gmra.mxu0 %v1010
      %v1012 = vpop.f32.mrf.mxu0
      %v1013 = vadd.f32 %v828, %v1012
      %v1014 = vpop.f32.mrf.mxu0
      %1015 = vmatprep.mubr.f32.mxu0 0.0
      %v1016 = vand.u32 %v285, 4294901760
      %v1017 = vsub.f32 %v285, %v1016
      %v1018 = vand.u32 %v1017, 4294901760
      %1019 = vmatmul.mubr.f32.gmra.mxu0 %v1018
      %v1020 = vpop.f32.mrf.mxu0
      %v1021 = vadd.f32 %v835, %v1020
      %v1022 = vpop.f32.mrf.mxu0
      %1023 = vmatprep.mubr.f32.mxu0 0.0
      %v1024 = vand.u32 %v288, 4294901760
      %v1025 = vsub.f32 %v288, %v1024
      %v1026 = vand.u32 %v1025, 4294901760
      %1027 = vmatmul.mubr.f32.gmra.mxu0 %v1026
      %v1028 = vpop.f32.mrf.mxu0
      %v1029 = vadd.f32 %v842, %v1028
      %v1030 = vpop.f32.mrf.mxu0
      %1031 = vmatprep.mubr.f32.mxu0 0.0
      %v1032 = vand.u32 %v291, 4294901760
      %v1033 = vsub.f32 %v291, %v1032
      %v1034 = vand.u32 %v1033, 4294901760
      %1035 = vmatmul.mubr.f32.gmra.mxu0 %v1034
      %v1036 = vpop.f32.mrf.mxu0
      %v1037 = vadd.f32 %v849, %v1036
      %v1038 = vpop.f32.mrf.mxu0
      %1039 = vmatprep.mubr.f32.mxu0 0.0
      %v1040 = vand.u32 %v294, 4294901760
      %v1041 = vsub.f32 %v294, %v1040
      %v1042 = vand.u32 %v1041, 4294901760
      %1043 = vmatmul.mubr.f32.gmra.mxu0 %v1042
      %v1044 = vpop.f32.mrf.mxu0
      %v1045 = vadd.f32 %v856, %v1044
      %v1046 = vpop.f32.mrf.mxu0
      %1047 = vmatprep.mubr.f32.mxu0 0.0
      %v1048 = vand.u32 %v297, 4294901760
      %v1049 = vsub.f32 %v297, %v1048
      %v1050 = vand.u32 %v1049, 4294901760
      %1051 = vmatmul.mubr.f32.gmra.mxu0 %v1050
      %v1052 = vpop.f32.mrf.mxu0
      %v1053 = vadd.f32 %v863, %v1052
      %v1054 = vpop.f32.mrf.mxu0
      %1055 = vmatprep.mubr.f32.mxu0 0.0
      %v1056 = vand.u32 %v300, 4294901760
      %v1057 = vsub.f32 %v300, %v1056
      %v1058 = vand.u32 %v1057, 4294901760
      %1059 = vmatmul.mubr.f32.gmra.mxu0 %v1058
      %v1060 = vpop.f32.mrf.mxu0
      %v1061 = vadd.f32 %v870, %v1060
      %v1062 = vpop.f32.mrf.mxu0
      %1063 = vmatprep.mubr.f32.mxu0 0.0
      %v1064 = vand.u32 %v303, 4294901760
      %v1065 = vsub.f32 %v303, %v1064
      %v1066 = vand.u32 %v1065, 4294901760
      %1067 = vmatmul.mubr.f32.gmra.mxu0 %v1066
      %v1068 = vpop.f32.mrf.mxu0
      %v1069 = vadd.f32 %v877, %v1068
      %v1070 = vpop.f32.mrf.mxu0
      %1071 = vmatprep.mubr.f32.mxu0 0.0
      %v1072 = vand.u32 %v306, 4294901760
      %v1073 = vsub.f32 %v306, %v1072
      %v1074 = vand.u32 %v1073, 4294901760
      %1075 = vmatmul.mubr.f32.gmra.mxu0 %v1074
      %v1076 = vpop.f32.mrf.mxu0
      %v1077 = vadd.f32 %v884, %v1076
      %v1078 = vpop.f32.mrf.mxu0
      %1079 = vmatprep.mubr.f32.mxu0 0.0
      %v1080 = vand.u32 %v309, 4294901760
      %v1081 = vsub.f32 %v309, %v1080
      %v1082 = vand.u32 %v1081, 4294901760
      %1083 = vmatmul.mubr.f32.gmra.mxu0 %v1082
      %v1084 = vpop.f32.mrf.mxu0
      %v1085 = vadd.f32 %v891, %v1084
      %v1086 = vpop.f32.mrf.mxu0
      %1087 = vmatprep.mubr.f32.mxu0 0.0
      %v1088 = vand.u32 %v312, 4294901760
      %v1089 = vsub.f32 %v312, %v1088
      %v1090 = vand.u32 %v1089, 4294901760
      %1091 = vmatmul.mubr.f32.gmra.mxu0 %v1090
      %v1092 = vpop.f32.mrf.mxu0
      %v1093 = vadd.f32 %v898, %v1092
      %v1094 = vpop.f32.mrf.mxu0
      %1095 = vmatprep.mubr.f32.mxu0 0.0
      %v1096 = vand.u32 %v315, 4294901760
      %v1097 = vsub.f32 %v315, %v1096
      %v1098 = vand.u32 %v1097, 4294901760
      %1099 = vmatmul.mubr.f32.gmra.mxu0 %v1098
      %v1100 = vpop.f32.mrf.mxu0
      %v1101 = vadd.f32 %v905, %v1100
      %v1102 = vpop.f32.mrf.mxu0
      %1103 = vmatprep.mubr.f32.mxu0 0.0
      %v1104 = vand.u32 %v318, 4294901760
      %v1105 = vsub.f32 %v318, %v1104
      %v1106 = vand.u32 %v1105, 4294901760
      %1107 = vmatmul.mubr.f32.gmra.mxu0 %v1106
      %v1108 = vpop.f32.mrf.mxu0
      %v1109 = vadd.f32 %v912, %v1108
      %v1110 = vpop.f32.mrf.mxu0
      %1111 = vdwg.mxu0
      %1112 = vmatprep.subr.mxu0 0.0
      %1113 = vmatpush1.msra.mxu0 0.0
      %1114 = vmatprep.subr.mxu0 0.0
      %1115 = vmatpush1.msra.mxu0 0.0
      %1116 = vmatprep.subr.mxu0 0.0
      %1117 = vmatpush1.msra.mxu0 0.0
      %1118 = vmatprep.subr.mxu0 0.0
      %1119 = vmatpush1.msra.mxu0 0.0
      %1120 = vmatprep.subr.mxu0 0.0
      %1121 = vmatpush1.msra.mxu0 0.0
      %1122 = vmatprep.subr.mxu0 0.0
      %1123 = vmatpush1.msra.mxu0 0.0
      %1124 = vmatprep.subr.mxu0 0.0
      %1125 = vmatpush1.msra.mxu0 0.0
      %1126 = vmatprep.subr.mxu0 0.0
      %1127 = vmatpush1.msra.mxu0 0.0
      %1128 = vmatprep.subr.mxu0 0.0
      %1129 = vmatpush1.msra.mxu0 0.0
      %1130 = vmatprep.subr.mxu0 0.0
      %1131 = vmatpush1.msra.mxu0 0.0
      %1132 = vmatprep.subr.mxu0 0.0
      %1133 = vmatpush1.msra.mxu0 0.0
      %1134 = vmatprep.subr.mxu0 0.0
      %1135 = vmatpush1.msra.mxu0 0.0
      %1136 = vmatprep.subr.mxu0 0.0
      %v1137 = vand.u32 %v231, 4294901760
      %v1138 = vsub.f32 %v231, %v1137
      %v1139 = vand.u32 %v1138, 4294901760
      %1140 = vmatpush1.msra.mxu0 %v1139
      %1141 = vmatprep.subr.mxu0 0.0
      %v1142 = vand.u32 %v230, 4294901760
      %v1143 = vsub.f32 %v230, %v1142
      %v1144 = vand.u32 %v1143, 4294901760
      %1145 = vmatpush1.msra.mxu0 %v1144
      %1146 = vmatprep.subr.mxu0 0.0
      %v1147 = vand.u32 %v229, 4294901760
      %v1148 = vsub.f32 %v229, %v1147
      %v1149 = vand.u32 %v1148, 4294901760
      %1150 = vmatpush1.msra.mxu0 %v1149
      %1151 = vmatprep.subr.mxu0 0.0
      %v1152 = vand.u32 %v228, 4294901760
      %v1153 = vsub.f32 %v228, %v1152
      %v1154 = vand.u32 %v1153, 4294901760
      %1155 = vmatpush1.msra.mxu0 %v1154
      %1156 = vmatprep.subr.mxu0 0.0
      %1157 = vmatpush2.msra.mxu0 0.0
      %1158 = vmatprep.subr.mxu0 0.0
      %1159 = vmatpush2.msra.mxu0 0.0
      %1160 = vmatprep.subr.mxu0 0.0
      %1161 = vmatpush2.msra.mxu0 0.0
      %1162 = vmatprep.subr.mxu0 0.0
      %1163 = vmatpush2.msra.mxu0 0.0
      %1164 = vmatprep.subr.mxu0 0.0
      %1165 = vmatpush2.msra.mxu0 0.0
      %1166 = vmatprep.subr.mxu0 0.0
      %1167 = vmatpush2.msra.mxu0 0.0
      %1168 = vmatprep.subr.mxu0 0.0
      %1169 = vmatpush2.msra.mxu0 0.0
      %1170 = vmatprep.subr.mxu0 0.0
      %1171 = vmatpush2.msra.mxu0 0.0
      %1172 = vmatprep.subr.mxu0 0.0
      %1173 = vmatpush2.msra.mxu0 0.0
      %1174 = vmatprep.subr.mxu0 0.0
      %1175 = vmatpush2.msra.mxu0 0.0
      %1176 = vmatprep.subr.mxu0 0.0
      %1177 = vmatpush2.msra.mxu0 0.0
      %1178 = vmatprep.subr.mxu0 0.0
      %1179 = vmatpush2.msra.mxu0 0.0
      %1180 = vmatprep.subr.mxu0 0.0
      %1181 = vmatpush2.msra.mxu0 0.0
      %1182 = vmatprep.subr.mxu0 0.0
      %1183 = vmatpush2.msra.mxu0 0.0
      %1184 = vmatprep.subr.mxu0 0.0
      %1185 = vmatpush2.msra.mxu0 0.0
      %1186 = vmatprep.subr.mxu0 0.0
      %1187 = vmatpush2.msra.mxu0 0.0
      %1188 = vmatprep.mubr.f32.mxu0 0.0
      %v1189 = vand.u32 %v273, 4294901760
      %1190 = vmatmul.mubr.f32.gmra.mxu0 %v1189
      %v1191 = vpop.f32.mrf.mxu0
      %v1192 = vadd.f32 %v989, %v1191
      %v1193 = vpop.f32.mrf.mxu0
      %1194 = vmatprep.mubr.f32.mxu0 0.0
      %v1195 = vand.u32 %v276, 4294901760
      %1196 = vmatmul.mubr.f32.gmra.mxu0 %v1195
      %v1197 = vpop.f32.mrf.mxu0
      %v1198 = vadd.f32 %v997, %v1197
      %v1199 = vpop.f32.mrf.mxu0
      %1200 = vmatprep.mubr.f32.mxu0 0.0
      %v1201 = vand.u32 %v279, 4294901760
      %1202 = vmatmul.mubr.f32.gmra.mxu0 %v1201
      %v1203 = vpop.f32.mrf.mxu0
      %v1204 = vadd.f32 %v1005, %v1203
      %v1205 = vpop.f32.mrf.mxu0
      %1206 = vmatprep.mubr.f32.mxu0 0.0
      %v1207 = vand.u32 %v282, 4294901760
      %1208 = vmatmul.mubr.f32.gmra.mxu0 %v1207
      %v1209 = vpop.f32.mrf.mxu0
      %v1210 = vadd.f32 %v1013, %v1209
      %v1211 = vpop.f32.mrf.mxu0
      %1212 = vmatprep.mubr.f32.mxu0 0.0
      %v1213 = vand.u32 %v285, 4294901760
      %1214 = vmatmul.mubr.f32.gmra.mxu0 %v1213
      %v1215 = vpop.f32.mrf.mxu0
      %v1216 = vadd.f32 %v1021, %v1215
      %v1217 = vpop.f32.mrf.mxu0
      %1218 = vmatprep.mubr.f32.mxu0 0.0
      %v1219 = vand.u32 %v288, 4294901760
      %1220 = vmatmul.mubr.f32.gmra.mxu0 %v1219
      %v1221 = vpop.f32.mrf.mxu0
      %v1222 = vadd.f32 %v1029, %v1221
      %v1223 = vpop.f32.mrf.mxu0
      %1224 = vmatprep.mubr.f32.mxu0 0.0
      %v1225 = vand.u32 %v291, 4294901760
      %1226 = vmatmul.mubr.f32.gmra.mxu0 %v1225
      %v1227 = vpop.f32.mrf.mxu0
      %v1228 = vadd.f32 %v1037, %v1227
      %v1229 = vpop.f32.mrf.mxu0
      %1230 = vmatprep.mubr.f32.mxu0 0.0
      %v1231 = vand.u32 %v294, 4294901760
      %1232 = vmatmul.mubr.f32.gmra.mxu0 %v1231
      %v1233 = vpop.f32.mrf.mxu0
      %v1234 = vadd.f32 %v1045, %v1233
      %v1235 = vpop.f32.mrf.mxu0
      %1236 = vmatprep.mubr.f32.mxu0 0.0
      %v1237 = vand.u32 %v297, 4294901760
      %1238 = vmatmul.mubr.f32.gmra.mxu0 %v1237
      %v1239 = vpop.f32.mrf.mxu0
      %v1240 = vadd.f32 %v1053, %v1239
      %v1241 = vpop.f32.mrf.mxu0
      %1242 = vmatprep.mubr.f32.mxu0 0.0
      %v1243 = vand.u32 %v300, 4294901760
      %1244 = vmatmul.mubr.f32.gmra.mxu0 %v1243
      %v1245 = vpop.f32.mrf.mxu0
      %v1246 = vadd.f32 %v1061, %v1245
      %v1247 = vpop.f32.mrf.mxu0
      %1248 = vmatprep.mubr.f32.mxu0 0.0
      %v1249 = vand.u32 %v303, 4294901760
      %1250 = vmatmul.mubr.f32.gmra.mxu0 %v1249
      %v1251 = vpop.f32.mrf.mxu0
      %v1252 = vadd.f32 %v1069, %v1251
      %v1253 = vpop.f32.mrf.mxu0
      %1254 = vmatprep.mubr.f32.mxu0 0.0
      %v1255 = vand.u32 %v306, 4294901760
      %1256 = vmatmul.mubr.f32.gmra.mxu0 %v1255
      %v1257 = vpop.f32.mrf.mxu0
      %v1258 = vadd.f32 %v1077, %v1257
      %v1259 = vpop.f32.mrf.mxu0
      %1260 = vmatprep.mubr.f32.mxu0 0.0
      %v1261 = vand.u32 %v309, 4294901760
      %1262 = vmatmul.mubr.f32.gmra.mxu0 %v1261
      %v1263 = vpop.f32.mrf.mxu0
      %v1264 = vadd.f32 %v1085, %v1263
      %v1265 = vpop.f32.mrf.mxu0
      %1266 = vmatprep.mubr.f32.mxu0 0.0
      %v1267 = vand.u32 %v312, 4294901760
      %1268 = vmatmul.mubr.f32.gmra.mxu0 %v1267
      %v1269 = vpop.f32.mrf.mxu0
      %v1270 = vadd.f32 %v1093, %v1269
      %v1271 = vpop.f32.mrf.mxu0
      %1272 = vmatprep.mubr.f32.mxu0 0.0
      %v1273 = vand.u32 %v315, 4294901760
      %1274 = vmatmul.mubr.f32.gmra.mxu0 %v1273
      %v1275 = vpop.f32.mrf.mxu0
      %v1276 = vadd.f32 %v1101, %v1275
      %v1277 = vpop.f32.mrf.mxu0
      %1278 = vmatprep.mubr.f32.mxu0 0.0
      %v1279 = vand.u32 %v318, 4294901760
      %1280 = vmatmul.mubr.f32.gmra.mxu0 %v1279
      %v1281 = vpop.f32.mrf.mxu0
      %v1282 = vadd.f32 %v1109, %v1281
      %v1283 = vpop.f32.mrf.mxu0
      %1284 = vdwg.mxu0
      %1285 = vmatprep.subr.mxu0 0.0
      %1286 = vmatpush1.msra.mxu0 0.0
      %1287 = vmatprep.subr.mxu0 0.0
      %1288 = vmatpush1.msra.mxu0 0.0
      %1289 = vmatprep.subr.mxu0 0.0
      %1290 = vmatpush1.msra.mxu0 0.0
      %1291 = vmatprep.subr.mxu0 0.0
      %1292 = vmatpush1.msra.mxu0 0.0
      %1293 = vmatprep.subr.mxu0 0.0
      %1294 = vmatpush1.msra.mxu0 0.0
      %1295 = vmatprep.subr.mxu0 0.0
      %1296 = vmatpush1.msra.mxu0 0.0
      %1297 = vmatprep.subr.mxu0 0.0
      %1298 = vmatpush1.msra.mxu0 0.0
      %1299 = vmatprep.subr.mxu0 0.0
      %1300 = vmatpush1.msra.mxu0 0.0
      %1301 = vmatprep.subr.mxu0 0.0
      %1302 = vmatpush1.msra.mxu0 0.0
      %1303 = vmatprep.subr.mxu0 0.0
      %1304 = vmatpush1.msra.mxu0 0.0
      %1305 = vmatprep.subr.mxu0 0.0
      %1306 = vmatpush1.msra.mxu0 0.0
      %1307 = vmatprep.subr.mxu0 0.0
      %1308 = vmatpush1.msra.mxu0 0.0
      %1309 = vmatprep.subr.mxu0 0.0
      %v1310 = vand.u32 %v231, 4294901760
      %1311 = vmatpush1.msra.mxu0 %v1310
      %1312 = vmatprep.subr.mxu0 0.0
      %v1313 = vand.u32 %v230, 4294901760
      %1314 = vmatpush1.msra.mxu0 %v1313
      %1315 = vmatprep.subr.mxu0 0.0
      %v1316 = vand.u32 %v229, 4294901760
      %1317 = vmatpush1.msra.mxu0 %v1316
      %1318 = vmatprep.subr.mxu0 0.0
      %v1319 = vand.u32 %v228, 4294901760
      %1320 = vmatpush1.msra.mxu0 %v1319
      %1321 = vmatprep.subr.mxu0 0.0
      %1322 = vmatpush2.msra.mxu0 0.0
      %1323 = vmatprep.subr.mxu0 0.0
      %1324 = vmatpush2.msra.mxu0 0.0
      %1325 = vmatprep.subr.mxu0 0.0
      %1326 = vmatpush2.msra.mxu0 0.0
      %1327 = vmatprep.subr.mxu0 0.0
      %1328 = vmatpush2.msra.mxu0 0.0
      %1329 = vmatprep.subr.mxu0 0.0
      %1330 = vmatpush2.msra.mxu0 0.0
      %1331 = vmatprep.subr.mxu0 0.0
      %1332 = vmatpush2.msra.mxu0 0.0
      %1333 = vmatprep.subr.mxu0 0.0
      %1334 = vmatpush2.msra.mxu0 0.0
      %1335 = vmatprep.subr.mxu0 0.0
      %1336 = vmatpush2.msra.mxu0 0.0
      %1337 = vmatprep.subr.mxu0 0.0
      %1338 = vmatpush2.msra.mxu0 0.0
      %1339 = vmatprep.subr.mxu0 0.0
      %1340 = vmatpush2.msra.mxu0 0.0
      %1341 = vmatprep.subr.mxu0 0.0
      %1342 = vmatpush2.msra.mxu0 0.0
      %1343 = vmatprep.subr.mxu0 0.0
      %1344 = vmatpush2.msra.mxu0 0.0
      %1345 = vmatprep.subr.mxu0 0.0
      %1346 = vmatpush2.msra.mxu0 0.0
      %1347 = vmatprep.subr.mxu0 0.0
      %1348 = vmatpush2.msra.mxu0 0.0
      %1349 = vmatprep.subr.mxu0 0.0
      %1350 = vmatpush2.msra.mxu0 0.0
      %1351 = vmatprep.subr.mxu0 0.0
      %1352 = vmatpush2.msra.mxu0 0.0
      %1353 = vmatprep.mubr.f32.mxu0 0.0
      %v1354 = vand.u32 %v273, 4294901760
      %1355 = vmatmul.mubr.f32.gmra.mxu0 %v1354
      %v1356 = vpop.f32.mrf.mxu0
      %v1357 = vadd.f32 %v1192, %v1356
      %v1358 = vpop.f32.mrf.mxu0
      %1359 = vmatprep.mubr.f32.mxu0 0.0
      %v1360 = vand.u32 %v276, 4294901760
      %1361 = vmatmul.mubr.f32.gmra.mxu0 %v1360
      %v1362 = vpop.f32.mrf.mxu0
      %v1363 = vadd.f32 %v1198, %v1362
      %v1364 = vpop.f32.mrf.mxu0
      %1365 = vmatprep.mubr.f32.mxu0 0.0
      %v1366 = vand.u32 %v279, 4294901760
      %1367 = vmatmul.mubr.f32.gmra.mxu0 %v1366
      %v1368 = vpop.f32.mrf.mxu0
      %v1369 = vadd.f32 %v1204, %v1368
      %v1370 = vpop.f32.mrf.mxu0
      %1371 = vmatprep.mubr.f32.mxu0 0.0
      %v1372 = vand.u32 %v282, 4294901760
      %1373 = vmatmul.mubr.f32.gmra.mxu0 %v1372
      %v1374 = vpop.f32.mrf.mxu0
      %v1375 = vadd.f32 %v1210, %v1374
      %v1376 = vpop.f32.mrf.mxu0
      %1377 = vmatprep.mubr.f32.mxu0 0.0
      %v1378 = vand.u32 %v285, 4294901760
      %1379 = vmatmul.mubr.f32.gmra.mxu0 %v1378
      %v1380 = vpop.f32.mrf.mxu0
      %v1381 = vadd.f32 %v1216, %v1380
      %v1382 = vpop.f32.mrf.mxu0
      %1383 = vmatprep.mubr.f32.mxu0 0.0
      %v1384 = vand.u32 %v288, 4294901760
      %1385 = vmatmul.mubr.f32.gmra.mxu0 %v1384
      %v1386 = vpop.f32.mrf.mxu0
      %v1387 = vadd.f32 %v1222, %v1386
      %v1388 = vpop.f32.mrf.mxu0
      %1389 = vmatprep.mubr.f32.mxu0 0.0
      %v1390 = vand.u32 %v291, 4294901760
      %1391 = vmatmul.mubr.f32.gmra.mxu0 %v1390
      %v1392 = vpop.f32.mrf.mxu0
      %v1393 = vadd.f32 %v1228, %v1392
      %v1394 = vpop.f32.mrf.mxu0
      %1395 = vmatprep.mubr.f32.mxu0 0.0
      %v1396 = vand.u32 %v294, 4294901760
      %1397 = vmatmul.mubr.f32.gmra.mxu0 %v1396
      %v1398 = vpop.f32.mrf.mxu0
      %v1399 = vadd.f32 %v1234, %v1398
      %v1400 = vpop.f32.mrf.mxu0
      %1401 = vmatprep.mubr.f32.mxu0 0.0
      %v1402 = vand.u32 %v297, 4294901760
      %1403 = vmatmul.mubr.f32.gmra.mxu0 %v1402
      %v1404 = vpop.f32.mrf.mxu0
      %v1405 = vadd.f32 %v1240, %v1404
      %v1406 = vpop.f32.mrf.mxu0
      %1407 = vmatprep.mubr.f32.mxu0 0.0
      %v1408 = vand.u32 %v300, 4294901760
      %1409 = vmatmul.mubr.f32.gmra.mxu0 %v1408
      %v1410 = vpop.f32.mrf.mxu0
      %v1411 = vadd.f32 %v1246, %v1410
      %v1412 = vpop.f32.mrf.mxu0
      %1413 = vmatprep.mubr.f32.mxu0 0.0
      %v1414 = vand.u32 %v303, 4294901760
      %1415 = vmatmul.mubr.f32.gmra.mxu0 %v1414
      %v1416 = vpop.f32.mrf.mxu0
      %v1417 = vadd.f32 %v1252, %v1416
      %v1418 = vpop.f32.mrf.mxu0
      %1419 = vmatprep.mubr.f32.mxu0 0.0
      %v1420 = vand.u32 %v306, 4294901760
      %1421 = vmatmul.mubr.f32.gmra.mxu0 %v1420
      %v1422 = vpop.f32.mrf.mxu0
      %v1423 = vadd.f32 %v1258, %v1422
      %v1424 = vpop.f32.mrf.mxu0
      %1425 = vmatprep.mubr.f32.mxu0 0.0
      %v1426 = vand.u32 %v309, 4294901760
      %1427 = vmatmul.mubr.f32.gmra.mxu0 %v1426
      %v1428 = vpop.f32.mrf.mxu0
      %v1429 = vadd.f32 %v1264, %v1428
      %v1430 = vpop.f32.mrf.mxu0
      %1431 = vmatprep.mubr.f32.mxu0 0.0
      %v1432 = vand.u32 %v312, 4294901760
      %1433 = vmatmul.mubr.f32.gmra.mxu0 %v1432
      %v1434 = vpop.f32.mrf.mxu0
      %v1435 = vadd.f32 %v1270, %v1434
      %v1436 = vpop.f32.mrf.mxu0
      %1437 = vmatprep.mubr.f32.mxu0 0.0
      %v1438 = vand.u32 %v315, 4294901760
      %1439 = vmatmul.mubr.f32.gmra.mxu0 %v1438
      %v1440 = vpop.f32.mrf.mxu0
      %v1441 = vadd.f32 %v1276, %v1440
      %v1442 = vpop.f32.mrf.mxu0
      %1443 = vmatprep.mubr.f32.mxu0 0.0
      %v1444 = vand.u32 %v318, 4294901760
      %1445 = vmatmul.mubr.f32.gmra.mxu0 %v1444
      %v1446 = vpop.f32.mrf.mxu0
      %v1447 = vadd.f32 %v1282, %v1446
      %v1448 = vpop.f32.mrf.mxu0
      %1449 = vdwg.mxu0
      %v1450 = vxor.u32 %v1357, 2147483648
      %v1451 = vxor.u32 %v1363, 2147483648
      %v1452 = vxor.u32 %v1369, 2147483648
      %v1453 = vxor.u32 %v1375, 2147483648
      %v1454 = vxor.u32 %v1381, 2147483648
      %v1455 = vxor.u32 %v1387, 2147483648
      %v1456 = vxor.u32 %v1393, 2147483648
      %v1457 = vxor.u32 %v1399, 2147483648
      %v1458 = vxor.u32 %v1405, 2147483648
      %v1459 = vxor.u32 %v1411, 2147483648
      %v1460 = vxor.u32 %v1417, 2147483648
      %v1461 = vxor.u32 %v1423, 2147483648
      %v1462 = vxor.u32 %v1429, 2147483648
      %v1463 = vxor.u32 %v1435, 2147483648
      %v1464 = vxor.u32 %v1441, 2147483648
      %v1465 = vxor.u32 %v1447, 2147483648
      %v1466 = vmul.f32 %v1450, 1.442695
      %v1467 = vpow.pop %v1466
      %v1468 = vmul.f32 %v1451, 1.442695
      %v1469 = vpow.pop %v1468
      %v1470 = vmul.f32 %v1452, 1.442695
      %v1471 = vpow.pop %v1470
      %v1472 = vmul.f32 %v1453, 1.442695
      %v1473 = vpow.pop %v1472
      %v1474 = vmul.f32 %v1454, 1.442695
      %v1475 = vpow.pop %v1474
      %v1476 = vmul.f32 %v1455, 1.442695
      %v1477 = vpow.pop %v1476
      %v1478 = vmul.f32 %v1456, 1.442695
      %v1479 = vpow.pop %v1478
      %v1480 = vmul.f32 %v1457, 1.442695
      %v1481 = vpow.pop %v1480
      %v1482 = vmul.f32 %v1458, 1.442695
      %v1483 = vpow.pop %v1482
      %v1484 = vmul.f32 %v1459, 1.442695
      %v1485 = vpow.pop %v1484
      %v1486 = vmul.f32 %v1460, 1.442695
      %v1487 = vpow.pop %v1486
      %v1488 = vmul.f32 %v1461, 1.442695
      %v1489 = vpow.pop %v1488
      %v1490 = vmul.f32 %v1462, 1.442695
      %v1491 = vpow.pop %v1490
      %v1492 = vmul.f32 %v1463, 1.442695
      %v1493 = vpow.pop %v1492
      %v1494 = vmul.f32 %v1464, 1.442695
      %v1495 = vpow.pop %v1494
      %v1496 = vmul.f32 %v1465, 1.442695
      %v1497 = vpow.pop %v1496
      %v1498 = vadd.f32 %v1467, 1.0
      %v1499 = vadd.f32 %v1469, 1.0
      %v1500 = vadd.f32 %v1471, 1.0
      %v1501 = vadd.f32 %v1473, 1.0
      %v1502 = vadd.f32 %v1475, 1.0
      %v1503 = vadd.f32 %v1477, 1.0
      %v1504 = vadd.f32 %v1479, 1.0
      %v1505 = vadd.f32 %v1481, 1.0
      %v1506 = vadd.f32 %v1483, 1.0
      %v1507 = vadd.f32 %v1485, 1.0
      %v1508 = vadd.f32 %v1487, 1.0
      %v1509 = vadd.f32 %v1489, 1.0
      %v1510 = vadd.f32 %v1491, 1.0
      %v1511 = vadd.f32 %v1493, 1.0
      %v1512 = vadd.f32 %v1495, 1.0
      %v1513 = vadd.f32 %v1497, 1.0
      %v1514 = vrcp.pop %v1498
      %v1515 = vmul.f32 1.0, %v1514
      %v1516 = vrcp.pop %v1499
      %v1517 = vmul.f32 1.0, %v1516
      %v1518 = vrcp.pop %v1500
      %v1519 = vmul.f32 1.0, %v1518
      %v1520 = vrcp.pop %v1501
      %v1521 = vmul.f32 1.0, %v1520
      %v1522 = vrcp.pop %v1502
      %v1523 = vmul.f32 1.0, %v1522
      %v1524 = vrcp.pop %v1503
      %v1525 = vmul.f32 1.0, %v1524
      %v1526 = vrcp.pop %v1504
      %v1527 = vmul.f32 1.0, %v1526
      %v1528 = vrcp.pop %v1505
      %v1529 = vmul.f32 1.0, %v1528
      %v1530 = vrcp.pop %v1506
      %v1531 = vmul.f32 1.0, %v1530
      %v1532 = vrcp.pop %v1507
      %v1533 = vmul.f32 1.0, %v1532
      %v1534 = vrcp.pop %v1508
      %v1535 = vmul.f32 1.0, %v1534
      %v1536 = vrcp.pop %v1509
      %v1537 = vmul.f32 1.0, %v1536
      %v1538 = vrcp.pop %v1510
      %v1539 = vmul.f32 1.0, %v1538
      %v1540 = vrcp.pop %v1511
      %v1541 = vmul.f32 1.0, %v1540
      %v1542 = vrcp.pop %v1512
      %v1543 = vmul.f32 1.0, %v1542
      %v1544 = vrcp.pop %v1513
      %v1545 = vmul.f32 1.0, %v1544
      %v1546 = vmul.f32 %v1357, %v1515
      %v1547 = vmul.f32 %v1363, %v1517
      %v1548 = vmul.f32 %v1369, %v1519
      %v1549 = vmul.f32 %v1375, %v1521
      %v1550 = vmul.f32 %v1381, %v1523
      %v1551 = vmul.f32 %v1387, %v1525
      %v1552 = vmul.f32 %v1393, %v1527
      %v1553 = vmul.f32 %v1399, %v1529
      %v1554 = vmul.f32 %v1405, %v1531
      %v1555 = vmul.f32 %v1411, %v1533
      %v1556 = vmul.f32 %v1417, %v1535
      %v1557 = vmul.f32 %v1423, %v1537
      %v1558 = vmul.f32 %v1429, %v1539
      %v1559 = vmul.f32 %v1435, %v1541
      %v1560 = vmul.f32 %v1441, %v1543
      %v1561 = vmul.f32 %v1447, %v1545
      %v1562 = vld [vmem:[%s4] sm:$0x1]
      %v1564 = vlaneseq
      %v1565 = vshrl.u32 %v1564, 7
      %v1566 = vsub.s32 0, %v1565
      %v1567 = vrot.slane %v1562, %v1566
      %1569 = vmatprep.subr.mxu0 0.0
      %v1570 = vand.u32 %v247, 4294901760
      %1571 = vmatpush1.msra.mxu0 %v1570
      %1572 = vmatprep.subr.mxu0 0.0
      %v1573 = vand.u32 %v246, 4294901760
      %1574 = vmatpush1.msra.mxu0 %v1573
      %1575 = vmatprep.subr.mxu0 0.0
      %v1576 = vand.u32 %v245, 4294901760
      %1577 = vmatpush1.msra.mxu0 %v1576
      %1578 = vmatprep.subr.mxu0 0.0
      %v1579 = vand.u32 %v244, 4294901760
      %1580 = vmatpush1.msra.mxu0 %v1579
      %1581 = vmatprep.subr.mxu0 0.0
      %v1582 = vand.u32 %v243, 4294901760
      %1583 = vmatpush1.msra.mxu0 %v1582
      %1584 = vmatprep.subr.mxu0 0.0
      %v1585 = vand.u32 %v242, 4294901760
      %1586 = vmatpush1.msra.mxu0 %v1585
      %1587 = vmatprep.subr.mxu0 0.0
      %v1588 = vand.u32 %v241, 4294901760
      %1589 = vmatpush1.msra.mxu0 %v1588
      %1590 = vmatprep.subr.mxu0 0.0
      %v1591 = vand.u32 %v240, 4294901760
      %1592 = vmatpush1.msra.mxu0 %v1591
      %1593 = vmatprep.subr.mxu0 0.0
      %v1594 = vand.u32 %v239, 4294901760
      %1595 = vmatpush1.msra.mxu0 %v1594
      %1596 = vmatprep.subr.mxu0 0.0
      %v1597 = vand.u32 %v238, 4294901760
      %1598 = vmatpush1.msra.mxu0 %v1597
      %1599 = vmatprep.subr.mxu0 0.0
      %v1600 = vand.u32 %v237, 4294901760
      %1601 = vmatpush1.msra.mxu0 %v1600
      %1602 = vmatprep.subr.mxu0 0.0
      %v1603 = vand.u32 %v236, 4294901760
      %1604 = vmatpush1.msra.mxu0 %v1603
      %1605 = vmatprep.subr.mxu0 0.0
      %v1606 = vand.u32 %v235, 4294901760
      %1607 = vmatpush1.msra.mxu0 %v1606
      %1608 = vmatprep.subr.mxu0 0.0
      %v1609 = vand.u32 %v234, 4294901760
      %1610 = vmatpush1.msra.mxu0 %v1609
      %1611 = vmatprep.subr.mxu0 0.0
      %v1612 = vand.u32 %v233, 4294901760
      %1613 = vmatpush1.msra.mxu0 %v1612
      %1614 = vmatprep.subr.mxu0 0.0
      %v1615 = vand.u32 %v232, 4294901760
      %1616 = vmatpush1.msra.mxu0 %v1615
      %1617 = vmatprep.subr.mxu0 0.0
      %1618 = vmatpush2.msra.mxu0 0.0
      %1619 = vmatprep.subr.mxu0 0.0
      %1620 = vmatpush2.msra.mxu0 0.0
      %1621 = vmatprep.subr.mxu0 0.0
      %1622 = vmatpush2.msra.mxu0 0.0
      %1623 = vmatprep.subr.mxu0 0.0
      %1624 = vmatpush2.msra.mxu0 0.0
      %1625 = vmatprep.subr.mxu0 0.0
      %1626 = vmatpush2.msra.mxu0 0.0
      %1627 = vmatprep.subr.mxu0 0.0
      %1628 = vmatpush2.msra.mxu0 0.0
      %1629 = vmatprep.subr.mxu0 0.0
      %1630 = vmatpush2.msra.mxu0 0.0
      %1631 = vmatprep.subr.mxu0 0.0
      %1632 = vmatpush2.msra.mxu0 0.0
      %1633 = vmatprep.subr.mxu0 0.0
      %1634 = vmatpush2.msra.mxu0 0.0
      %1635 = vmatprep.subr.mxu0 0.0
      %1636 = vmatpush2.msra.mxu0 0.0
      %1637 = vmatprep.subr.mxu0 0.0
      %1638 = vmatpush2.msra.mxu0 0.0
      %1639 = vmatprep.subr.mxu0 0.0
      %1640 = vmatpush2.msra.mxu0 0.0
      %1641 = vmatprep.subr.mxu0 0.0
      %1642 = vmatpush2.msra.mxu0 0.0
      %1643 = vmatprep.subr.mxu0 0.0
      %1644 = vmatpush2.msra.mxu0 0.0
      %1645 = vmatprep.subr.mxu0 0.0
      %1646 = vmatpush2.msra.mxu0 0.0
      %1647 = vmatprep.subr.mxu0 0.0
      %1648 = vmatpush2.msra.mxu0 0.0
      %1649 = vmatprep.mubr.f32.mxu0 0.0
      %v1650 = vand.u32 %v1546, 4294901760
      %v1651 = vsub.f32 %v1546, %v1650
      %v1652 = vand.u32 %v1651, 4294901760
      %v1653 = vsub.f32 %v1651, %v1652
      %v1654 = vand.u32 %v1653, 4294901760
      %1655 = vmatmul.mubr.f32.gmra.mxu0 %v1654
      %v1656 = vpop.f32.mrf.mxu0
      %v1657 = vadd.f32 %v1567, %v1656
      %v1658 = vpop.f32.mrf.mxu0
      %1659 = vmatprep.mubr.f32.mxu0 0.0
      %v1660 = vand.u32 %v1547, 4294901760
      %v1661 = vsub.f32 %v1547, %v1660
      %v1662 = vand.u32 %v1661, 4294901760
      %v1663 = vsub.f32 %v1661, %v1662
      %v1664 = vand.u32 %v1663, 4294901760
      %1665 = vmatmul.mubr.f32.gmra.mxu0 %v1664
      %v1666 = vpop.f32.mrf.mxu0
      %v1667 = vadd.f32 %v1567, %v1666
      %v1668 = vpop.f32.mrf.mxu0
      %1669 = vmatprep.mubr.f32.mxu0 0.0
      %v1670 = vand.u32 %v1548, 4294901760
      %v1671 = vsub.f32 %v1548, %v1670
      %v1672 = vand.u32 %v1671, 4294901760
      %v1673 = vsub.f32 %v1671, %v1672
      %v1674 = vand.u32 %v1673, 4294901760
      %1675 = vmatmul.mubr.f32.gmra.mxu0 %v1674
      %v1676 = vpop.f32.mrf.mxu0
      %v1677 = vadd.f32 %v1567, %v1676
      %v1678 = vpop.f32.mrf.mxu0
      %1679 = vmatprep.mubr.f32.mxu0 0.0
      %v1680 = vand.u32 %v1549, 4294901760
      %v1681 = vsub.f32 %v1549, %v1680
      %v1682 = vand.u32 %v1681, 4294901760
      %v1683 = vsub.f32 %v1681, %v1682
      %v1684 = vand.u32 %v1683, 4294901760
      %1685 = vmatmul.mubr.f32.gmra.mxu0 %v1684
      %v1686 = vpop.f32.mrf.mxu0
      %v1687 = vadd.f32 %v1567, %v1686
      %v1688 = vpop.f32.mrf.mxu0
      %1689 = vmatprep.mubr.f32.mxu0 0.0
      %v1690 = vand.u32 %v1550, 4294901760
      %v1691 = vsub.f32 %v1550, %v1690
      %v1692 = vand.u32 %v1691, 4294901760
      %v1693 = vsub.f32 %v1691, %v1692
      %v1694 = vand.u32 %v1693, 4294901760
      %1695 = vmatmul.mubr.f32.gmra.mxu0 %v1694
      %v1696 = vpop.f32.mrf.mxu0
      %v1697 = vadd.f32 %v1567, %v1696
      %v1698 = vpop.f32.mrf.mxu0
      %1699 = vmatprep.mubr.f32.mxu0 0.0
      %v1700 = vand.u32 %v1551, 4294901760
      %v1701 = vsub.f32 %v1551, %v1700
      %v1702 = vand.u32 %v1701, 4294901760
      %v1703 = vsub.f32 %v1701, %v1702
      %v1704 = vand.u32 %v1703, 4294901760
      %1705 = vmatmul.mubr.f32.gmra.mxu0 %v1704
      %v1706 = vpop.f32.mrf.mxu0
      %v1707 = vadd.f32 %v1567, %v1706
      %v1708 = vpop.f32.mrf.mxu0
      %1709 = vmatprep.mubr.f32.mxu0 0.0
      %v1710 = vand.u32 %v1552, 4294901760
      %v1711 = vsub.f32 %v1552, %v1710
      %v1712 = vand.u32 %v1711, 4294901760
      %v1713 = vsub.f32 %v1711, %v1712
      %v1714 = vand.u32 %v1713, 4294901760
      %1715 = vmatmul.mubr.f32.gmra.mxu0 %v1714
      %v1716 = vpop.f32.mrf.mxu0
      %v1717 = vadd.f32 %v1567, %v1716
      %v1718 = vpop.f32.mrf.mxu0
      %1719 = vmatprep.mubr.f32.mxu0 0.0
      %v1720 = vand.u32 %v1553, 4294901760
      %v1721 = vsub.f32 %v1553, %v1720
      %v1722 = vand.u32 %v1721, 4294901760
      %v1723 = vsub.f32 %v1721, %v1722
      %v1724 = vand.u32 %v1723, 4294901760
      %1725 = vmatmul.mubr.f32.gmra.mxu0 %v1724
      %v1726 = vpop.f32.mrf.mxu0
      %v1727 = vadd.f32 %v1567, %v1726
      %v1728 = vpop.f32.mrf.mxu0
      %1729 = vmatprep.mubr.f32.mxu0 0.0
      %v1730 = vand.u32 %v1554, 4294901760
      %v1731 = vsub.f32 %v1554, %v1730
      %v1732 = vand.u32 %v1731, 4294901760
      %v1733 = vsub.f32 %v1731, %v1732
      %v1734 = vand.u32 %v1733, 4294901760
      %1735 = vmatmul.mubr.f32.gmra.mxu0 %v1734
      %v1736 = vpop.f32.mrf.mxu0
      %v1737 = vadd.f32 %v1567, %v1736
      %v1738 = vpop.f32.mrf.mxu0
      %1739 = vmatprep.mubr.f32.mxu0 0.0
      %v1740 = vand.u32 %v1555, 4294901760
      %v1741 = vsub.f32 %v1555, %v1740
      %v1742 = vand.u32 %v1741, 4294901760
      %v1743 = vsub.f32 %v1741, %v1742
      %v1744 = vand.u32 %v1743, 4294901760
      %1745 = vmatmul.mubr.f32.gmra.mxu0 %v1744
      %v1746 = vpop.f32.mrf.mxu0
      %v1747 = vadd.f32 %v1567, %v1746
      %v1748 = vpop.f32.mrf.mxu0
      %1749 = vmatprep.mubr.f32.mxu0 0.0
      %v1750 = vand.u32 %v1556, 4294901760
      %v1751 = vsub.f32 %v1556, %v1750
      %v1752 = vand.u32 %v1751, 4294901760
      %v1753 = vsub.f32 %v1751, %v1752
      %v1754 = vand.u32 %v1753, 4294901760
      %1755 = vmatmul.mubr.f32.gmra.mxu0 %v1754
      %v1756 = vpop.f32.mrf.mxu0
      %v1757 = vadd.f32 %v1567, %v1756
      %v1758 = vpop.f32.mrf.mxu0
      %1759 = vmatprep.mubr.f32.mxu0 0.0
      %v1760 = vand.u32 %v1557, 4294901760
      %v1761 = vsub.f32 %v1557, %v1760
      %v1762 = vand.u32 %v1761, 4294901760
      %v1763 = vsub.f32 %v1761, %v1762
      %v1764 = vand.u32 %v1763, 4294901760
      %1765 = vmatmul.mubr.f32.gmra.mxu0 %v1764
      %v1766 = vpop.f32.mrf.mxu0
      %v1767 = vadd.f32 %v1567, %v1766
      %v1768 = vpop.f32.mrf.mxu0
      %1769 = vmatprep.mubr.f32.mxu0 0.0
      %v1770 = vand.u32 %v1558, 4294901760
      %v1771 = vsub.f32 %v1558, %v1770
      %v1772 = vand.u32 %v1771, 4294901760
      %v1773 = vsub.f32 %v1771, %v1772
      %v1774 = vand.u32 %v1773, 4294901760
      %1775 = vmatmul.mubr.f32.gmra.mxu0 %v1774
      %v1776 = vpop.f32.mrf.mxu0
      %v1777 = vadd.f32 %v1567, %v1776
      %v1778 = vpop.f32.mrf.mxu0
      %1779 = vmatprep.mubr.f32.mxu0 0.0
      %v1780 = vand.u32 %v1559, 4294901760
      %v1781 = vsub.f32 %v1559, %v1780
      %v1782 = vand.u32 %v1781, 4294901760
      %v1783 = vsub.f32 %v1781, %v1782
      %v1784 = vand.u32 %v1783, 4294901760
      %1785 = vmatmul.mubr.f32.gmra.mxu0 %v1784
      %v1786 = vpop.f32.mrf.mxu0
      %v1787 = vadd.f32 %v1567, %v1786
      %v1788 = vpop.f32.mrf.mxu0
      %1789 = vmatprep.mubr.f32.mxu0 0.0
      %v1790 = vand.u32 %v1560, 4294901760
      %v1791 = vsub.f32 %v1560, %v1790
      %v1792 = vand.u32 %v1791, 4294901760
      %v1793 = vsub.f32 %v1791, %v1792
      %v1794 = vand.u32 %v1793, 4294901760
      %1795 = vmatmul.mubr.f32.gmra.mxu0 %v1794
      %v1796 = vpop.f32.mrf.mxu0
      %v1797 = vadd.f32 %v1567, %v1796
      %v1798 = vpop.f32.mrf.mxu0
      %1799 = vmatprep.mubr.f32.mxu0 0.0
      %v1800 = vand.u32 %v1561, 4294901760
      %v1801 = vsub.f32 %v1561, %v1800
      %v1802 = vand.u32 %v1801, 4294901760
      %v1803 = vsub.f32 %v1801, %v1802
      %v1804 = vand.u32 %v1803, 4294901760
      %1805 = vmatmul.mubr.f32.gmra.mxu0 %v1804
      %v1806 = vpop.f32.mrf.mxu0
      %v1807 = vadd.f32 %v1567, %v1806
      %v1808 = vpop.f32.mrf.mxu0
      %1809 = vdwg.mxu0
      %1810 = vmatprep.subr.mxu0 0.0
      %v1811 = vand.u32 %v247, 4294901760
      %v1812 = vsub.f32 %v247, %v1811
      %v1813 = vand.u32 %v1812, 4294901760
      %v1814 = vsub.f32 %v1812, %v1813
      %v1815 = vand.u32 %v1814, 4294901760
      %1816 = vmatpush1.msra.mxu0 %v1815
      %1817 = vmatprep.subr.mxu0 0.0
      %v1818 = vand.u32 %v246, 4294901760
      %v1819 = vsub.f32 %v246, %v1818
      %v1820 = vand.u32 %v1819, 4294901760
      %v1821 = vsub.f32 %v1819, %v1820
      %v1822 = vand.u32 %v1821, 4294901760
      %1823 = vmatpush1.msra.mxu0 %v1822
      %1824 = vmatprep.subr.mxu0 0.0
      %v1825 = vand.u32 %v245, 4294901760
      %v1826 = vsub.f32 %v245, %v1825
      %v1827 = vand.u32 %v1826, 4294901760
      %v1828 = vsub.f32 %v1826, %v1827
      %v1829 = vand.u32 %v1828, 4294901760
      %1830 = vmatpush1.msra.mxu0 %v1829
      %1831 = vmatprep.subr.mxu0 0.0
      %v1832 = vand.u32 %v244, 4294901760
      %v1833 = vsub.f32 %v244, %v1832
      %v1834 = vand.u32 %v1833, 4294901760
      %v1835 = vsub.f32 %v1833, %v1834
      %v1836 = vand.u32 %v1835, 4294901760
      %1837 = vmatpush1.msra.mxu0 %v1836
      %1838 = vmatprep.subr.mxu0 0.0
      %v1839 = vand.u32 %v243, 4294901760
      %v1840 = vsub.f32 %v243, %v1839
      %v1841 = vand.u32 %v1840, 4294901760
      %v1842 = vsub.f32 %v1840, %v1841
      %v1843 = vand.u32 %v1842, 4294901760
      %1844 = vmatpush1.msra.mxu0 %v1843
      %1845 = vmatprep.subr.mxu0 0.0
      %v1846 = vand.u32 %v242, 4294901760
      %v1847 = vsub.f32 %v242, %v1846
      %v1848 = vand.u32 %v1847, 4294901760
      %v1849 = vsub.f32 %v1847, %v1848
      %v1850 = vand.u32 %v1849, 4294901760
      %1851 = vmatpush1.msra.mxu0 %v1850
      %1852 = vmatprep.subr.mxu0 0.0
      %v1853 = vand.u32 %v241, 4294901760
      %v1854 = vsub.f32 %v241, %v1853
      %v1855 = vand.u32 %v1854, 4294901760
      %v1856 = vsub.f32 %v1854, %v1855
      %v1857 = vand.u32 %v1856, 4294901760
      %1858 = vmatpush1.msra.mxu0 %v1857
      %1859 = vmatprep.subr.mxu0 0.0
      %v1860 = vand.u32 %v240, 4294901760
      %v1861 = vsub.f32 %v240, %v1860
      %v1862 = vand.u32 %v1861, 4294901760
      %v1863 = vsub.f32 %v1861, %v1862
      %v1864 = vand.u32 %v1863, 4294901760
      %1865 = vmatpush1.msra.mxu0 %v1864
      %1866 = vmatprep.subr.mxu0 0.0
      %v1867 = vand.u32 %v239, 4294901760
      %v1868 = vsub.f32 %v239, %v1867
      %v1869 = vand.u32 %v1868, 4294901760
      %v1870 = vsub.f32 %v1868, %v1869
      %v1871 = vand.u32 %v1870, 4294901760
      %1872 = vmatpush1.msra.mxu0 %v1871
      %1873 = vmatprep.subr.mxu0 0.0
      %v1874 = vand.u32 %v238, 4294901760
      %v1875 = vsub.f32 %v238, %v1874
      %v1876 = vand.u32 %v1875, 4294901760
      %v1877 = vsub.f32 %v1875, %v1876
      %v1878 = vand.u32 %v1877, 4294901760
      %1879 = vmatpush1.msra.mxu0 %v1878
      %1880 = vmatprep.subr.mxu0 0.0
      %v1881 = vand.u32 %v237, 4294901760
      %v1882 = vsub.f32 %v237, %v1881
      %v1883 = vand.u32 %v1882, 4294901760
      %v1884 = vsub.f32 %v1882, %v1883
      %v1885 = vand.u32 %v1884, 4294901760
      %1886 = vmatpush1.msra.mxu0 %v1885
      %1887 = vmatprep.subr.mxu0 0.0
      %v1888 = vand.u32 %v236, 4294901760
      %v1889 = vsub.f32 %v236, %v1888
      %v1890 = vand.u32 %v1889, 4294901760
      %v1891 = vsub.f32 %v1889, %v1890
      %v1892 = vand.u32 %v1891, 4294901760
      %1893 = vmatpush1.msra.mxu0 %v1892
      %1894 = vmatprep.subr.mxu0 0.0
      %v1895 = vand.u32 %v235, 4294901760
      %v1896 = vsub.f32 %v235, %v1895
      %v1897 = vand.u32 %v1896, 4294901760
      %v1898 = vsub.f32 %v1896, %v1897
      %v1899 = vand.u32 %v1898, 4294901760
      %1900 = vmatpush1.msra.mxu0 %v1899
      %1901 = vmatprep.subr.mxu0 0.0
      %v1902 = vand.u32 %v234, 4294901760
      %v1903 = vsub.f32 %v234, %v1902
      %v1904 = vand.u32 %v1903, 4294901760
      %v1905 = vsub.f32 %v1903, %v1904
      %v1906 = vand.u32 %v1905, 4294901760
      %1907 = vmatpush1.msra.mxu0 %v1906
      %1908 = vmatprep.subr.mxu0 0.0
      %v1909 = vand.u32 %v233, 4294901760
      %v1910 = vsub.f32 %v233, %v1909
      %v1911 = vand.u32 %v1910, 4294901760
      %v1912 = vsub.f32 %v1910, %v1911
      %v1913 = vand.u32 %v1912, 4294901760
      %1914 = vmatpush1.msra.mxu0 %v1913
      %1915 = vmatprep.subr.mxu0 0.0
      %v1916 = vand.u32 %v232, 4294901760
      %v1917 = vsub.f32 %v232, %v1916
      %v1918 = vand.u32 %v1917, 4294901760
      %v1919 = vsub.f32 %v1917, %v1918
      %v1920 = vand.u32 %v1919, 4294901760
      %1921 = vmatpush1.msra.mxu0 %v1920
      %1922 = vmatprep.subr.mxu0 0.0
      %1923 = vmatpush2.msra.mxu0 0.0
      %1924 = vmatprep.subr.mxu0 0.0
      %1925 = vmatpush2.msra.mxu0 0.0
      %1926 = vmatprep.subr.mxu0 0.0
      %1927 = vmatpush2.msra.mxu0 0.0
      %1928 = vmatprep.subr.mxu0 0.0
      %1929 = vmatpush2.msra.mxu0 0.0
      %1930 = vmatprep.subr.mxu0 0.0
      %1931 = vmatpush2.msra.mxu0 0.0
      %1932 = vmatprep.subr.mxu0 0.0
      %1933 = vmatpush2.msra.mxu0 0.0
      %1934 = vmatprep.subr.mxu0 0.0
      %1935 = vmatpush2.msra.mxu0 0.0
      %1936 = vmatprep.subr.mxu0 0.0
      %1937 = vmatpush2.msra.mxu0 0.0
      %1938 = vmatprep.subr.mxu0 0.0
      %1939 = vmatpush2.msra.mxu0 0.0
      %1940 = vmatprep.subr.mxu0 0.0
      %1941 = vmatpush2.msra.mxu0 0.0
      %1942 = vmatprep.subr.mxu0 0.0
      %1943 = vmatpush2.msra.mxu0 0.0
      %1944 = vmatprep.subr.mxu0 0.0
      %1945 = vmatpush2.msra.mxu0 0.0
      %1946 = vmatprep.subr.mxu0 0.0
      %1947 = vmatpush2.msra.mxu0 0.0
      %1948 = vmatprep.subr.mxu0 0.0
      %1949 = vmatpush2.msra.mxu0 0.0
      %1950 = vmatprep.subr.mxu0 0.0
      %1951 = vmatpush2.msra.mxu0 0.0
      %1952 = vmatprep.subr.mxu0 0.0
      %1953 = vmatpush2.msra.mxu0 0.0
      %1954 = vmatprep.mubr.f32.mxu0 0.0
      %v1955 = vand.u32 %v1546, 4294901760
      %1956 = vmatmul.mubr.f32.gmra.mxu0 %v1955
      %v1957 = vpop.f32.mrf.mxu0
      %v1958 = vadd.f32 %v1657, %v1957
      %v1959 = vpop.f32.mrf.mxu0
      %1960 = vmatprep.mubr.f32.mxu0 0.0
      %v1961 = vand.u32 %v1547, 4294901760
      %1962 = vmatmul.mubr.f32.gmra.mxu0 %v1961
      %v1963 = vpop.f32.mrf.mxu0
      %v1964 = vadd.f32 %v1667, %v1963
      %v1965 = vpop.f32.mrf.mxu0
      %1966 = vmatprep.mubr.f32.mxu0 0.0
      %v1967 = vand.u32 %v1548, 4294901760
      %1968 = vmatmul.mubr.f32.gmra.mxu0 %v1967
      %v1969 = vpop.f32.mrf.mxu0
      %v1970 = vadd.f32 %v1677, %v1969
      %v1971 = vpop.f32.mrf.mxu0
      %1972 = vmatprep.mubr.f32.mxu0 0.0
      %v1973 = vand.u32 %v1549, 4294901760
      %1974 = vmatmul.mubr.f32.gmra.mxu0 %v1973
      %v1975 = vpop.f32.mrf.mxu0
      %v1976 = vadd.f32 %v1687, %v1975
      %v1977 = vpop.f32.mrf.mxu0
      %1978 = vmatprep.mubr.f32.mxu0 0.0
      %v1979 = vand.u32 %v1550, 4294901760
      %1980 = vmatmul.mubr.f32.gmra.mxu0 %v1979
      %v1981 = vpop.f32.mrf.mxu0
      %v1982 = vadd.f32 %v1697, %v1981
      %v1983 = vpop.f32.mrf.mxu0
      %1984 = vmatprep.mubr.f32.mxu0 0.0
      %v1985 = vand.u32 %v1551, 4294901760
      %1986 = vmatmul.mubr.f32.gmra.mxu0 %v1985
      %v1987 = vpop.f32.mrf.mxu0
      %v1988 = vadd.f32 %v1707, %v1987
      %v1989 = vpop.f32.mrf.mxu0
      %1990 = vmatprep.mubr.f32.mxu0 0.0
      %v1991 = vand.u32 %v1552, 4294901760
      %1992 = vmatmul.mubr.f32.gmra.mxu0 %v1991
      %v1993 = vpop.f32.mrf.mxu0
      %v1994 = vadd.f32 %v1717, %v1993
      %v1995 = vpop.f32.mrf.mxu0
      %1996 = vmatprep.mubr.f32.mxu0 0.0
      %v1997 = vand.u32 %v1553, 4294901760
      %1998 = vmatmul.mubr.f32.gmra.mxu0 %v1997
      %v1999 = vpop.f32.mrf.mxu0
      %v2000 = vadd.f32 %v1727, %v1999
      %v2001 = vpop.f32.mrf.mxu0
      %2002 = vmatprep.mubr.f32.mxu0 0.0
      %v2003 = vand.u32 %v1554, 4294901760
      %2004 = vmatmul.mubr.f32.gmra.mxu0 %v2003
      %v2005 = vpop.f32.mrf.mxu0
      %v2006 = vadd.f32 %v1737, %v2005
      %v2007 = vpop.f32.mrf.mxu0
      %2008 = vmatprep.mubr.f32.mxu0 0.0
      %v2009 = vand.u32 %v1555, 4294901760
      %2010 = vmatmul.mubr.f32.gmra.mxu0 %v2009
      %v2011 = vpop.f32.mrf.mxu0
      %v2012 = vadd.f32 %v1747, %v2011
      %v2013 = vpop.f32.mrf.mxu0
      %2014 = vmatprep.mubr.f32.mxu0 0.0
      %v2015 = vand.u32 %v1556, 4294901760
      %2016 = vmatmul.mubr.f32.gmra.mxu0 %v2015
      %v2017 = vpop.f32.mrf.mxu0
      %v2018 = vadd.f32 %v1757, %v2017
      %v2019 = vpop.f32.mrf.mxu0
      %2020 = vmatprep.mubr.f32.mxu0 0.0
      %v2021 = vand.u32 %v1557, 4294901760
      %2022 = vmatmul.mubr.f32.gmra.mxu0 %v2021
      %v2023 = vpop.f32.mrf.mxu0
      %v2024 = vadd.f32 %v1767, %v2023
      %v2025 = vpop.f32.mrf.mxu0
      %2026 = vmatprep.mubr.f32.mxu0 0.0
      %v2027 = vand.u32 %v1558, 4294901760
      %2028 = vmatmul.mubr.f32.gmra.mxu0 %v2027
      %v2029 = vpop.f32.mrf.mxu0
      %v2030 = vadd.f32 %v1777, %v2029
      %v2031 = vpop.f32.mrf.mxu0
      %2032 = vmatprep.mubr.f32.mxu0 0.0
      %v2033 = vand.u32 %v1559, 4294901760
      %2034 = vmatmul.mubr.f32.gmra.mxu0 %v2033
      %v2035 = vpop.f32.mrf.mxu0
      %v2036 = vadd.f32 %v1787, %v2035
      %v2037 = vpop.f32.mrf.mxu0
      %2038 = vmatprep.mubr.f32.mxu0 0.0
      %v2039 = vand.u32 %v1560, 4294901760
      %2040 = vmatmul.mubr.f32.gmra.mxu0 %v2039
      %v2041 = vpop.f32.mrf.mxu0
      %v2042 = vadd.f32 %v1797, %v2041
      %v2043 = vpop.f32.mrf.mxu0
      %2044 = vmatprep.mubr.f32.mxu0 0.0
      %v2045 = vand.u32 %v1561, 4294901760
      %2046 = vmatmul.mubr.f32.gmra.mxu0 %v2045
      %v2047 = vpop.f32.mrf.mxu0
      %v2048 = vadd.f32 %v1807, %v2047
      %v2049 = vpop.f32.mrf.mxu0
      %2050 = vdwg.mxu0
      %2051 = vmatprep.subr.mxu0 0.0
      %v2052 = vand.u32 %v247, 4294901760
      %v2053 = vsub.f32 %v247, %v2052
      %2054 = vmatpush1.msra.mxu0 %v2053
      %2055 = vmatprep.subr.mxu0 0.0
      %v2056 = vand.u32 %v246, 4294901760
      %v2057 = vsub.f32 %v246, %v2056
      %2058 = vmatpush1.msra.mxu0 %v2057
      %2059 = vmatprep.subr.mxu0 0.0
      %v2060 = vand.u32 %v245, 4294901760
      %v2061 = vsub.f32 %v245, %v2060
      %2062 = vmatpush1.msra.mxu0 %v2061
      %2063 = vmatprep.subr.mxu0 0.0
      %v2064 = vand.u32 %v244, 4294901760
      %v2065 = vsub.f32 %v244, %v2064
      %2066 = vmatpush1.msra.mxu0 %v2065
      %2067 = vmatprep.subr.mxu0 0.0
      %v2068 = vand.u32 %v243, 4294901760
      %v2069 = vsub.f32 %v243, %v2068
      %2070 = vmatpush1.msra.mxu0 %v2069
      %2071 = vmatprep.subr.mxu0 0.0
      %v2072 = vand.u32 %v242, 4294901760
      %v2073 = vsub.f32 %v242, %v2072
      %2074 = vmatpush1.msra.mxu0 %v2073
      %2075 = vmatprep.subr.mxu0 0.0
      %v2076 = vand.u32 %v241, 4294901760
      %v2077 = vsub.f32 %v241, %v2076
      %2078 = vmatpush1.msra.mxu0 %v2077
      %2079 = vmatprep.subr.mxu0 0.0
      %v2080 = vand.u32 %v240, 4294901760
      %v2081 = vsub.f32 %v240, %v2080
      %2082 = vmatpush1.msra.mxu0 %v2081
      %2083 = vmatprep.subr.mxu0 0.0
      %v2084 = vand.u32 %v239, 4294901760
      %v2085 = vsub.f32 %v239, %v2084
      %2086 = vmatpush1.msra.mxu0 %v2085
      %2087 = vmatprep.subr.mxu0 0.0
      %v2088 = vand.u32 %v238, 4294901760
      %v2089 = vsub.f32 %v238, %v2088
      %2090 = vmatpush1.msra.mxu0 %v2089
      %2091 = vmatprep.subr.mxu0 0.0
      %v2092 = vand.u32 %v237, 4294901760
      %v2093 = vsub.f32 %v237, %v2092
      %2094 = vmatpush1.msra.mxu0 %v2093
      %2095 = vmatprep.subr.mxu0 0.0
      %v2096 = vand.u32 %v236, 4294901760
      %v2097 = vsub.f32 %v236, %v2096
      %2098 = vmatpush1.msra.mxu0 %v2097
      %2099 = vmatprep.subr.mxu0 0.0
      %v2100 = vand.u32 %v235, 4294901760
      %v2101 = vsub.f32 %v235, %v2100
      %2102 = vmatpush1.msra.mxu0 %v2101
      %2103 = vmatprep.subr.mxu0 0.0
      %v2104 = vand.u32 %v234, 4294901760
      %v2105 = vsub.f32 %v234, %v2104
      %2106 = vmatpush1.msra.mxu0 %v2105
      %2107 = vmatprep.subr.mxu0 0.0
      %v2108 = vand.u32 %v233, 4294901760
      %v2109 = vsub.f32 %v233, %v2108
      %2110 = vmatpush1.msra.mxu0 %v2109
      %2111 = vmatprep.subr.mxu0 0.0
      %v2112 = vand.u32 %v232, 4294901760
      %v2113 = vsub.f32 %v232, %v2112
      %2114 = vmatpush1.msra.mxu0 %v2113
      %2115 = vmatprep.subr.mxu0 0.0
      %2116 = vmatpush2.msra.mxu0 0.0
      %2117 = vmatprep.subr.mxu0 0.0
      %2118 = vmatpush2.msra.mxu0 0.0
      %2119 = vmatprep.subr.mxu0 0.0
      %2120 = vmatpush2.msra.mxu0 0.0
      %2121 = vmatprep.subr.mxu0 0.0
      %2122 = vmatpush2.msra.mxu0 0.0
      %2123 = vmatprep.subr.mxu0 0.0
      %2124 = vmatpush2.msra.mxu0 0.0
      %2125 = vmatprep.subr.mxu0 0.0
      %2126 = vmatpush2.msra.mxu0 0.0
      %2127 = vmatprep.subr.mxu0 0.0
      %2128 = vmatpush2.msra.mxu0 0.0
      %2129 = vmatprep.subr.mxu0 0.0
      %2130 = vmatpush2.msra.mxu0 0.0
      %2131 = vmatprep.subr.mxu0 0.0
      %2132 = vmatpush2.msra.mxu0 0.0
      %2133 = vmatprep.subr.mxu0 0.0
      %2134 = vmatpush2.msra.mxu0 0.0
      %2135 = vmatprep.subr.mxu0 0.0
      %2136 = vmatpush2.msra.mxu0 0.0
      %2137 = vmatprep.subr.mxu0 0.0
      %2138 = vmatpush2.msra.mxu0 0.0
      %2139 = vmatprep.subr.mxu0 0.0
      %2140 = vmatpush2.msra.mxu0 0.0
      %2141 = vmatprep.subr.mxu0 0.0
      %2142 = vmatpush2.msra.mxu0 0.0
      %2143 = vmatprep.subr.mxu0 0.0
      %2144 = vmatpush2.msra.mxu0 0.0
      %2145 = vmatprep.subr.mxu0 0.0
      %2146 = vmatpush2.msra.mxu0 0.0
      %2147 = vmatprep.mubr.f32.mxu0 0.0
      %v2148 = vand.u32 %v1546, 4294901760
      %v2149 = vsub.f32 %v1546, %v2148
      %2150 = vmatmul.mubr.f32.gmra.mxu0 %v2149
      %v2151 = vpop.f32.mrf.mxu0
      %v2152 = vadd.f32 %v1958, %v2151
      %v2153 = vpop.f32.mrf.mxu0
      %2154 = vmatprep.mubr.f32.mxu0 0.0
      %v2155 = vand.u32 %v1547, 4294901760
      %v2156 = vsub.f32 %v1547, %v2155
      %2157 = vmatmul.mubr.f32.gmra.mxu0 %v2156
      %v2158 = vpop.f32.mrf.mxu0
      %v2159 = vadd.f32 %v1964, %v2158
      %v2160 = vpop.f32.mrf.mxu0
      %2161 = vmatprep.mubr.f32.mxu0 0.0
      %v2162 = vand.u32 %v1548, 4294901760
      %v2163 = vsub.f32 %v1548, %v2162
      %2164 = vmatmul.mubr.f32.gmra.mxu0 %v2163
      %v2165 = vpop.f32.mrf.mxu0
      %v2166 = vadd.f32 %v1970, %v2165
      %v2167 = vpop.f32.mrf.mxu0
      %2168 = vmatprep.mubr.f32.mxu0 0.0
      %v2169 = vand.u32 %v1549, 4294901760
      %v2170 = vsub.f32 %v1549, %v2169
      %2171 = vmatmul.mubr.f32.gmra.mxu0 %v2170
      %v2172 = vpop.f32.mrf.mxu0
      %v2173 = vadd.f32 %v1976, %v2172
      %v2174 = vpop.f32.mrf.mxu0
      %2175 = vmatprep.mubr.f32.mxu0 0.0
      %v2176 = vand.u32 %v1550, 4294901760
      %v2177 = vsub.f32 %v1550, %v2176
      %2178 = vmatmul.mubr.f32.gmra.mxu0 %v2177
      %v2179 = vpop.f32.mrf.mxu0
      %v2180 = vadd.f32 %v1982, %v2179
      %v2181 = vpop.f32.mrf.mxu0
      %2182 = vmatprep.mubr.f32.mxu0 0.0
      %v2183 = vand.u32 %v1551, 4294901760
      %v2184 = vsub.f32 %v1551, %v2183
      %2185 = vmatmul.mubr.f32.gmra.mxu0 %v2184
      %v2186 = vpop.f32.mrf.mxu0
      %v2187 = vadd.f32 %v1988, %v2186
      %v2188 = vpop.f32.mrf.mxu0
      %2189 = vmatprep.mubr.f32.mxu0 0.0
      %v2190 = vand.u32 %v1552, 4294901760
      %v2191 = vsub.f32 %v1552, %v2190
      %2192 = vmatmul.mubr.f32.gmra.mxu0 %v2191
      %v2193 = vpop.f32.mrf.mxu0
      %v2194 = vadd.f32 %v1994, %v2193
      %v2195 = vpop.f32.mrf.mxu0
      %2196 = vmatprep.mubr.f32.mxu0 0.0
      %v2197 = vand.u32 %v1553, 4294901760
      %v2198 = vsub.f32 %v1553, %v2197
      %2199 = vmatmul.mubr.f32.gmra.mxu0 %v2198
      %v2200 = vpop.f32.mrf.mxu0
      %v2201 = vadd.f32 %v2000, %v2200
      %v2202 = vpop.f32.mrf.mxu0
      %2203 = vmatprep.mubr.f32.mxu0 0.0
      %v2204 = vand.u32 %v1554, 4294901760
      %v2205 = vsub.f32 %v1554, %v2204
      %2206 = vmatmul.mubr.f32.gmra.mxu0 %v2205
      %v2207 = vpop.f32.mrf.mxu0
      %v2208 = vadd.f32 %v2006, %v2207
      %v2209 = vpop.f32.mrf.mxu0
      %2210 = vmatprep.mubr.f32.mxu0 0.0
      %v2211 = vand.u32 %v1555, 4294901760
      %v2212 = vsub.f32 %v1555, %v2211
      %2213 = vmatmul.mubr.f32.gmra.mxu0 %v2212
      %v2214 = vpop.f32.mrf.mxu0
      %v2215 = vadd.f32 %v2012, %v2214
      %v2216 = vpop.f32.mrf.mxu0
      %2217 = vmatprep.mubr.f32.mxu0 0.0
      %v2218 = vand.u32 %v1556, 4294901760
      %v2219 = vsub.f32 %v1556, %v2218
      %2220 = vmatmul.mubr.f32.gmra.mxu0 %v2219
      %v2221 = vpop.f32.mrf.mxu0
      %v2222 = vadd.f32 %v2018, %v2221
      %v2223 = vpop.f32.mrf.mxu0
      %2224 = vmatprep.mubr.f32.mxu0 0.0
      %v2225 = vand.u32 %v1557, 4294901760
      %v2226 = vsub.f32 %v1557, %v2225
      %2227 = vmatmul.mubr.f32.gmra.mxu0 %v2226
      %v2228 = vpop.f32.mrf.mxu0
      %v2229 = vadd.f32 %v2024, %v2228
      %v2230 = vpop.f32.mrf.mxu0
      %2231 = vmatprep.mubr.f32.mxu0 0.0
      %v2232 = vand.u32 %v1558, 4294901760
      %v2233 = vsub.f32 %v1558, %v2232
      %2234 = vmatmul.mubr.f32.gmra.mxu0 %v2233
      %v2235 = vpop.f32.mrf.mxu0
      %v2236 = vadd.f32 %v2030, %v2235
      %v2237 = vpop.f32.mrf.mxu0
      %2238 = vmatprep.mubr.f32.mxu0 0.0
      %v2239 = vand.u32 %v1559, 4294901760
      %v2240 = vsub.f32 %v1559, %v2239
      %2241 = vmatmul.mubr.f32.gmra.mxu0 %v2240
      %v2242 = vpop.f32.mrf.mxu0
      %v2243 = vadd.f32 %v2036, %v2242
      %v2244 = vpop.f32.mrf.mxu0
      %2245 = vmatprep.mubr.f32.mxu0 0.0
      %v2246 = vand.u32 %v1560, 4294901760
      %v2247 = vsub.f32 %v1560, %v2246
      %2248 = vmatmul.mubr.f32.gmra.mxu0 %v2247
      %v2249 = vpop.f32.mrf.mxu0
      %v2250 = vadd.f32 %v2042, %v2249
      %v2251 = vpop.f32.mrf.mxu0
      %2252 = vmatprep.mubr.f32.mxu0 0.0
      %v2253 = vand.u32 %v1561, 4294901760
      %v2254 = vsub.f32 %v1561, %v2253
      %2255 = vmatmul.mubr.f32.gmra.mxu0 %v2254
      %v2256 = vpop.f32.mrf.mxu0
      %v2257 = vadd.f32 %v2048, %v2256
      %v2258 = vpop.f32.mrf.mxu0
      %2259 = vdwg.mxu0
      %2260 = vmatprep.subr.mxu0 0.0
      %v2261 = vand.u32 %v247, 4294901760
      %2262 = vmatpush1.msra.mxu0 %v2261
      %2263 = vmatprep.subr.mxu0 0.0
      %v2264 = vand.u32 %v246, 4294901760
      %2265 = vmatpush1.msra.mxu0 %v2264
      %2266 = vmatprep.subr.mxu0 0.0
      %v2267 = vand.u32 %v245, 4294901760
      %2268 = vmatpush1.msra.mxu0 %v2267
      %2269 = vmatprep.subr.mxu0 0.0
      %v2270 = vand.u32 %v244, 4294901760
      %2271 = vmatpush1.msra.mxu0 %v2270
      %2272 = vmatprep.subr.mxu0 0.0
      %v2273 = vand.u32 %v243, 4294901760
      %2274 = vmatpush1.msra.mxu0 %v2273
      %2275 = vmatprep.subr.mxu0 0.0
      %v2276 = vand.u32 %v242, 4294901760
      %2277 = vmatpush1.msra.mxu0 %v2276
      %2278 = vmatprep.subr.mxu0 0.0
      %v2279 = vand.u32 %v241, 4294901760
      %2280 = vmatpush1.msra.mxu0 %v2279
      %2281 = vmatprep.subr.mxu0 0.0
      %v2282 = vand.u32 %v240, 4294901760
      %2283 = vmatpush1.msra.mxu0 %v2282
      %2284 = vmatprep.subr.mxu0 0.0
      %v2285 = vand.u32 %v239, 4294901760
      %2286 = vmatpush1.msra.mxu0 %v2285
      %2287 = vmatprep.subr.mxu0 0.0
      %v2288 = vand.u32 %v238, 4294901760
      %2289 = vmatpush1.msra.mxu0 %v2288
      %2290 = vmatprep.subr.mxu0 0.0
      %v2291 = vand.u32 %v237, 4294901760
      %2292 = vmatpush1.msra.mxu0 %v2291
      %2293 = vmatprep.subr.mxu0 0.0
      %v2294 = vand.u32 %v236, 4294901760
      %2295 = vmatpush1.msra.mxu0 %v2294
      %2296 = vmatprep.subr.mxu0 0.0
      %v2297 = vand.u32 %v235, 4294901760
      %2298 = vmatpush1.msra.mxu0 %v2297
      %2299 = vmatprep.subr.mxu0 0.0
      %v2300 = vand.u32 %v234, 4294901760
      %2301 = vmatpush1.msra.mxu0 %v2300
      %2302 = vmatprep.subr.mxu0 0.0
      %v2303 = vand.u32 %v233, 4294901760
      %2304 = vmatpush1.msra.mxu0 %v2303
      %2305 = vmatprep.subr.mxu0 0.0
      %v2306 = vand.u32 %v232, 4294901760
      %2307 = vmatpush1.msra.mxu0 %v2306
      %2308 = vmatprep.subr.mxu0 0.0
      %2309 = vmatpush2.msra.mxu0 0.0
      %2310 = vmatprep.subr.mxu0 0.0
      %2311 = vmatpush2.msra.mxu0 0.0
      %2312 = vmatprep.subr.mxu0 0.0
      %2313 = vmatpush2.msra.mxu0 0.0
      %2314 = vmatprep.subr.mxu0 0.0
      %2315 = vmatpush2.msra.mxu0 0.0
      %2316 = vmatprep.subr.mxu0 0.0
      %2317 = vmatpush2.msra.mxu0 0.0
      %2318 = vmatprep.subr.mxu0 0.0
      %2319 = vmatpush2.msra.mxu0 0.0
      %2320 = vmatprep.subr.mxu0 0.0
      %2321 = vmatpush2.msra.mxu0 0.0
      %2322 = vmatprep.subr.mxu0 0.0
      %2323 = vmatpush2.msra.mxu0 0.0
      %2324 = vmatprep.subr.mxu0 0.0
      %2325 = vmatpush2.msra.mxu0 0.0
      %2326 = vmatprep.subr.mxu0 0.0
      %2327 = vmatpush2.msra.mxu0 0.0
      %2328 = vmatprep.subr.mxu0 0.0
      %2329 = vmatpush2.msra.mxu0 0.0
      %2330 = vmatprep.subr.mxu0 0.0
      %2331 = vmatpush2.msra.mxu0 0.0
      %2332 = vmatprep.subr.mxu0 0.0
      %2333 = vmatpush2.msra.mxu0 0.0
      %2334 = vmatprep.subr.mxu0 0.0
      %2335 = vmatpush2.msra.mxu0 0.0
      %2336 = vmatprep.subr.mxu0 0.0
      %2337 = vmatpush2.msra.mxu0 0.0
      %2338 = vmatprep.subr.mxu0 0.0
      %2339 = vmatpush2.msra.mxu0 0.0
      %2340 = vmatprep.mubr.f32.mxu0 0.0
      %v2341 = vand.u32 %v1546, 4294901760
      %v2342 = vsub.f32 %v1546, %v2341
      %v2343 = vand.u32 %v2342, 4294901760
      %2344 = vmatmul.mubr.f32.gmra.mxu0 %v2343
      %v2345 = vpop.f32.mrf.mxu0
      %v2346 = vadd.f32 %v2152, %v2345
      %v2347 = vpop.f32.mrf.mxu0
      %2348 = vmatprep.mubr.f32.mxu0 0.0
      %v2349 = vand.u32 %v1547, 4294901760
      %v2350 = vsub.f32 %v1547, %v2349
      %v2351 = vand.u32 %v2350, 4294901760
      %2352 = vmatmul.mubr.f32.gmra.mxu0 %v2351
      %v2353 = vpop.f32.mrf.mxu0
      %v2354 = vadd.f32 %v2159, %v2353
      %v2355 = vpop.f32.mrf.mxu0
      %2356 = vmatprep.mubr.f32.mxu0 0.0
      %v2357 = vand.u32 %v1548, 4294901760
      %v2358 = vsub.f32 %v1548, %v2357
      %v2359 = vand.u32 %v2358, 4294901760
      %2360 = vmatmul.mubr.f32.gmra.mxu0 %v2359
      %v2361 = vpop.f32.mrf.mxu0
      %v2362 = vadd.f32 %v2166, %v2361
      %v2363 = vpop.f32.mrf.mxu0
      %2364 = vmatprep.mubr.f32.mxu0 0.0
      %v2365 = vand.u32 %v1549, 4294901760
      %v2366 = vsub.f32 %v1549, %v2365
      %v2367 = vand.u32 %v2366, 4294901760
      %2368 = vmatmul.mubr.f32.gmra.mxu0 %v2367
      %v2369 = vpop.f32.mrf.mxu0
      %v2370 = vadd.f32 %v2173, %v2369
      %v2371 = vpop.f32.mrf.mxu0
      %2372 = vmatprep.mubr.f32.mxu0 0.0
      %v2373 = vand.u32 %v1550, 4294901760
      %v2374 = vsub.f32 %v1550, %v2373
      %v2375 = vand.u32 %v2374, 4294901760
      %2376 = vmatmul.mubr.f32.gmra.mxu0 %v2375
      %v2377 = vpop.f32.mrf.mxu0
      %v2378 = vadd.f32 %v2180, %v2377
      %v2379 = vpop.f32.mrf.mxu0
      %2380 = vmatprep.mubr.f32.mxu0 0.0
      %v2381 = vand.u32 %v1551, 4294901760
      %v2382 = vsub.f32 %v1551, %v2381
      %v2383 = vand.u32 %v2382, 4294901760
      %2384 = vmatmul.mubr.f32.gmra.mxu0 %v2383
      %v2385 = vpop.f32.mrf.mxu0
      %v2386 = vadd.f32 %v2187, %v2385
      %v2387 = vpop.f32.mrf.mxu0
      %2388 = vmatprep.mubr.f32.mxu0 0.0
      %v2389 = vand.u32 %v1552, 4294901760
      %v2390 = vsub.f32 %v1552, %v2389
      %v2391 = vand.u32 %v2390, 4294901760
      %2392 = vmatmul.mubr.f32.gmra.mxu0 %v2391
      %v2393 = vpop.f32.mrf.mxu0
      %v2394 = vadd.f32 %v2194, %v2393
      %v2395 = vpop.f32.mrf.mxu0
      %2396 = vmatprep.mubr.f32.mxu0 0.0
      %v2397 = vand.u32 %v1553, 4294901760
      %v2398 = vsub.f32 %v1553, %v2397
      %v2399 = vand.u32 %v2398, 4294901760
      %2400 = vmatmul.mubr.f32.gmra.mxu0 %v2399
      %v2401 = vpop.f32.mrf.mxu0
      %v2402 = vadd.f32 %v2201, %v2401
      %v2403 = vpop.f32.mrf.mxu0
      %2404 = vmatprep.mubr.f32.mxu0 0.0
      %v2405 = vand.u32 %v1554, 4294901760
      %v2406 = vsub.f32 %v1554, %v2405
      %v2407 = vand.u32 %v2406, 4294901760
      %2408 = vmatmul.mubr.f32.gmra.mxu0 %v2407
      %v2409 = vpop.f32.mrf.mxu0
      %v2410 = vadd.f32 %v2208, %v2409
      %v2411 = vpop.f32.mrf.mxu0
      %2412 = vmatprep.mubr.f32.mxu0 0.0
      %v2413 = vand.u32 %v1555, 4294901760
      %v2414 = vsub.f32 %v1555, %v2413
      %v2415 = vand.u32 %v2414, 4294901760
      %2416 = vmatmul.mubr.f32.gmra.mxu0 %v2415
      %v2417 = vpop.f32.mrf.mxu0
      %v2418 = vadd.f32 %v2215, %v2417
      %v2419 = vpop.f32.mrf.mxu0
      %2420 = vmatprep.mubr.f32.mxu0 0.0
      %v2421 = vand.u32 %v1556, 4294901760
      %v2422 = vsub.f32 %v1556, %v2421
      %v2423 = vand.u32 %v2422, 4294901760
      %2424 = vmatmul.mubr.f32.gmra.mxu0 %v2423
      %v2425 = vpop.f32.mrf.mxu0
      %v2426 = vadd.f32 %v2222, %v2425
      %v2427 = vpop.f32.mrf.mxu0
      %2428 = vmatprep.mubr.f32.mxu0 0.0
      %v2429 = vand.u32 %v1557, 4294901760
      %v2430 = vsub.f32 %v1557, %v2429
      %v2431 = vand.u32 %v2430, 4294901760
      %2432 = vmatmul.mubr.f32.gmra.mxu0 %v2431
      %v2433 = vpop.f32.mrf.mxu0
      %v2434 = vadd.f32 %v2229, %v2433
      %v2435 = vpop.f32.mrf.mxu0
      %2436 = vmatprep.mubr.f32.mxu0 0.0
      %v2437 = vand.u32 %v1558, 4294901760
      %v2438 = vsub.f32 %v1558, %v2437
      %v2439 = vand.u32 %v2438, 4294901760
      %2440 = vmatmul.mubr.f32.gmra.mxu0 %v2439
      %v2441 = vpop.f32.mrf.mxu0
      %v2442 = vadd.f32 %v2236, %v2441
      %v2443 = vpop.f32.mrf.mxu0
      %2444 = vmatprep.mubr.f32.mxu0 0.0
      %v2445 = vand.u32 %v1559, 4294901760
      %v2446 = vsub.f32 %v1559, %v2445
      %v2447 = vand.u32 %v2446, 4294901760
      %2448 = vmatmul.mubr.f32.gmra.mxu0 %v2447
      %v2449 = vpop.f32.mrf.mxu0
      %v2450 = vadd.f32 %v2243, %v2449
      %v2451 = vpop.f32.mrf.mxu0
      %2452 = vmatprep.mubr.f32.mxu0 0.0
      %v2453 = vand.u32 %v1560, 4294901760
      %v2454 = vsub.f32 %v1560, %v2453
      %v2455 = vand.u32 %v2454, 4294901760
      %2456 = vmatmul.mubr.f32.gmra.mxu0 %v2455
      %v2457 = vpop.f32.mrf.mxu0
      %v2458 = vadd.f32 %v2250, %v2457
      %v2459 = vpop.f32.mrf.mxu0
      %2460 = vmatprep.mubr.f32.mxu0 0.0
      %v2461 = vand.u32 %v1561, 4294901760
      %v2462 = vsub.f32 %v1561, %v2461
      %v2463 = vand.u32 %v2462, 4294901760
      %2464 = vmatmul.mubr.f32.gmra.mxu0 %v2463
      %v2465 = vpop.f32.mrf.mxu0
      %v2466 = vadd.f32 %v2257, %v2465
      %v2467 = vpop.f32.mrf.mxu0
      %2468 = vdwg.mxu0
      %2469 = vmatprep.subr.mxu0 0.0
      %v2470 = vand.u32 %v247, 4294901760
      %v2471 = vsub.f32 %v247, %v2470
      %v2472 = vand.u32 %v2471, 4294901760
      %2473 = vmatpush1.msra.mxu0 %v2472
      %2474 = vmatprep.subr.mxu0 0.0
      %v2475 = vand.u32 %v246, 4294901760
      %v2476 = vsub.f32 %v246, %v2475
      %v2477 = vand.u32 %v2476, 4294901760
      %2478 = vmatpush1.msra.mxu0 %v2477
      %2479 = vmatprep.subr.mxu0 0.0
      %v2480 = vand.u32 %v245, 4294901760
      %v2481 = vsub.f32 %v245, %v2480
      %v2482 = vand.u32 %v2481, 4294901760
      %2483 = vmatpush1.msra.mxu0 %v2482
      %2484 = vmatprep.subr.mxu0 0.0
      %v2485 = vand.u32 %v244, 4294901760
      %v2486 = vsub.f32 %v244, %v2485
      %v2487 = vand.u32 %v2486, 4294901760
      %2488 = vmatpush1.msra.mxu0 %v2487
      %2489 = vmatprep.subr.mxu0 0.0
      %v2490 = vand.u32 %v243, 4294901760
      %v2491 = vsub.f32 %v243, %v2490
      %v2492 = vand.u32 %v2491, 4294901760
      %2493 = vmatpush1.msra.mxu0 %v2492
      %2494 = vmatprep.subr.mxu0 0.0
      %v2495 = vand.u32 %v242, 4294901760
      %v2496 = vsub.f32 %v242, %v2495
      %v2497 = vand.u32 %v2496, 4294901760
      %2498 = vmatpush1.msra.mxu0 %v2497
      %2499 = vmatprep.subr.mxu0 0.0
      %v2500 = vand.u32 %v241, 4294901760
      %v2501 = vsub.f32 %v241, %v2500
      %v2502 = vand.u32 %v2501, 4294901760
      %2503 = vmatpush1.msra.mxu0 %v2502
      %2504 = vmatprep.subr.mxu0 0.0
      %v2505 = vand.u32 %v240, 4294901760
      %v2506 = vsub.f32 %v240, %v2505
      %v2507 = vand.u32 %v2506, 4294901760
      %2508 = vmatpush1.msra.mxu0 %v2507
      %2509 = vmatprep.subr.mxu0 0.0
      %v2510 = vand.u32 %v239, 4294901760
      %v2511 = vsub.f32 %v239, %v2510
      %v2512 = vand.u32 %v2511, 4294901760
      %2513 = vmatpush1.msra.mxu0 %v2512
      %2514 = vmatprep.subr.mxu0 0.0
      %v2515 = vand.u32 %v238, 4294901760
      %v2516 = vsub.f32 %v238, %v2515
      %v2517 = vand.u32 %v2516, 4294901760
      %2518 = vmatpush1.msra.mxu0 %v2517
      %2519 = vmatprep.subr.mxu0 0.0
      %v2520 = vand.u32 %v237, 4294901760
      %v2521 = vsub.f32 %v237, %v2520
      %v2522 = vand.u32 %v2521, 4294901760
      %2523 = vmatpush1.msra.mxu0 %v2522
      %2524 = vmatprep.subr.mxu0 0.0
      %v2525 = vand.u32 %v236, 4294901760
      %v2526 = vsub.f32 %v236, %v2525
      %v2527 = vand.u32 %v2526, 4294901760
      %2528 = vmatpush1.msra.mxu0 %v2527
      %2529 = vmatprep.subr.mxu0 0.0
      %v2530 = vand.u32 %v235, 4294901760
      %v2531 = vsub.f32 %v235, %v2530
      %v2532 = vand.u32 %v2531, 4294901760
      %2533 = vmatpush1.msra.mxu0 %v2532
      %2534 = vmatprep.subr.mxu0 0.0
      %v2535 = vand.u32 %v234, 4294901760
      %v2536 = vsub.f32 %v234, %v2535
      %v2537 = vand.u32 %v2536, 4294901760
      %2538 = vmatpush1.msra.mxu0 %v2537
      %2539 = vmatprep.subr.mxu0 0.0
      %v2540 = vand.u32 %v233, 4294901760
      %v2541 = vsub.f32 %v233, %v2540
      %v2542 = vand.u32 %v2541, 4294901760
      %2543 = vmatpush1.msra.mxu0 %v2542
      %2544 = vmatprep.subr.mxu0 0.0
      %v2545 = vand.u32 %v232, 4294901760
      %v2546 = vsub.f32 %v232, %v2545
      %v2547 = vand.u32 %v2546, 4294901760
      %2548 = vmatpush1.msra.mxu0 %v2547
      %2549 = vmatprep.subr.mxu0 0.0
      %2550 = vmatpush2.msra.mxu0 0.0
      %2551 = vmatprep.subr.mxu0 0.0
      %2552 = vmatpush2.msra.mxu0 0.0
      %2553 = vmatprep.subr.mxu0 0.0
      %2554 = vmatpush2.msra.mxu0 0.0
      %2555 = vmatprep.subr.mxu0 0.0
      %2556 = vmatpush2.msra.mxu0 0.0
      %2557 = vmatprep.subr.mxu0 0.0
      %2558 = vmatpush2.msra.mxu0 0.0
      %2559 = vmatprep.subr.mxu0 0.0
      %2560 = vmatpush2.msra.mxu0 0.0
      %2561 = vmatprep.subr.mxu0 0.0
      %2562 = vmatpush2.msra.mxu0 0.0
      %2563 = vmatprep.subr.mxu0 0.0
      %2564 = vmatpush2.msra.mxu0 0.0
      %2565 = vmatprep.subr.mxu0 0.0
      %2566 = vmatpush2.msra.mxu0 0.0
      %2567 = vmatprep.subr.mxu0 0.0
      %2568 = vmatpush2.msra.mxu0 0.0
      %2569 = vmatprep.subr.mxu0 0.0
      %2570 = vmatpush2.msra.mxu0 0.0
      %2571 = vmatprep.subr.mxu0 0.0
      %2572 = vmatpush2.msra.mxu0 0.0
      %2573 = vmatprep.subr.mxu0 0.0
      %2574 = vmatpush2.msra.mxu0 0.0
      %2575 = vmatprep.subr.mxu0 0.0
      %2576 = vmatpush2.msra.mxu0 0.0
      %2577 = vmatprep.subr.mxu0 0.0
      %2578 = vmatpush2.msra.mxu0 0.0
      %2579 = vmatprep.subr.mxu0 0.0
      %2580 = vmatpush2.msra.mxu0 0.0
      %2581 = vmatprep.mubr.f32.mxu0 0.0
      %v2582 = vand.u32 %v1546, 4294901760
      %2583 = vmatmul.mubr.f32.gmra.mxu0 %v2582
      %v2584 = vpop.f32.mrf.mxu0
      %v2585 = vadd.f32 %v2346, %v2584
      %v2586 = vpop.f32.mrf.mxu0
      %2587 = vmatprep.mubr.f32.mxu0 0.0
      %v2588 = vand.u32 %v1547, 4294901760
      %2589 = vmatmul.mubr.f32.gmra.mxu0 %v2588
      %v2590 = vpop.f32.mrf.mxu0
      %v2591 = vadd.f32 %v2354, %v2590
      %v2592 = vpop.f32.mrf.mxu0
      %2593 = vmatprep.mubr.f32.mxu0 0.0
      %v2594 = vand.u32 %v1548, 4294901760
      %2595 = vmatmul.mubr.f32.gmra.mxu0 %v2594
      %v2596 = vpop.f32.mrf.mxu0
      %v2597 = vadd.f32 %v2362, %v2596
      %v2598 = vpop.f32.mrf.mxu0
      %2599 = vmatprep.mubr.f32.mxu0 0.0
      %v2600 = vand.u32 %v1549, 4294901760
      %2601 = vmatmul.mubr.f32.gmra.mxu0 %v2600
      %v2602 = vpop.f32.mrf.mxu0
      %v2603 = vadd.f32 %v2370, %v2602
      %v2604 = vpop.f32.mrf.mxu0
      %2605 = vmatprep.mubr.f32.mxu0 0.0
      %v2606 = vand.u32 %v1550, 4294901760
      %2607 = vmatmul.mubr.f32.gmra.mxu0 %v2606
      %v2608 = vpop.f32.mrf.mxu0
      %v2609 = vadd.f32 %v2378, %v2608
      %v2610 = vpop.f32.mrf.mxu0
      %2611 = vmatprep.mubr.f32.mxu0 0.0
      %v2612 = vand.u32 %v1551, 4294901760
      %2613 = vmatmul.mubr.f32.gmra.mxu0 %v2612
      %v2614 = vpop.f32.mrf.mxu0
      %v2615 = vadd.f32 %v2386, %v2614
      %v2616 = vpop.f32.mrf.mxu0
      %2617 = vmatprep.mubr.f32.mxu0 0.0
      %v2618 = vand.u32 %v1552, 4294901760
      %2619 = vmatmul.mubr.f32.gmra.mxu0 %v2618
      %v2620 = vpop.f32.mrf.mxu0
      %v2621 = vadd.f32 %v2394, %v2620
      %v2622 = vpop.f32.mrf.mxu0
      %2623 = vmatprep.mubr.f32.mxu0 0.0
      %v2624 = vand.u32 %v1553, 4294901760
      %2625 = vmatmul.mubr.f32.gmra.mxu0 %v2624
      %v2626 = vpop.f32.mrf.mxu0
      %v2627 = vadd.f32 %v2402, %v2626
      %v2628 = vpop.f32.mrf.mxu0
      %2629 = vmatprep.mubr.f32.mxu0 0.0
      %v2630 = vand.u32 %v1554, 4294901760
      %2631 = vmatmul.mubr.f32.gmra.mxu0 %v2630
      %v2632 = vpop.f32.mrf.mxu0
      %v2633 = vadd.f32 %v2410, %v2632
      %v2634 = vpop.f32.mrf.mxu0
      %2635 = vmatprep.mubr.f32.mxu0 0.0
      %v2636 = vand.u32 %v1555, 4294901760
      %2637 = vmatmul.mubr.f32.gmra.mxu0 %v2636
      %v2638 = vpop.f32.mrf.mxu0
      %v2639 = vadd.f32 %v2418, %v2638
      %v2640 = vpop.f32.mrf.mxu0
      %2641 = vmatprep.mubr.f32.mxu0 0.0
      %v2642 = vand.u32 %v1556, 4294901760
      %2643 = vmatmul.mubr.f32.gmra.mxu0 %v2642
      %v2644 = vpop.f32.mrf.mxu0
      %v2645 = vadd.f32 %v2426, %v2644
      %v2646 = vpop.f32.mrf.mxu0
      %2647 = vmatprep.mubr.f32.mxu0 0.0
      %v2648 = vand.u32 %v1557, 4294901760
      %2649 = vmatmul.mubr.f32.gmra.mxu0 %v2648
      %v2650 = vpop.f32.mrf.mxu0
      %v2651 = vadd.f32 %v2434, %v2650
      %v2652 = vpop.f32.mrf.mxu0
      %2653 = vmatprep.mubr.f32.mxu0 0.0
      %v2654 = vand.u32 %v1558, 4294901760
      %2655 = vmatmul.mubr.f32.gmra.mxu0 %v2654
      %v2656 = vpop.f32.mrf.mxu0
      %v2657 = vadd.f32 %v2442, %v2656
      %v2658 = vpop.f32.mrf.mxu0
      %2659 = vmatprep.mubr.f32.mxu0 0.0
      %v2660 = vand.u32 %v1559, 4294901760
      %2661 = vmatmul.mubr.f32.gmra.mxu0 %v2660
      %v2662 = vpop.f32.mrf.mxu0
      %v2663 = vadd.f32 %v2450, %v2662
      %v2664 = vpop.f32.mrf.mxu0
      %2665 = vmatprep.mubr.f32.mxu0 0.0
      %v2666 = vand.u32 %v1560, 4294901760
      %2667 = vmatmul.mubr.f32.gmra.mxu0 %v2666
      %v2668 = vpop.f32.mrf.mxu0
      %v2669 = vadd.f32 %v2458, %v2668
      %v2670 = vpop.f32.mrf.mxu0
      %2671 = vmatprep.mubr.f32.mxu0 0.0
      %v2672 = vand.u32 %v1561, 4294901760
      %2673 = vmatmul.mubr.f32.gmra.mxu0 %v2672
      %v2674 = vpop.f32.mrf.mxu0
      %v2675 = vadd.f32 %v2466, %v2674
      %v2676 = vpop.f32.mrf.mxu0
      %2677 = vdwg.mxu0
      %2678 = vmatprep.subr.mxu0 0.0
      %v2679 = vand.u32 %v247, 4294901760
      %2680 = vmatpush1.msra.mxu0 %v2679
      %2681 = vmatprep.subr.mxu0 0.0
      %v2682 = vand.u32 %v246, 4294901760
      %2683 = vmatpush1.msra.mxu0 %v2682
      %2684 = vmatprep.subr.mxu0 0.0
      %v2685 = vand.u32 %v245, 4294901760
      %2686 = vmatpush1.msra.mxu0 %v2685
      %2687 = vmatprep.subr.mxu0 0.0
      %v2688 = vand.u32 %v244, 4294901760
      %2689 = vmatpush1.msra.mxu0 %v2688
      %2690 = vmatprep.subr.mxu0 0.0
      %v2691 = vand.u32 %v243, 4294901760
      %2692 = vmatpush1.msra.mxu0 %v2691
      %2693 = vmatprep.subr.mxu0 0.0
      %v2694 = vand.u32 %v242, 4294901760
      %2695 = vmatpush1.msra.mxu0 %v2694
      %2696 = vmatprep.subr.mxu0 0.0
      %v2697 = vand.u32 %v241, 4294901760
      %2698 = vmatpush1.msra.mxu0 %v2697
      %2699 = vmatprep.subr.mxu0 0.0
      %v2700 = vand.u32 %v240, 4294901760
      %2701 = vmatpush1.msra.mxu0 %v2700
      %2702 = vmatprep.subr.mxu0 0.0
      %v2703 = vand.u32 %v239, 4294901760
      %2704 = vmatpush1.msra.mxu0 %v2703
      %2705 = vmatprep.subr.mxu0 0.0
      %v2706 = vand.u32 %v238, 4294901760
      %2707 = vmatpush1.msra.mxu0 %v2706
      %2708 = vmatprep.subr.mxu0 0.0
      %v2709 = vand.u32 %v237, 4294901760
      %2710 = vmatpush1.msra.mxu0 %v2709
      %2711 = vmatprep.subr.mxu0 0.0
      %v2712 = vand.u32 %v236, 4294901760
      %2713 = vmatpush1.msra.mxu0 %v2712
      %2714 = vmatprep.subr.mxu0 0.0
      %v2715 = vand.u32 %v235, 4294901760
      %2716 = vmatpush1.msra.mxu0 %v2715
      %2717 = vmatprep.subr.mxu0 0.0
      %v2718 = vand.u32 %v234, 4294901760
      %2719 = vmatpush1.msra.mxu0 %v2718
      %2720 = vmatprep.subr.mxu0 0.0
      %v2721 = vand.u32 %v233, 4294901760
      %2722 = vmatpush1.msra.mxu0 %v2721
      %2723 = vmatprep.subr.mxu0 0.0
      %v2724 = vand.u32 %v232, 4294901760
      %2725 = vmatpush1.msra.mxu0 %v2724
      %2726 = vmatprep.subr.mxu0 0.0
      %2727 = vmatpush2.msra.mxu0 0.0
      %2728 = vmatprep.subr.mxu0 0.0
      %2729 = vmatpush2.msra.mxu0 0.0
      %2730 = vmatprep.subr.mxu0 0.0
      %2731 = vmatpush2.msra.mxu0 0.0
      %2732 = vmatprep.subr.mxu0 0.0
      %2733 = vmatpush2.msra.mxu0 0.0
      %2734 = vmatprep.subr.mxu0 0.0
      %2735 = vmatpush2.msra.mxu0 0.0
      %2736 = vmatprep.subr.mxu0 0.0
      %2737 = vmatpush2.msra.mxu0 0.0
      %2738 = vmatprep.subr.mxu0 0.0
      %2739 = vmatpush2.msra.mxu0 0.0
      %2740 = vmatprep.subr.mxu0 0.0
      %2741 = vmatpush2.msra.mxu0 0.0
      %2742 = vmatprep.subr.mxu0 0.0
      %2743 = vmatpush2.msra.mxu0 0.0
      %2744 = vmatprep.subr.mxu0 0.0
      %2745 = vmatpush2.msra.mxu0 0.0
      %2746 = vmatprep.subr.mxu0 0.0
      %2747 = vmatpush2.msra.mxu0 0.0
      %2748 = vmatprep.subr.mxu0 0.0
      %2749 = vmatpush2.msra.mxu0 0.0
      %2750 = vmatprep.subr.mxu0 0.0
      %2751 = vmatpush2.msra.mxu0 0.0
      %2752 = vmatprep.subr.mxu0 0.0
      %2753 = vmatpush2.msra.mxu0 0.0
      %2754 = vmatprep.subr.mxu0 0.0
      %2755 = vmatpush2.msra.mxu0 0.0
      %2756 = vmatprep.subr.mxu0 0.0
      %2757 = vmatpush2.msra.mxu0 0.0
      %2758 = vmatprep.mubr.f32.mxu0 0.0
      %v2759 = vand.u32 %v1546, 4294901760
      %2760 = vmatmul.mubr.f32.gmra.mxu0 %v2759
      %v2761 = vpop.f32.mrf.mxu0
      %v2762 = vadd.f32 %v2585, %v2761
      %v2763 = vpop.f32.mrf.mxu0
      %2764 = vmatprep.mubr.f32.mxu0 0.0
      %v2765 = vand.u32 %v1547, 4294901760
      %2766 = vmatmul.mubr.f32.gmra.mxu0 %v2765
      %v2767 = vpop.f32.mrf.mxu0
      %v2768 = vadd.f32 %v2591, %v2767
      %v2769 = vpop.f32.mrf.mxu0
      %2770 = vmatprep.mubr.f32.mxu0 0.0
      %v2771 = vand.u32 %v1548, 4294901760
      %2772 = vmatmul.mubr.f32.gmra.mxu0 %v2771
      %v2773 = vpop.f32.mrf.mxu0
      %v2774 = vadd.f32 %v2597, %v2773
      %v2775 = vpop.f32.mrf.mxu0
      %2776 = vmatprep.mubr.f32.mxu0 0.0
      %v2777 = vand.u32 %v1549, 4294901760
      %2778 = vmatmul.mubr.f32.gmra.mxu0 %v2777
      %v2779 = vpop.f32.mrf.mxu0
      %v2780 = vadd.f32 %v2603, %v2779
      %v2781 = vpop.f32.mrf.mxu0
      %2782 = vmatprep.mubr.f32.mxu0 0.0
      %v2783 = vand.u32 %v1550, 4294901760
      %2784 = vmatmul.mubr.f32.gmra.mxu0 %v2783
      %v2785 = vpop.f32.mrf.mxu0
      %v2786 = vadd.f32 %v2609, %v2785
      %v2787 = vpop.f32.mrf.mxu0
      %2788 = vmatprep.mubr.f32.mxu0 0.0
      %v2789 = vand.u32 %v1551, 4294901760
      %2790 = vmatmul.mubr.f32.gmra.mxu0 %v2789
      %v2791 = vpop.f32.mrf.mxu0
      %v2792 = vadd.f32 %v2615, %v2791
      %v2793 = vpop.f32.mrf.mxu0
      %2794 = vmatprep.mubr.f32.mxu0 0.0
      %v2795 = vand.u32 %v1552, 4294901760
      %2796 = vmatmul.mubr.f32.gmra.mxu0 %v2795
      %v2797 = vpop.f32.mrf.mxu0
      %v2798 = vadd.f32 %v2621, %v2797
      %v2799 = vpop.f32.mrf.mxu0
      %2800 = vmatprep.mubr.f32.mxu0 0.0
      %v2801 = vand.u32 %v1553, 4294901760
      %2802 = vmatmul.mubr.f32.gmra.mxu0 %v2801
      %v2803 = vpop.f32.mrf.mxu0
      %v2804 = vadd.f32 %v2627, %v2803
      %v2805 = vpop.f32.mrf.mxu0
      %2806 = vmatprep.mubr.f32.mxu0 0.0
      %v2807 = vand.u32 %v1554, 4294901760
      %2808 = vmatmul.mubr.f32.gmra.mxu0 %v2807
      %v2809 = vpop.f32.mrf.mxu0
      %v2810 = vadd.f32 %v2633, %v2809
      %v2811 = vpop.f32.mrf.mxu0
      %2812 = vmatprep.mubr.f32.mxu0 0.0
      %v2813 = vand.u32 %v1555, 4294901760
      %2814 = vmatmul.mubr.f32.gmra.mxu0 %v2813
      %v2815 = vpop.f32.mrf.mxu0
      %v2816 = vadd.f32 %v2639, %v2815
      %v2817 = vpop.f32.mrf.mxu0
      %2818 = vmatprep.mubr.f32.mxu0 0.0
      %v2819 = vand.u32 %v1556, 4294901760
      %2820 = vmatmul.mubr.f32.gmra.mxu0 %v2819
      %v2821 = vpop.f32.mrf.mxu0
      %v2822 = vadd.f32 %v2645, %v2821
      %v2823 = vpop.f32.mrf.mxu0
      %2824 = vmatprep.mubr.f32.mxu0 0.0
      %v2825 = vand.u32 %v1557, 4294901760
      %2826 = vmatmul.mubr.f32.gmra.mxu0 %v2825
      %v2827 = vpop.f32.mrf.mxu0
      %v2828 = vadd.f32 %v2651, %v2827
      %v2829 = vpop.f32.mrf.mxu0
      %2830 = vmatprep.mubr.f32.mxu0 0.0
      %v2831 = vand.u32 %v1558, 4294901760
      %2832 = vmatmul.mubr.f32.gmra.mxu0 %v2831
      %v2833 = vpop.f32.mrf.mxu0
      %v2834 = vadd.f32 %v2657, %v2833
      %v2835 = vpop.f32.mrf.mxu0
      %2836 = vmatprep.mubr.f32.mxu0 0.0
      %v2837 = vand.u32 %v1559, 4294901760
      %2838 = vmatmul.mubr.f32.gmra.mxu0 %v2837
      %v2839 = vpop.f32.mrf.mxu0
      %v2840 = vadd.f32 %v2663, %v2839
      %v2841 = vpop.f32.mrf.mxu0
      %2842 = vmatprep.mubr.f32.mxu0 0.0
      %v2843 = vand.u32 %v1560, 4294901760
      %2844 = vmatmul.mubr.f32.gmra.mxu0 %v2843
      %v2845 = vpop.f32.mrf.mxu0
      %v2846 = vadd.f32 %v2669, %v2845
      %v2847 = vpop.f32.mrf.mxu0
      %2848 = vmatprep.mubr.f32.mxu0 0.0
      %v2849 = vand.u32 %v1561, 4294901760
      %2850 = vmatmul.mubr.f32.gmra.mxu0 %v2849
      %v2851 = vpop.f32.mrf.mxu0
      %v2852 = vadd.f32 %v2675, %v2851
      %v2853 = vpop.f32.mrf.mxu0
      %2854 = vdwg.mxu0
      %vm2855 = vcmask 130048
      %2856 = vst.msk [vmem:[%s226] sm:$0xff] %vm2855, %v2762
      %2857 = vst.msk [vmem:[%s226 + $0x8] sm:$0xff] %vm2855, %v2768
      %2858 = vst.msk [vmem:[%s226 + $0x10] sm:$0xff] %vm2855, %v2774
      %2859 = vst.msk [vmem:[%s226 + $0x18] sm:$0xff] %vm2855, %v2780
      %2860 = vst.msk [vmem:[%s226 + $0x20] sm:$0xff] %vm2855, %v2786
      %2861 = vst.msk [vmem:[%s226 + $0x28] sm:$0xff] %vm2855, %v2792
      %2862 = vst.msk [vmem:[%s226 + $0x30] sm:$0xff] %vm2855, %v2798
      %2863 = vst.msk [vmem:[%s226 + $0x38] sm:$0xff] %vm2855, %v2804
      %2864 = vst.msk [vmem:[%s226 + $0x40] sm:$0xff] %vm2855, %v2810
      %2865 = vst.msk [vmem:[%s226 + $0x48] sm:$0xff] %vm2855, %v2816
      %2866 = vst.msk [vmem:[%s226 + $0x50] sm:$0xff] %vm2855, %v2822
      %2867 = vst.msk [vmem:[%s226 + $0x58] sm:$0xff] %vm2855, %v2828
      %2868 = vst.msk [vmem:[%s226 + $0x60] sm:$0xff] %vm2855, %v2834
      %2869 = vst.msk [vmem:[%s226 + $0x68] sm:$0xff] %vm2855, %v2840
      %2870 = vst.msk [vmem:[%s226 + $0x70] sm:$0xff] %vm2855, %v2846
      %2871 = vst.msk [vmem:[%s226 + $0x78] sm:$0xff] %vm2855, %v2852
      %s2872 = smul.u32 16, %s16
      %p2873 = scmp.lt.s32.totalorder %s2872, 31
      %s2874 = scalar_select %p2873, %s2872, 31
      %s2875 = smul.addr %s2874, 8
      %s2876 = scalar_lea.vmem %s5, %s2875
      // Predicated region
      $region41: #{_mlp_forward.1} parent=39 // pred_check
        %p2877 = pneg %p144
      $region42: #{_mlp_forward.1} parent=39 // pred_check_branch
        %2879 = sbr.rel (%p2877) target = $region44
      $region43: #{_mlp_forward.1} parent=39 // pred_region
        %s2880 = smul.u32 16, %s16
      $region44: #{_mlp_forward.1} parent=39 // pred_fallthru
        _
    $region40: #{_mlp_forward.1} parent=5 // pred_fallthru
      _
    %p2881 = scmp.le.s32.totalorder 2, %s11
    // Predicated region
    $region45: #{_mlp_forward.1} parent=5 // pred_check
      %p2882 = pneg %p2881
    $region46: #{_mlp_forward.1} parent=5 // pred_check_branch
      %2884 = sbr.rel (%p2882) target = $region48
    $region47: #{_mlp_forward.1} parent=5 // pred_region
      %s2885 = ssub.s32 %s11, 2
      // Predicated region
      $region49: #{_mlp_forward.1} parent=47 // pred_check
        %p2886 = pneg %p150
      $region50: #{_mlp_forward.1} parent=47 // pred_check_branch
        %2888 = sbr.rel (%p2886) target = $region52
      $region51: #{_mlp_forward.1} parent=47 // pred_region
        %s2889 = smul.u32 16, %s17
        %p2890 = scmp.lt.s32.totalorder %s2889, 31
        %s2891 = scalar_select %p2890, %s2889, 31
        %s2892 = smul.addr %s2891, 8
        %s2893 = scalar_lea.vmem %s5, %s2892
      $region52: #{_mlp_forward.1} parent=47 // pred_fallthru
        _
    $region48: #{_mlp_forward.1} parent=5 // pred_fallthru
      _
  $region6: #{_mlp_forward.1} parent=0 // loop_footer
    %s15 = sadd.s32 1, %s11
  $region7: #{_mlp_forward.1} parent=0 // loop_footer_branch
    %10 = sbr.rel target = $region3
  $region8: #{_mlp_forward.1} parent=0 // loop_exit
    _

// kernel: _mlp_forward.1
$region0: #{_mlp_forward.1}
  #allocation0 [shape = 'u32[]', space=smem, size = 0x4, offset = 0x4, fixed_abs, tag = 'smem constant byte address 0x4 - core index']
  #allocation1 [shape = 'u32[144,128]{1,0:T(1,128)}', space=vmem, size = 0x12000, scoped, tag = 'internal scratch']
  %s0 = inlined_call_operand.vmem [shape: f32[256,32], index: 0, kind: input, shape index: {}]
  %s1 = inlined_call_operand.vmem [shape: f32[32,128], index: 1, kind: input, shape index: {}]
  %s2 = inlined_call_operand.vmem [shape: f32[1,128], index: 2, kind: input, shape index: {}]
  %s3 = inlined_call_operand.vmem [shape: f32[128,16], index: 3, kind: input, shape index: {}]
  %s4 = inlined_call_operand.vmem [shape: f32[1,16], index: 4, kind: input, shape index: {}]
  %s5 = inlined_call_operand.vmem [shape: f32[256,16], index: 5, kind: output, shape index: {}]
  %s6 = sld [smem:[#allocation0]]
  $region53: #{_mlp_forward.1} parent=0
    _
  %s8 = ssub.s32 1, %s6
  %s9 = scalar_select 0, %s8, %s6
  loop: start=0, step=1, limit=4
  $region2: #{_mlp_forward.1} parent=0 // loop_pre_header
    _
  $region3: #{_mlp_forward.1} parent=0 // loop_header
    %s11 = sphi 0, %s15
    %p12 = scmp.ge.s32.totalorder %s11, 4
    %s21 = sphi 0, %s23
    %s24 = sphi 0, %s21
    %s25 = sphi 0, %s24
    %s41 = sphi 0, %s25
    %s45 = sphi 0, %s45
    %s47 = sphi 0, %s45
    %s48 = sphi 0, %s47
    %s62 = sphi 0, %s48
    %s66 = sphi 0, %s66
    %s68 = sphi 0, %s66
    %s69 = sphi 0, %s68
    %s83 = sphi 0, %s69
    %s87 = sphi 0, %s87
    %s89 = sphi 0, %s87
    %s90 = sphi 0, %s89
    %s104 = sphi 0, %s90
    %s108 = sphi 0, %s108
    %s110 = sphi 0, %s108
    %s111 = sphi 0, %s110
    %s125 = sphi 0, %s111
    %s131 = sphi 0, %s133
    %s134 = sphi 0, %s131
    %s135 = sphi 0, %s134
    %s151 = sphi 0, %s135
  $region4: #{_mlp_forward.1} parent=0 // loop_header_branch
    %14 = sbr.rel (%p12) target = $region8
  $region5: #{_mlp_forward.1} parent=0 // loop_body
    %s16 = ssub.s32 %s11, 1
    %s17 = ssub.s32 %s11, 2
    %s18 = sadd.s32 %s11, 1
    %s19 = ssub.s32 %s11, %s18
    %p20 = scmp.eq.s32.totalorder %s19, 0
    %s22 = sadd.s32 %s21, 1
    %s23 = scalar_select %p20, %s21, %s22
    %p26 = pneg %p20
    %p27 = scmp.eq.s32.totalorder %s11, 1
    %p28 = por %p26, %p27
    %p29 = scmp.ne.s32.totalorder %s21, %s24
    %p30 = scmp.eq.s32.totalorder %s11, 0
    %p31 = por %p29, %p30
    %p32 = scmp.ne.s32.totalorder %s21, %s24
    %p33 = scmp.eq.s32.totalorder %s16, 1
    %p34 = por %p32, %p33
    %p35 = scmp.ne.s32.totalorder %s24, %s25
    %p36 = scmp.eq.s32.totalorder %s16, 0
    %p37 = por %p35, %p36
    %p38 = scmp.ne.s32.totalorder %s24, %s25
    %p39 = scmp.eq.s32.totalorder %s17, 1
    %p40 = por %p38, %p39
    %p42 = scmp.ne.s32.totalorder %s25, %s41
    %p43 = scmp.eq.s32.totalorder %s17, 0
    %p44 = por %p42, %p43
    %s46 = sadd.s32 %s45, 1
    %p49 = scmp.eq.s32.totalorder %s11, 1
    %p50 = scmp.ne.s32.totalorder %s45, %s47
    %p51 = scmp.eq.s32.totalorder %s11, 0
    %p52 = por %p50, %p51
    %p53 = scmp.ne.s32.totalorder %s45, %s47
    %p54 = scmp.eq.s32.totalorder %s16, 1
    %p55 = por %p53, %p54
    %p56 = scmp.ne.s32.totalorder %s47, %s48
    %p57 = scmp.eq.s32.totalorder %s16, 0
    %p58 = por %p56, %p57
    %p59 = scmp.ne.s32.totalorder %s47, %s48
    %p60 = scmp.eq.s32.totalorder %s17, 1
    %p61 = por %p59, %p60
    %p63 = scmp.ne.s32.totalorder %s48, %s62
    %p64 = scmp.eq.s32.totalorder %s17, 0
    %p65 = por %p63, %p64
    %s67 = sadd.s32 %s66, 1
    %p70 = scmp.eq.s32.totalorder %s11, 1
    %p71 = scmp.ne.s32.totalorder %s66, %s68
    %p72 = scmp.eq.s32.totalorder %s11, 0
    %p73 = por %p71, %p72
    %p74 = scmp.ne.s32.totalorder %s66, %s68
    %p75 = scmp.eq.s32.totalorder %s16, 1
    %p76 = por %p74, %p75
    %p77 = scmp.ne.s32.totalorder %s68, %s69
    %p78 = scmp.eq.s32.totalorder %s16, 0
    %p79 = por %p77, %p78
    %p80 = scmp.ne.s32.totalorder %s68, %s69
    %p81 = scmp.eq.s32.totalorder %s17, 1
    %p82 = por %p80, %p81
    %p84 = scmp.ne.s32.totalorder %s69, %s83
    %p85 = scmp.eq.s32.totalorder %s17, 0
    %p86 = por %p84, %p85
    %s88 = sadd.s32 %s87, 1
    %p91 = scmp.eq.s32.totalorder %s11, 1
    %p92 = scmp.ne.s32.totalorder %s87, %s89
    %p93 = scmp.eq.s32.totalorder %s11, 0
    %p94 = por %p92, %p93
    %p95 = scmp.ne.s32.totalorder %s87, %s89
    %p96 = scmp.eq.s32.totalorder %s16, 1
    %p97 = por %p95, %p96
    %p98 = scmp.ne.s32.totalorder %s89, %s90
    %p99 = scmp.eq.s32.totalorder %s16, 0
    %p100 = por %p98, %p99
    %p101 = scmp.ne.s32.totalorder %s89, %s90
    %p102 = scmp.eq.s32.totalorder %s17, 1
    %p103 = por %p101, %p102
    %p105 = scmp.ne.s32.totalorder %s90, %s104
    %p106 = scmp.eq.s32.totalorder %s17, 0
    %p107 = por %p105, %p106
    %s109 = sadd.s32 %s108, 1
    %p112 = scmp.eq.s32.totalorder %s11, 1
    %p113 = scmp.ne.s32.totalorder %s108, %s110
    %p114 = scmp.eq.s32.totalorder %s11, 0
    %p115 = por %p113, %p114
    %p116 = scmp.ne.s32.totalorder %s108, %s110
    %p117 = scmp.eq.s32.totalorder %s16, 1
    %p118 = por %p116, %p117
    %p119 = scmp.ne.s32.totalorder %s110, %s111
    %p120 = scmp.eq.s32.totalorder %s16, 0
    %p121 = por %p119, %p120
    %p122 = scmp.ne.s32.totalorder %s110, %s111
    %p123 = scmp.eq.s32.totalorder %s17, 1
    %p124 = por %p122, %p123
    %p126 = scmp.ne.s32.totalorder %s111, %s125
    %p127 = scmp.eq.s32.totalorder %s17, 0
    %p128 = por %p126, %p127
    %s129 = ssub.s32 %s11, %s18
    %p130 = scmp.eq.s32.totalorder %s129, 0
    %s132 = sadd.s32 %s131, 1
    %s133 = scalar_select %p130, %s131, %s132
    %p136 = pneg %p130
    %p137 = scmp.eq.s32.totalorder %s11, 1
    %p138 = por %p136, %p137
    %p139 = scmp.ne.s32.totalorder %s131, %s134
    %p140 = scmp.eq.s32.totalorder %s11, 0
    %p141 = por %p139, %p140
    %p142 = scmp.ne.s32.totalorder %s131, %s134
    %p143 = scmp.eq.s32.totalorder %s16, 1
    %p144 = por %p142, %p143
    %p145 = scmp.ne.s32.totalorder %s134, %s135
    %p146 = scmp.eq.s32.totalorder %s16, 0
    %p147 = por %p145, %p146
    %p148 = scmp.ne.s32.totalorder %s134, %s135
    %p149 = scmp.eq.s32.totalorder %s17, 1
    %p150 = por %p148, %p149
    %p152 = scmp.ne.s32.totalorder %s135, %s151
    %p153 = scmp.eq.s32.totalorder %s17, 0
    %p154 = por %p152, %p153
    %p155 = scmp.le.s32.totalorder 1, %s11
    %p156 = scmp.lt.s32.totalorder %s11, 3
    %p157 = pnand %p155, %p156
    %p158 = pneg %p157
    // Predicated region
    $region9: #{_mlp_forward.1} parent=5 // pred_check
      _
    $region10: #{_mlp_forward.1} parent=5 // pred_check_branch
      %160 = sbr.rel (%p157) target = $region12
    $region11: #{_mlp_forward.1} parent=5 // pred_region
      %s161 = ssub.s32 %s11, 1
      // Predicated region
      $region13: #{_mlp_forward.1} parent=11 // pred_check
        %p162 = pneg %p58
      $region14: #{_mlp_forward.1} parent=11 // pred_check_branch
        %164 = sbr.rel (%p162) target = $region16
      $region15: #{_mlp_forward.1} parent=11 // pred_region
        _
      $region16: #{_mlp_forward.1} parent=11 // pred_fallthru
        _
      // Predicated region
      $region17: #{_mlp_forward.1} parent=11 // pred_check
        %p165 = pneg %p79
      $region18: #{_mlp_forward.1} parent=11 // pred_check_branch
        %167 = sbr.rel (%p165) target = $region20
      $region19: #{_mlp_forward.1} parent=11 // pred_region
        _
      $region20: #{_mlp_forward.1} parent=11 // pred_fallthru
        _
      // Predicated region
      $region21: #{_mlp_forward.1} parent=11 // pred_check
        %p168 = pneg %p100
      $region22: #{_mlp_forward.1} parent=11 // pred_check_branch
        %170 = sbr.rel (%p168) target = $region24
      $region23: #{_mlp_forward.1} parent=11 // pred_region
        _
      $region24: #{_mlp_forward.1} parent=11 // pred_fallthru
        _
      // Predicated region
      $region25: #{_mlp_forward.1} parent=11 // pred_check
        %p171 = pneg %p121
      $region26: #{_mlp_forward.1} parent=11 // pred_check_branch
        %173 = sbr.rel (%p171) target = $region28
      $region27: #{_mlp_forward.1} parent=11 // pred_region
        _
      $region28: #{_mlp_forward.1} parent=11 // pred_fallthru
        _
    $region12: #{_mlp_forward.1} parent=5 // pred_fallthru
      _
    %p174 = scmp.lt.s32.totalorder %s11, 2
    // Predicated region
    $region29: #{_mlp_forward.1} parent=5 // pred_check
      %p175 = pneg %p174
    $region30: #{_mlp_forward.1} parent=5 // pred_check_branch
      %177 = sbr.rel (%p175) target = $region32
    $region31: #{_mlp_forward.1} parent=5 // pred_region
      // Predicated region
      $region33: #{_mlp_forward.1} parent=31 // pred_check
        %p178 = pneg %p31
      $region34: #{_mlp_forward.1} parent=31 // pred_check_branch
        %180 = sbr.rel (%p178) target = $region36
      $region35: #{_mlp_forward.1} parent=31 // pred_region
        %s181 = smul.u32 16, %s11
        %p182 = scmp.lt.s32.totalorder %s181, 31
        %s183 = scalar_select %p182, %s181, 31
        %s184 = smul.addr %s183, 8
        %s185 = scalar_lea.vmem %s0, %s184
        %s186 = smul.u32 16, %s11
      $region36: #{_mlp_forward.1} parent=31 // pred_fallthru
        _
    $region32: #{_mlp_forward.1} parent=5 // pred_fallthru
      _
    %p187 = scmp.le.s32.totalorder 1, %s11
    %p188 = scmp.lt.s32.totalorder %s11, 3
    %p189 = pnand %p187, %p188
    %p190 = pneg %p189
    // Predicated region
    $region37: #{_mlp_forward.1} parent=5 // pred_check
      _
    $region38: #{_mlp_forward.1} parent=5 // pred_check_branch
      %192 = sbr.rel (%p189) target = $region40
    $region39: #{_mlp_forward.1} parent=5 // pred_region
      %s193 = ssub.s32 %s11, 1
      %s194 = smul.u32 16, %s16
      %p195 = scmp.lt.s32.totalorder %s194, 31
      %s196 = scalar_select %p195, %s194, 31
      %s197 = smul.addr %s196, 8
      %s198 = scalar_lea.vmem %s0, %s197
      %p199 = pneg %p37
      %p200 = pneg %p34
      %p201 = pneg %p58
      %p202 = pneg %p55
      %p203 = pneg %p79
      %p204 = pneg %p76
      %p205 = pneg %p100
      %p206 = pneg %p97
      %p207 = pneg %p121
      %p208 = pneg %p118
      %p209 = pneg %p147
      %p210 = pneg %p144
      %s211 = smul.u32 16, %s16
      %p212 = scmp.lt.s32.totalorder %s211, 31
      %s213 = scalar_select %p212, %s211, 31
      %s214 = smul.addr %s213, 8
      %s215 = scalar_lea.vmem %s5, %s214
      %s216 = smul.u32 16, %s16
      %p217 = scmp.lt.s32.totalorder %s216, 31
      %s218 = scalar_select %p217, %s216, 31
      %s219 = smul.addr %s218, 8
      %s220 = scalar_lea.vmem %s0, %s219
      %s221 = smul.u32 16, %s16
      %s222 = smul.u32 16, %s16
      %p223 = scmp.lt.s32.totalorder %s222, 31
      %s224 = scalar_select %p223, %s222, 31
      %s225 = smul.addr %s224, 8
      %s226 = scalar_lea.vmem %s5, %s225
      %s227 = smul.u32 16, %s16
      %v228 = vld [vmem:[%s1] sm:$0xff]
      %v229 = vld [vmem:[%s1 + $0x8] sm:$0xff]
      %v230 = vld [vmem:[%s1 + $0x10] sm:$0xff]
      %v231 = vld [vmem:[%s1 + $0x18] sm:$0xff]
      %v232 = vld [vmem:[%s3] sm:$0xff]
      %v233 = vld [vmem:[%s3 + $0x8] sm:$0xff]
      %v234 = vld [vmem:[%s3 + $0x10] sm:$0xff]
      %v235 = vld [vmem:[%s3 + $0x18] sm:$0xff]
      %v236 = vld [vmem:[%s3 + $0x20] sm:$0xff]
      %v237 = vld [vmem:[%s3 + $0x28] sm:$0xff]
      %v238 = vld [vmem:[%s3 + $0x30] sm:$0xff]
      %v239 = vld [vmem:[%s3 + $0x38] sm:$0xff]
      %v240 = vld [vmem:[%s3 + $0x40] sm:$0xff]
      %v241 = vld [vmem:[%s3 + $0x48] sm:$0xff]
      %v242 = vld [vmem:[%s3 + $0x50] sm:$0xff]
      %v243 = vld [vmem:[%s3 + $0x58] sm:$0xff]
      %v244 = vld [vmem:[%s3 + $0x60] sm:$0xff]
      %v245 = vld [vmem:[%s3 + $0x68] sm:$0xff]
      %v246 = vld [vmem:[%s3 + $0x70] sm:$0xff]
      %v247 = vld [vmem:[%s3 + $0x78] sm:$0xff]
      %v248 = vld [vmem:[%s220] sm:$0xff]
      %v249 = vld [vmem:[%s220 + $0x8] sm:$0xff]
      %v250 = vld [vmem:[%s220 + $0x10] sm:$0xff]
      %v251 = vld [vmem:[%s220 + $0x18] sm:$0xff]
      %v252 = vld [vmem:[%s220 + $0x20] sm:$0xff]
      %v253 = vld [vmem:[%s220 + $0x28] sm:$0xff]
      %v254 = vld [vmem:[%s220 + $0x30] sm:$0xff]
      %v255 = vld [vmem:[%s220 + $0x38] sm:$0xff]
      %v256 = vld [vmem:[%s220 + $0x40] sm:$0xff]
      %v257 = vld [vmem:[%s220 + $0x48] sm:$0xff]
      %v258 = vld [vmem:[%s220 + $0x50] sm:$0xff]
      %v259 = vld [vmem:[%s220 + $0x58] sm:$0xff]
      %v260 = vld [vmem:[%s220 + $0x60] sm:$0xff]
      %v261 = vld [vmem:[%s220 + $0x68] sm:$0xff]
      %v262 = vld [vmem:[%s220 + $0x70] sm:$0xff]
      %v263 = vld [vmem:[%s220 + $0x78] sm:$0xff]
      %v264 = vld [vmem:[%s2] sm:$0x1]
      %v266 = vlaneseq
      %v267 = vshrl.u32 %v266, 7
      %v268 = vsub.s32 0, %v267
      %v269 = vrot.slane %v264, %v268
      %vm271 = vcmask 261120
      %v273 = vsel %vm271, %v248, 0
      %v276 = vsel %vm271, %v249, 0
      %v279 = vsel %vm271, %v250, 0
      %v282 = vsel %vm271, %v251, 0
      %v285 = vsel %vm271, %v252, 0
      %v288 = vsel %vm271, %v253, 0
      %v291 = vsel %vm271, %v254, 0
      %v294 = vsel %vm271, %v255, 0
      %v297 = vsel %vm271, %v256, 0
      %v300 = vsel %vm271, %v257, 0
      %v303 = vsel %vm271, %v258, 0
      %v306 = vsel %vm271, %v259, 0
      %v309 = vsel %vm271, %v260, 0
      %v312 = vsel %vm271, %v261, 0
      %v315 = vsel %vm271, %v262, 0
      %v318 = vsel %vm271, %v263, 0
      %320 = vmatprep.subr.mxu0 0.0
      %321 = vmatpush1.msra.mxu0 0.0
      %322 = vmatprep.subr.mxu0 0.0
      %323 = vmatpush1.msra.mxu0 0.0
      %324 = vmatprep.subr.mxu0 0.0
      %325 = vmatpush1.msra.mxu0 0.0
      %326 = vmatprep.subr.mxu0 0.0
      %327 = vmatpush1.msra.mxu0 0.0
      %328 = vmatprep.subr.mxu0 0.0
      %329 = vmatpush1.msra.mxu0 0.0
      %330 = vmatprep.subr.mxu0 0.0
      %331 = vmatpush1.msra.mxu0 0.0
      %332 = vmatprep.subr.mxu0 0.0
      %333 = vmatpush1.msra.mxu0 0.0
      %334 = vmatprep.subr.mxu0 0.0
      %335 = vmatpush1.msra.mxu0 0.0
      %336 = vmatprep.subr.mxu0 0.0
      %337 = vmatpush1.msra.mxu0 0.0
      %338 = vmatprep.subr.mxu0 0.0
      %339 = vmatpush1.msra.mxu0 0.0
      %340 = vmatprep.subr.mxu0 0.0
      %341 = vmatpush1.msra.mxu0 0.0
      %342 = vmatprep.subr.mxu0 0.0
      %343 = vmatpush1.msra.mxu0 0.0
      %344 = vmatprep.subr.mxu0 0.0
      %v345 = vand.u32 %v231, 4294901760
      %346 = vmatpush1.msra.mxu0 %v345
      %347 = vmatprep.subr.mxu0 0.0
      %v348 = vand.u32 %v230, 4294901760
      %349 = vmatpush1.msra.mxu0 %v348
      %350 = vmatprep.subr.mxu0 0.0
      %v351 = vand.u32 %v229, 4294901760
      %352 = vmatpush1.msra.mxu0 %v351
      %353 = vmatprep.subr.mxu0 0.0
      %v354 = vand.u32 %v228, 4294901760
      %355 = vmatpush1.msra.mxu0 %v354
      %356 = vmatprep.subr.mxu0 0.0
      %357 = vmatpush2.msra.mxu0 0.0
      %358 = vmatprep.subr.mxu0 0.0
      %359 = vmatpush2.msra.mxu0 0.0
      %360 = vmatprep.subr.mxu0 0.0
      %361 = vmatpush2.msra.mxu0 0.0
      %362 = vmatprep.subr.mxu0 0.0
      %363 = vmatpush2.msra.mxu0 0.0
      %364 = vmatprep.subr.mxu0 0.0
      %365 = vmatpush2.msra.mxu0 0.0
      %366 = vmatprep.subr.mxu0 0.0
      %367 = vmatpush2.msra.mxu0 0.0
      %368 = vmatprep.subr.mxu0 0.0
      %369 = vmatpush2.msra.mxu0 0.0
      %370 = vmatprep.subr.mxu0 0.0
      %371 = vmatpush2.msra.mxu0 0.0
      %372 = vmatprep.subr.mxu0 0.0
      %373 = vmatpush2.msra.mxu0 0.0
      %374 = vmatprep.subr.mxu0 0.0
      %375 = vmatpush2.msra.mxu0 0.0
      %376 = vmatprep.subr.mxu0 0.0
      %377 = vmatpush2.msra.mxu0 0.0
      %378 = vmatprep.subr.mxu0 0.0
      %379 = vmatpush2.msra.mxu0 0.0
      %380 = vmatprep.subr.mxu0 0.0
      %381 = vmatpush2.msra.mxu0 0.0
      %382 = vmatprep.subr.mxu0 0.0
      %383 = vmatpush2.msra.mxu0 0.0
      %384 = vmatprep.subr.mxu0 0.0
      %385 = vmatpush2.msra.mxu0 0.0
      %386 = vmatprep.subr.mxu0 0.0
      %387 = vmatpush2.msra.mxu0 0.0
      %388 = vmatprep.mubr.f32.mxu0 0.0
      %v389 = vand.u32 %v273, 4294901760
      %v390 = vsub.f32 %v273, %v389
      %v391 = vand.u32 %v390, 4294901760
      %v392 = vsub.f32 %v390, %v391
      %v393 = vand.u32 %v392, 4294901760
      %394 = vmatmul.mubr.f32.gmra.mxu0 %v393
      %v395 = vpop.f32.mrf.mxu0
      %v396 = vadd.f32 %v269, %v395
      %v397 = vpop.f32.mrf.mxu0
      %398 = vmatprep.mubr.f32.mxu0 0.0
      %v399 = vand.u32 %v276, 4294901760
      %v400 = vsub.f32 %v276, %v399
      %v401 = vand.u32 %v400, 4294901760
      %v402 = vsub.f32 %v400, %v401
      %v403 = vand.u32 %v402, 4294901760
      %404 = vmatmul.mubr.f32.gmra.mxu0 %v403
      %v405 = vpop.f32.mrf.mxu0
      %v406 = vadd.f32 %v269, %v405
      %v407 = vpop.f32.mrf.mxu0
      %408 = vmatprep.mubr.f32.mxu0 0.0
      %v409 = vand.u32 %v279, 4294901760
      %v410 = vsub.f32 %v279, %v409
      %v411 = vand.u32 %v410, 4294901760
      %v412 = vsub.f32 %v410, %v411
      %v413 = vand.u32 %v412, 4294901760
      %414 = vmatmul.mubr.f32.gmra.mxu0 %v413
      %v415 = vpop.f32.mrf.mxu0
      %v416 = vadd.f32 %v269, %v415
      %v417 = vpop.f32.mrf.mxu0
      %418 = vmatprep.mubr.f32.mxu0 0.0
      %v419 = vand.u32 %v282, 4294901760
      %v420 = vsub.f32 %v282, %v419
      %v421 = vand.u32 %v420, 4294901760
      %v422 = vsub.f32 %v420, %v421
      %v423 = vand.u32 %v422, 4294901760
      %424 = vmatmul.mubr.f32.gmra.mxu0 %v423
      %v425 = vpop.f32.mrf.mxu0
      %v426 = vadd.f32 %v269, %v425
      %v427 = vpop.f32.mrf.mxu0
      %428 = vmatprep.mubr.f32.mxu0 0.0
      %v429 = vand.u32 %v285, 4294901760
      %v430 = vsub.f32 %v285, %v429
      %v431 = vand.u32 %v430, 4294901760
      %v432 = vsub.f32 %v430, %v431
      %v433 = vand.u32 %v432, 4294901760
      %434 = vmatmul.mubr.f32.gmra.mxu0 %v433
      %v435 = vpop.f32.mrf.mxu0
      %v436 = vadd.f32 %v269, %v435
      %v437 = vpop.f32.mrf.mxu0
      %438 = vmatprep.mubr.f32.mxu0 0.0
      %v439 = vand.u32 %v288, 4294901760
      %v440 = vsub.f32 %v288, %v439
      %v441 = vand.u32 %v440, 4294901760
      %v442 = vsub.f32 %v440, %v441
      %v443 = vand.u32 %v442, 4294901760
      %444 = vmatmul.mubr.f32.gmra.mxu0 %v443
      %v445 = vpop.f32.mrf.mxu0
      %v446 = vadd.f32 %v269, %v445
      %v447 = vpop.f32.mrf.mxu0
      %448 = vmatprep.mubr.f32.mxu0 0.0
      %v449 = vand.u32 %v291, 4294901760
      %v450 = vsub.f32 %v291, %v449
      %v451 = vand.u32 %v450, 4294901760
      %v452 = vsub.f32 %v450, %v451
      %v453 = vand.u32 %v452, 4294901760
      %454 = vmatmul.mubr.f32.gmra.mxu0 %v453
      %v455 = vpop.f32.mrf.mxu0
      %v456 = vadd.f32 %v269, %v455
      %v457 = vpop.f32.mrf.mxu0
      %458 = vmatprep.mubr.f32.mxu0 0.0
      %v459 = vand.u32 %v294, 4294901760
      %v460 = vsub.f32 %v294, %v459
      %v461 = vand.u32 %v460, 4294901760
      %v462 = vsub.f32 %v460, %v461
      %v463 = vand.u32 %v462, 4294901760
      %464 = vmatmul.mubr.f32.gmra.mxu0 %v463
      %v465 = vpop.f32.mrf.mxu0
      %v466 = vadd.f32 %v269, %v465
      %v467 = vpop.f32.mrf.mxu0
      %468 = vmatprep.mubr.f32.mxu0 0.0
      %v469 = vand.u32 %v297, 4294901760
      %v470 = vsub.f32 %v297, %v469
      %v471 = vand.u32 %v470, 4294901760
      %v472 = vsub.f32 %v470, %v471
      %v473 = vand.u32 %v472, 4294901760
      %474 = vmatmul.mubr.f32.gmra.mxu0 %v473
      %v475 = vpop.f32.mrf.mxu0
      %v476 = vadd.f32 %v269, %v475
      %v477 = vpop.f32.mrf.mxu0
      %478 = vmatprep.mubr.f32.mxu0 0.0
      %v479 = vand.u32 %v300, 4294901760
      %v480 = vsub.f32 %v300, %v479
      %v481 = vand.u32 %v480, 4294901760
      %v482 = vsub.f32 %v480, %v481
      %v483 = vand.u32 %v482, 4294901760
      %484 = vmatmul.mubr.f32.gmra.mxu0 %v483
      %v485 = vpop.f32.mrf.mxu0
      %v486 = vadd.f32 %v269, %v485
      %v487 = vpop.f32.mrf.mxu0
      %488 = vmatprep.mubr.f32.mxu0 0.0
      %v489 = vand.u32 %v303, 4294901760
      %v490 = vsub.f32 %v303, %v489
      %v491 = vand.u32 %v490, 4294901760
      %v492 = vsub.f32 %v490, %v491
      %v493 = vand.u32 %v492, 4294901760
      %494 = vmatmul.mubr.f32.gmra.mxu0 %v493
      %v495 = vpop.f32.mrf.mxu0
      %v496 = vadd.f32 %v269, %v495
      %v497 = vpop.f32.mrf.mxu0
      %498 = vmatprep.mubr.f32.mxu0 0.0
      %v499 = vand.u32 %v306, 4294901760
      %v500 = vsub.f32 %v306, %v499
      %v501 = vand.u32 %v500, 4294901760
      %v502 = vsub.f32 %v500, %v501
      %v503 = vand.u32 %v502, 4294901760
      %504 = vmatmul.mubr.f32.gmra.mxu0 %v503
      %v505 = vpop.f32.mrf.mxu0
      %v506 = vadd.f32 %v269, %v505
      %v507 = vpop.f32.mrf.mxu0
      %508 = vmatprep.mubr.f32.mxu0 0.0
      %v509 = vand.u32 %v309, 4294901760
      %v510 = vsub.f32 %v309, %v509
      %v511 = vand.u32 %v510, 4294901760
      %v512 = vsub.f32 %v510, %v511
      %v513 = vand.u32 %v512, 4294901760
      %514 = vmatmul.mubr.f32.gmra.mxu0 %v513
      %v515 = vpop.f32.mrf.mxu0
      %v516 = vadd.f32 %v269, %v515
      %v517 = vpop.f32.mrf.mxu0
      %518 = vmatprep.mubr.f32.mxu0 0.0
      %v519 = vand.u32 %v312, 4294901760
      %v520 = vsub.f32 %v312, %v519
      %v521 = vand.u32 %v520, 4294901760
      %v522 = vsub.f32 %v520, %v521
      %v523 = vand.u32 %v522, 4294901760
      %524 = vmatmul.mubr.f32.gmra.mxu0 %v523
      %v525 = vpop.f32.mrf.mxu0
      %v526 = vadd.f32 %v269, %v525
      %v527 = vpop.f32.mrf.mxu0
      %528 = vmatprep.mubr.f32.mxu0 0.0
      %v529 = vand.u32 %v315, 4294901760
      %v530 = vsub.f32 %v315, %v529
      %v531 = vand.u32 %v530, 4294901760
      %v532 = vsub.f32 %v530, %v531
      %v533 = vand.u32 %v532, 4294901760
      %534 = vmatmul.mubr.f32.gmra.mxu0 %v533
      %v535 = vpop.f32.mrf.mxu0
      %v536 = vadd.f32 %v269, %v535
      %v537 = vpop.f32.mrf.mxu0
      %538 = vmatprep.mubr.f32.mxu0 0.0
      %v539 = vand.u32 %v318, 4294901760
      %v540 = vsub.f32 %v318, %v539
      %v541 = vand.u32 %v540, 4294901760
      %v542 = vsub.f32 %v540, %v541
      %v543 = vand.u32 %v542, 4294901760
      %544 = vmatmul.mubr.f32.gmra.mxu0 %v543
      %v545 = vpop.f32.mrf.mxu0
      %v546 = vadd.f32 %v269, %v545
      %v547 = vpop.f32.mrf.mxu0
      %548 = vdwg.mxu0
      %549 = vmatprep.subr.mxu0 0.0
      %550 = vmatpush1.msra.mxu0 0.0
      %551 = vmatprep.subr.mxu0 0.0
      %552 = vmatpush1.msra.mxu0 0.0
      %553 = vmatprep.subr.mxu0 0.0
      %554 = vmatpush1.msra.mxu0 0.0
      %555 = vmatprep.subr.mxu0 0.0
      %556 = vmatpush1.msra.mxu0 0.0
      %557 = vmatprep.subr.mxu0 0.0
      %558 = vmatpush1.msra.mxu0 0.0
      %559 = vmatprep.subr.mxu0 0.0
      %560 = vmatpush1.msra.mxu0 0.0
      %561 = vmatprep.subr.mxu0 0.0
      %562 = vmatpush1.msra.mxu0 0.0
      %563 = vmatprep.subr.mxu0 0.0
      %564 = vmatpush1.msra.mxu0 0.0
      %565 = vmatprep.subr.mxu0 0.0
      %566 = vmatpush1.msra.mxu0 0.0
      %567 = vmatprep.subr.mxu0 0.0
      %568 = vmatpush1.msra.mxu0 0.0
      %569 = vmatprep.subr.mxu0 0.0
      %570 = vmatpush1.msra.mxu0 0.0
      %571 = vmatprep.subr.mxu0 0.0
      %572 = vmatpush1.msra.mxu0 0.0
      %573 = vmatprep.subr.mxu0 0.0
      %v574 = vand.u32 %v231, 4294901760
      %v575 = vsub.f32 %v231, %v574
      %v576 = vand.u32 %v575, 4294901760
      %v577 = vsub.f32 %v575, %v576
      %v578 = vand.u32 %v577, 4294901760
      %579 = vmatpush1.msra.mxu0 %v578
      %580 = vmatprep.subr.mxu0 0.0
      %v581 = vand.u32 %v230, 4294901760
      %v582 = vsub.f32 %v230, %v581
      %v583 = vand.u32 %v582, 4294901760
      %v584 = vsub.f32 %v582, %v583
      %v585 = vand.u32 %v584, 4294901760
      %586 = vmatpush1.msra.mxu0 %v585
      %587 = vmatprep.subr.mxu0 0.0
      %v588 = vand.u32 %v229, 4294901760
      %v589 = vsub.f32 %v229, %v588
      %v590 = vand.u32 %v589, 4294901760
      %v591 = vsub.f32 %v589, %v590
      %v592 = vand.u32 %v591, 4294901760
      %593 = vmatpush1.msra.mxu0 %v592
      %594 = vmatprep.subr.mxu0 0.0
      %v595 = vand.u32 %v228, 4294901760
      %v596 = vsub.f32 %v228, %v595
      %v597 = vand.u32 %v596, 4294901760
      %v598 = vsub.f32 %v596, %v597
      %v599 = vand.u32 %v598, 4294901760
      %600 = vmatpush1.msra.mxu0 %v599
      %601 = vmatprep.subr.mxu0 0.0
      %602 = vmatpush2.msra.mxu0 0.0
      %603 = vmatprep.subr.mxu0 0.0
      %604 = vmatpush2.msra.mxu0 0.0
      %605 = vmatprep.subr.mxu0 0.0
      %606 = vmatpush2.msra.mxu0 0.0
      %607 = vmatprep.subr.mxu0 0.0
      %608 = vmatpush2.msra.mxu0 0.0
      %609 = vmatprep.subr.mxu0 0.0
      %610 = vmatpush2.msra.mxu0 0.0
      %611 = vmatprep.subr.mxu0 0.0
      %612 = vmatpush2.msra.mxu0 0.0
      %613 = vmatprep.subr.mxu0 0.0
      %614 = vmatpush2.msra.mxu0 0.0
      %615 = vmatprep.subr.mxu0 0.0
      %616 = vmatpush2.msra.mxu0 0.0
      %617 = vmatprep.subr.mxu0 0.0
      %618 = vmatpush2.msra.mxu0 0.0
      %619 = vmatprep.subr.mxu0 0.0
      %620 = vmatpush2.msra.mxu0 0.0
      %621 = vmatprep.subr.mxu0 0.0
      %622 = vmatpush2.msra.mxu0 0.0
      %623 = vmatprep.subr.mxu0 0.0
      %624 = vmatpush2.msra.mxu0 0.0
      %625 = vmatprep.subr.mxu0 0.0
      %626 = vmatpush2.msra.mxu0 0.0
      %627 = vmatprep.subr.mxu0 0.0
      %628 = vmatpush2.msra.mxu0 0.0
      %629 = vmatprep.subr.mxu0 0.0
      %630 = vmatpush2.msra.mxu0 0.0
      %631 = vmatprep.subr.mxu0 0.0
      %632 = vmatpush2.msra.mxu0 0.0
      %633 = vmatprep.mubr.f32.mxu0 0.0
      %v634 = vand.u32 %v273, 4294901760
      %635 = vmatmul.mubr.f32.gmra.mxu0 %v634
      %v636 = vpop.f32.mrf.mxu0
      %v637 = vadd.f32 %v396, %v636
      %v638 = vpop.f32.mrf.mxu0
      %639 = vmatprep.mubr.f32.mxu0 0.0
      %v640 = vand.u32 %v276, 4294901760
      %641 = vmatmul.mubr.f32.gmra.mxu0 %v640
      %v642 = vpop.f32.mrf.mxu0
      %v643 = vadd.f32 %v406, %v642
      %v644 = vpop.f32.mrf.mxu0
      %645 = vmatprep.mubr.f32.mxu0 0.0
      %v646 = vand.u32 %v279, 4294901760
      %647 = vmatmul.mubr.f32.gmra.mxu0 %v646
      %v648 = vpop.f32.mrf.mxu0
      %v649 = vadd.f32 %v416, %v648
      %v650 = vpop.f32.mrf.mxu0
      %651 = vmatprep.mubr.f32.mxu0 0.0
      %v652 = vand.u32 %v282, 4294901760
      %653 = vmatmul.mubr.f32.gmra.mxu0 %v652
      %v654 = vpop.f32.mrf.mxu0
      %v655 = vadd.f32 %v426, %v654
      %v656 = vpop.f32.mrf.mxu0
      %657 = vmatprep.mubr.f32.mxu0 0.0
      %v658 = vand.u32 %v285, 4294901760
      %659 = vmatmul.mubr.f32.gmra.mxu0 %v658
      %v660 = vpop.f32.mrf.mxu0
      %v661 = vadd.f32 %v436, %v660
      %v662 = vpop.f32.mrf.mxu0
      %663 = vmatprep.mubr.f32.mxu0 0.0
      %v664 = vand.u32 %v288, 4294901760
      %665 = vmatmul.mubr.f32.gmra.mxu0 %v664
      %v666 = vpop.f32.mrf.mxu0
      %v667 = vadd.f32 %v446, %v666
      %v668 = vpop.f32.mrf.mxu0
      %669 = vmatprep.mubr.f32.mxu0 0.0
      %v670 = vand.u32 %v291, 4294901760
      %671 = vmatmul.mubr.f32.gmra.mxu0 %v670
      %v672 = vpop.f32.mrf.mxu0
      %v673 = vadd.f32 %v456, %v672
      %v674 = vpop.f32.mrf.mxu0
      %675 = vmatprep.mubr.f32.mxu0 0.0
      %v676 = vand.u32 %v294, 4294901760
      %677 = vmatmul.mubr.f32.gmra.mxu0 %v676
      %v678 = vpop.f32.mrf.mxu0
      %v679 = vadd.f32 %v466, %v678
      %v680 = vpop.f32.mrf.mxu0
      %681 = vmatprep.mubr.f32.mxu0 0.0
      %v682 = vand.u32 %v297, 4294901760
      %683 = vmatmul.mubr.f32.gmra.mxu0 %v682
      %v684 = vpop.f32.mrf.mxu0
      %v685 = vadd.f32 %v476, %v684
      %v686 = vpop.f32.mrf.mxu0
      %687 = vmatprep.mubr.f32.mxu0 0.0
      %v688 = vand.u32 %v300, 4294901760
      %689 = vmatmul.mubr.f32.gmra.mxu0 %v688
      %v690 = vpop.f32.mrf.mxu0
      %v691 = vadd.f32 %v486, %v690
      %v692 = vpop.f32.mrf.mxu0
      %693 = vmatprep.mubr.f32.mxu0 0.0
      %v694 = vand.u32 %v303, 4294901760
      %695 = vmatmul.mubr.f32.gmra.mxu0 %v694
      %v696 = vpop.f32.mrf.mxu0
      %v697 = vadd.f32 %v496, %v696
      %v698 = vpop.f32.mrf.mxu0
      %699 = vmatprep.mubr.f32.mxu0 0.0
      %v700 = vand.u32 %v306, 4294901760
      %701 = vmatmul.mubr.f32.gmra.mxu0 %v700
      %v702 = vpop.f32.mrf.mxu0
      %v703 = vadd.f32 %v506, %v702
      %v704 = vpop.f32.mrf.mxu0
      %705 = vmatprep.mubr.f32.mxu0 0.0
      %v706 = vand.u32 %v309, 4294901760
      %707 = vmatmul.mubr.f32.gmra.mxu0 %v706
      %v708 = vpop.f32.mrf.mxu0
      %v709 = vadd.f32 %v516, %v708
      %v710 = vpop.f32.mrf.mxu0
      %711 = vmatprep.mubr.f32.mxu0 0.0
      %v712 = vand.u32 %v312, 4294901760
      %713 = vmatmul.mubr.f32.gmra.mxu0 %v712
      %v714 = vpop.f32.mrf.mxu0
      %v715 = vadd.f32 %v526, %v714
      %v716 = vpop.f32.mrf.mxu0
      %717 = vmatprep.mubr.f32.mxu0 0.0
      %v718 = vand.u32 %v315, 4294901760
      %719 = vmatmul.mubr.f32.gmra.mxu0 %v718
      %v720 = vpop.f32.mrf.mxu0
      %v721 = vadd.f32 %v536, %v720
      %v722 = vpop.f32.mrf.mxu0
      %723 = vmatprep.mubr.f32.mxu0 0.0
      %v724 = vand.u32 %v318, 4294901760
      %725 = vmatmul.mubr.f32.gmra.mxu0 %v724
      %v726 = vpop.f32.mrf.mxu0
      %v727 = vadd.f32 %v546, %v726
      %v728 = vpop.f32.mrf.mxu0
      %729 = vdwg.mxu0
      %730 = vmatprep.subr.mxu0 0.0
      %731 = vmatpush1.msra.mxu0 0.0
      %732 = vmatprep.subr.mxu0 0.0
      %733 = vmatpush1.msra.mxu0 0.0
      %734 = vmatprep.subr.mxu0 0.0
      %735 = vmatpush1.msra.mxu0 0.0
      %736 = vmatprep.subr.mxu0 0.0
      %737 = vmatpush1.msra.mxu0 0.0
      %738 = vmatprep.subr.mxu0 0.0
      %739 = vmatpush1.msra.mxu0 0.0
      %740 = vmatprep.subr.mxu0 0.0
      %741 = vmatpush1.msra.mxu0 0.0
      %742 = vmatprep.subr.mxu0 0.0
      %743 = vmatpush1.msra.mxu0 0.0
      %744 = vmatprep.subr.mxu0 0.0
      %745 = vmatpush1.msra.mxu0 0.0
      %746 = vmatprep.subr.mxu0 0.0
      %747 = vmatpush1.msra.mxu0 0.0
      %748 = vmatprep.subr.mxu0 0.0
      %749 = vmatpush1.msra.mxu0 0.0
      %750 = vmatprep.subr.mxu0 0.0
      %751 = vmatpush1.msra.mxu0 0.0
      %752 = vmatprep.subr.mxu0 0.0
      %753 = vmatpush1.msra.mxu0 0.0
      %754 = vmatprep.subr.mxu0 0.0
      %v755 = vand.u32 %v231, 4294901760
      %v756 = vsub.f32 %v231, %v755
      %757 = vmatpush1.msra.mxu0 %v756
      %758 = vmatprep.subr.mxu0 0.0
      %v759 = vand.u32 %v230, 4294901760
      %v760 = vsub.f32 %v230, %v759
      %761 = vmatpush1.msra.mxu0 %v760
      %762 = vmatprep.subr.mxu0 0.0
      %v763 = vand.u32 %v229, 4294901760
      %v764 = vsub.f32 %v229, %v763
      %765 = vmatpush1.msra.mxu0 %v764
      %766 = vmatprep.subr.mxu0 0.0
      %v767 = vand.u32 %v228, 4294901760
      %v768 = vsub.f32 %v228, %v767
      %769 = vmatpush1.msra.mxu0 %v768
      %770 = vmatprep.subr.mxu0 0.0
      %771 = vmatpush2.msra.mxu0 0.0
      %772 = vmatprep.subr.mxu0 0.0
      %773 = vmatpush2.msra.mxu0 0.0
      %774 = vmatprep.subr.mxu0 0.0
      %775 = vmatpush2.msra.mxu0 0.0
      %776 = vmatprep.subr.mxu0 0.0
      %777 = vmatpush2.msra.mxu0 0.0
      %778 = vmatprep.subr.mxu0 0.0
      %779 = vmatpush2.msra.mxu0 0.0
      %780 = vmatprep.subr.mxu0 0.0
      %781 = vmatpush2.msra.mxu0 0.0
      %782 = vmatprep.subr.mxu0 0.0
      %783 = vmatpush2.msra.mxu0 0.0
      %784 = vmatprep.subr.mxu0 0.0
      %785 = vmatpush2.msra.mxu0 0.0
      %786 = vmatprep.subr.mxu0 0.0
      %787 = vmatpush2.msra.mxu0 0.0
      %788 = vmatprep.subr.mxu0 0.0
      %789 = vmatpush2.msra.mxu0 0.0
      %790 = vmatprep.subr.mxu0 0.0
      %791 = vmatpush2.msra.mxu0 0.0
      %792 = vmatprep.subr.mxu0 0.0
      %793 = vmatpush2.msra.mxu0 0.0
      %794 = vmatprep.subr.mxu0 0.0
      %795 = vmatpush2.msra.mxu0 0.0
      %796 = vmatprep.subr.mxu0 0.0
      %797 = vmatpush2.msra.mxu0 0.0
      %798 = vmatprep.subr.mxu0 0.0
      %799 = vmatpush2.msra.mxu0 0.0
      %800 = vmatprep.subr.mxu0 0.0
      %801 = vmatpush2.msra.mxu0 0.0
      %802 = vmatprep.mubr.f32.mxu0 0.0
      %v803 = vand.u32 %v273, 4294901760
      %v804 = vsub.f32 %v273, %v803
      %805 = vmatmul.mubr.f32.gmra.mxu0 %v804
      %v806 = vpop.f32.mrf.mxu0
      %v807 = vadd.f32 %v637, %v806
      %v808 = vpop.f32.mrf.mxu0
      %809 = vmatprep.mubr.f32.mxu0 0.0
      %v810 = vand.u32 %v276, 4294901760
      %v811 = vsub.f32 %v276, %v810
      %812 = vmatmul.mubr.f32.gmra.mxu0 %v811
      %v813 = vpop.f32.mrf.mxu0
      %v814 = vadd.f32 %v643, %v813
      %v815 = vpop.f32.mrf.mxu0
      %816 = vmatprep.mubr.f32.mxu0 0.0
      %v817 = vand.u32 %v279, 4294901760
      %v818 = vsub.f32 %v279, %v817
      %819 = vmatmul.mubr.f32.gmra.mxu0 %v818
      %v820 = vpop.f32.mrf.mxu0
      %v821 = vadd.f32 %v649, %v820
      %v822 = vpop.f32.mrf.mxu0
      %823 = vmatprep.mubr.f32.mxu0 0.0
      %v824 = vand.u32 %v282, 4294901760
      %v825 = vsub.f32 %v282, %v824
      %826 = vmatmul.mubr.f32.gmra.mxu0 %v825
      %v827 = vpop.f32.mrf.mxu0
      %v828 = vadd.f32 %v655, %v827
      %v829 = vpop.f32.mrf.mxu0
      %830 = vmatprep.mubr.f32.mxu0 0.0
      %v831 = vand.u32 %v285, 4294901760
      %v832 = vsub.f32 %v285, %v831
      %833 = vmatmul.mubr.f32.gmra.mxu0 %v832
      %v834 = vpop.f32.mrf.mxu0
      %v835 = vadd.f32 %v661, %v834
      %v836 = vpop.f32.mrf.mxu0
      %837 = vmatprep.mubr.f32.mxu0 0.0
      %v838 = vand.u32 %v288, 4294901760
      %v839 = vsub.f32 %v288, %v838
      %840 = vmatmul.mubr.f32.gmra.mxu0 %v839
      %v841 = vpop.f32.mrf.mxu0
      %v842 = vadd.f32 %v667, %v841
      %v843 = vpop.f32.mrf.mxu0
      %844 = vmatprep.mubr.f32.mxu0 0.0
      %v845 = vand.u32 %v291, 4294901760
      %v846 = vsub.f32 %v291, %v845
      %847 = vmatmul.mubr.f32.gmra.mxu0 %v846
      %v848 = vpop.f32.mrf.mxu0
      %v849 = vadd.f32 %v673, %v848
      %v850 = vpop.f32.mrf.mxu0
      %851 = vmatprep.mubr.f32.mxu0 0.0
      %v852 = vand.u32 %v294, 4294901760
      %v853 = vsub.f32 %v294, %v852
      %854 = vmatmul.mubr.f32.gmra.mxu0 %v853
      %v855 = vpop.f32.mrf.mxu0
      %v856 = vadd.f32 %v679, %v855
      %v857 = vpop.f32.mrf.mxu0
      %858 = vmatprep.mubr.f32.mxu0 0.0
      %v859 = vand.u32 %v297, 4294901760
      %v860 = vsub.f32 %v297, %v859
      %861 = vmatmul.mubr.f32.gmra.mxu0 %v860
      %v862 = vpop.f32.mrf.mxu0
      %v863 = vadd.f32 %v685, %v862
      %v864 = vpop.f32.mrf.mxu0
      %865 = vmatprep.mubr.f32.mxu0 0.0
      %v866 = vand.u32 %v300, 4294901760
      %v867 = vsub.f32 %v300, %v866
      %868 = vmatmul.mubr.f32.gmra.mxu0 %v867
      %v869 = vpop.f32.mrf.mxu0
      %v870 = vadd.f32 %v691, %v869
      %v871 = vpop.f32.mrf.mxu0
      %872 = vmatprep.mubr.f32.mxu0 0.0
      %v873 = vand.u32 %v303, 4294901760
      %v874 = vsub.f32 %v303, %v873
      %875 = vmatmul.mubr.f32.gmra.mxu0 %v874
      %v876 = vpop.f32.mrf.mxu0
      %v877 = vadd.f32 %v697, %v876
      %v878 = vpop.f32.mrf.mxu0
      %879 = vmatprep.mubr.f32.mxu0 0.0
      %v880 = vand.u32 %v306, 4294901760
      %v881 = vsub.f32 %v306, %v880
      %882 = vmatmul.mubr.f32.gmra.mxu0 %v881
      %v883 = vpop.f32.mrf.mxu0
      %v884 = vadd.f32 %v703, %v883
      %v885 = vpop.f32.mrf.mxu0
      %886 = vmatprep.mubr.f32.mxu0 0.0
      %v887 = vand.u32 %v309, 4294901760
      %v888 = vsub.f32 %v309, %v887
      %889 = vmatmul.mubr.f32.gmra.mxu0 %v888
      %v890 = vpop.f32.mrf.mxu0
      %v891 = vadd.f32 %v709, %v890
      %v892 = vpop.f32.mrf.mxu0
      %893 = vmatprep.mubr.f32.mxu0 0.0
      %v894 = vand.u32 %v312, 4294901760
      %v895 = vsub.f32 %v312, %v894
      %896 = vmatmul.mubr.f32.gmra.mxu0 %v895
      %v897 = vpop.f32.mrf.mxu0
      %v898 = vadd.f32 %v715, %v897
      %v899 = vpop.f32.mrf.mxu0
      %900 = vmatprep.mubr.f32.mxu0 0.0
      %v901 = vand.u32 %v315, 4294901760
      %v902 = vsub.f32 %v315, %v901
      %903 = vmatmul.mubr.f32.gmra.mxu0 %v902
      %v904 = vpop.f32.mrf.mxu0
      %v905 = vadd.f32 %v721, %v904
      %v906 = vpop.f32.mrf.mxu0
      %907 = vmatprep.mubr.f32.mxu0 0.0
      %v908 = vand.u32 %v318, 4294901760
      %v909 = vsub.f32 %v318, %v908
      %910 = vmatmul.mubr.f32.gmra.mxu0 %v909
      %v911 = vpop.f32.mrf.mxu0
      %v912 = vadd.f32 %v727, %v911
      %v913 = vpop.f32.mrf.mxu0
      %914 = vdwg.mxu0
      %915 = vmatprep.subr.mxu0 0.0
      %916 = vmatpush1.msra.mxu0 0.0
      %917 = vmatprep.subr.mxu0 0.0
      %918 = vmatpush1.msra.mxu0 0.0
      %919 = vmatprep.subr.mxu0 0.0
      %920 = vmatpush1.msra.mxu0 0.0
      %921 = vmatprep.subr.mxu0 0.0
      %922 = vmatpush1.msra.mxu0 0.0
      %923 = vmatprep.subr.mxu0 0.0
      %924 = vmatpush1.msra.mxu0 0.0
      %925 = vmatprep.subr.mxu0 0.0
      %926 = vmatpush1.msra.mxu0 0.0
      %927 = vmatprep.subr.mxu0 0.0
      %928 = vmatpush1.msra.mxu0 0.0
      %929 = vmatprep.subr.mxu0 0.0
      %930 = vmatpush1.msra.mxu0 0.0
      %931 = vmatprep.subr.mxu0 0.0
      %932 = vmatpush1.msra.mxu0 0.0
      %933 = vmatprep.subr.mxu0 0.0
      %934 = vmatpush1.msra.mxu0 0.0
      %935 = vmatprep.subr.mxu0 0.0
      %936 = vmatpush1.msra.mxu0 0.0
      %937 = vmatprep.subr.mxu0 0.0
      %938 = vmatpush1.msra.mxu0 0.0
      %939 = vmatprep.subr.mxu0 0.0
      %v940 = vand.u32 %v231, 4294901760
      %941 = vmatpush1.msra.mxu0 %v940
      %942 = vmatprep.subr.mxu0 0.0
      %v943 = vand.u32 %v230, 4294901760
      %944 = vmatpush1.msra.mxu0 %v943
      %945 = vmatprep.subr.mxu0 0.0
      %v946 = vand.u32 %v229, 4294901760
      %947 = vmatpush1.msra.mxu0 %v946
      %948 = vmatprep.subr.mxu0 0.0
      %v949 = vand.u32 %v228, 4294901760
      %950 = vmatpush1.msra.mxu0 %v949
      %951 = vmatprep.subr.mxu0 0.0
      %952 = vmatpush2.msra.mxu0 0.0
      %953 = vmatprep.subr.mxu0 0.0
      %954 = vmatpush2.msra.mxu0 0.0
      %955 = vmatprep.subr.mxu0 0.0
      %956 = vmatpush2.msra.mxu0 0.0
      %957 = vmatprep.subr.mxu0 0.0
      %958 = vmatpush2.msra.mxu0 0.0
      %959 = vmatprep.subr.mxu0 0.0
      %960 = vmatpush2.msra.mxu0 0.0
      %961 = vmatprep.subr.mxu0 0.0
      %962 = vmatpush2.msra.mxu0 0.0
      %963 = vmatprep.subr.mxu0 0.0
      %964 = vmatpush2.msra.mxu0 0.0
      %965 = vmatprep.subr.mxu0 0.0
      %966 = vmatpush2.msra.mxu0 0.0
      %967 = vmatprep.subr.mxu0 0.0
      %968 = vmatpush2.msra.mxu0 0.0
      %969 = vmatprep.subr.mxu0 0.0
      %970 = vmatpush2.msra.mxu0 0.0
      %971 = vmatprep.subr.mxu0 0.0
      %972 = vmatpush2.msra.mxu0 0.0
      %973 = vmatprep.subr.mxu0 0.0
      %974 = vmatpush2.msra.mxu0 0.0
      %975 = vmatprep.subr.mxu0 0.0
      %976 = vmatpush2.msra.mxu0 0.0
      %977 = vmatprep.subr.mxu0 0.0
      %978 = vmatpush2.msra.mxu0 0.0
      %979 = vmatprep.subr.mxu0 0.0
      %980 = vmatpush2.msra.mxu0 0.0
      %981 = vmatprep.subr.mxu0 0.0
      %982 = vmatpush2.msra.mxu0 0.0
      %983 = vmatprep.mubr.f32.mxu0 0.0
      %v984 = vand.u32 %v273, 4294901760
      %v985 = vsub.f32 %v273, %v984
      %v986 = vand.u32 %v985, 4294901760
      %987 = vmatmul.mubr.f32.gmra.mxu0 %v986
      %v988 = vpop.f32.mrf.mxu0
      %v989 = vadd.f32 %v807, %v988
      %v990 = vpop.f32.mrf.mxu0
      %991 = vmatprep.mubr.f32.mxu0 0.0
      %v992 = vand.u32 %v276, 4294901760
      %v993 = vsub.f32 %v276, %v992
      %v994 = vand.u32 %v993, 4294901760
      %995 = vmatmul.mubr.f32.gmra.mxu0 %v994
      %v996 = vpop.f32.mrf.mxu0
      %v997 = vadd.f32 %v814, %v996
      %v998 = vpop.f32.mrf.mxu0
      %999 = vmatprep.mubr.f32.mxu0 0.0
      %v1000 = vand.u32 %v279, 4294901760
      %v1001 = vsub.f32 %v279, %v1000
      %v1002 = vand.u32 %v1001, 4294901760
      %1003 = vmatmul.mubr.f32.gmra.mxu0 %v1002
      %v1004 = vpop.f32.mrf.mxu0
      %v1005 = vadd.f32 %v821, %v1004
      %v1006 = vpop.f32.mrf.mxu0
      %1007 = vmatprep.mubr.f32.mxu0 0.0
      %v1008 = vand.u32 %v282, 4294901760
      %v1009 = vsub.f32 %v282, %v1008
      %v1010 = vand.u32 %v1009, 4294901760
      %1011 = vmatmul.mubr.f32.gmra.mxu0 %v1010
      %v1012 = vpop.f32.mrf.mxu0
      %v1013 = vadd.f32 %v828, %v1012
      %v1014 = vpop.f32.mrf.mxu0
      %1015 = vmatprep.mubr.f32.mxu0 0.0
      %v1016 = vand.u32 %v285, 4294901760
      %v1017 = vsub.f32 %v285, %v1016
      %v1018 = vand.u32 %v1017, 4294901760
      %1019 = vmatmul.mubr.f32.gmra.mxu0 %v1018
      %v1020 = vpop.f32.mrf.mxu0
      %v1021 = vadd.f32 %v835, %v1020
      %v1022 = vpop.f32.mrf.mxu0
      %1023 = vmatprep.mubr.f32.mxu0 0.0
      %v1024 = vand.u32 %v288, 4294901760
      %v1025 = vsub.f32 %v288, %v1024
      %v1026 = vand.u32 %v1025, 4294901760
      %1027 = vmatmul.mubr.f32.gmra.mxu0 %v1026
      %v1028 = vpop.f32.mrf.mxu0
      %v1029 = vadd.f32 %v842, %v1028
      %v1030 = vpop.f32.mrf.mxu0
      %1031 = vmatprep.mubr.f32.mxu0 0.0
      %v1032 = vand.u32 %v291, 4294901760
      %v1033 = vsub.f32 %v291, %v1032
      %v1034 = vand.u32 %v1033, 4294901760
      %1035 = vmatmul.mubr.f32.gmra.mxu0 %v1034
      %v1036 = vpop.f32.mrf.mxu0
      %v1037 = vadd.f32 %v849, %v1036
      %v1038 = vpop.f32.mrf.mxu0
      %1039 = vmatprep.mubr.f32.mxu0 0.0
      %v1040 = vand.u32 %v294, 4294901760
      %v1041 = vsub.f32 %v294, %v1040
      %v1042 = vand.u32 %v1041, 4294901760
      %1043 = vmatmul.mubr.f32.gmra.mxu0 %v1042
      %v1044 = vpop.f32.mrf.mxu0
      %v1045 = vadd.f32 %v856, %v1044
      %v1046 = vpop.f32.mrf.mxu0
      %1047 = vmatprep.mubr.f32.mxu0 0.0
      %v1048 = vand.u32 %v297, 4294901760
      %v1049 = vsub.f32 %v297, %v1048
      %v1050 = vand.u32 %v1049, 4294901760
      %1051 = vmatmul.mubr.f32.gmra.mxu0 %v1050
      %v1052 = vpop.f32.mrf.mxu0
      %v1053 = vadd.f32 %v863, %v1052
      %v1054 = vpop.f32.mrf.mxu0
      %1055 = vmatprep.mubr.f32.mxu0 0.0
      %v1056 = vand.u32 %v300, 4294901760
      %v1057 = vsub.f32 %v300, %v1056
      %v1058 = vand.u32 %v1057, 4294901760
      %1059 = vmatmul.mubr.f32.gmra.mxu0 %v1058
      %v1060 = vpop.f32.mrf.mxu0
      %v1061 = vadd.f32 %v870, %v1060
      %v1062 = vpop.f32.mrf.mxu0
      %1063 = vmatprep.mubr.f32.mxu0 0.0
      %v1064 = vand.u32 %v303, 4294901760
      %v1065 = vsub.f32 %v303, %v1064
      %v1066 = vand.u32 %v1065, 4294901760
      %1067 = vmatmul.mubr.f32.gmra.mxu0 %v1066
      %v1068 = vpop.f32.mrf.mxu0
      %v1069 = vadd.f32 %v877, %v1068
      %v1070 = vpop.f32.mrf.mxu0
      %1071 = vmatprep.mubr.f32.mxu0 0.0
      %v1072 = vand.u32 %v306, 4294901760
      %v1073 = vsub.f32 %v306, %v1072
      %v1074 = vand.u32 %v1073, 4294901760
      %1075 = vmatmul.mubr.f32.gmra.mxu0 %v1074
      %v1076 = vpop.f32.mrf.mxu0
      %v1077 = vadd.f32 %v884, %v1076
      %v1078 = vpop.f32.mrf.mxu0
      %1079 = vmatprep.mubr.f32.mxu0 0.0
      %v1080 = vand.u32 %v309, 4294901760
      %v1081 = vsub.f32 %v309, %v1080
      %v1082 = vand.u32 %v1081, 4294901760
      %1083 = vmatmul.mubr.f32.gmra.mxu0 %v1082
      %v1084 = vpop.f32.mrf.mxu0
      %v1085 = vadd.f32 %v891, %v1084
      %v1086 = vpop.f32.mrf.mxu0
      %1087 = vmatprep.mubr.f32.mxu0 0.0
      %v1088 = vand.u32 %v312, 4294901760
      %v1089 = vsub.f32 %v312, %v1088
      %v1090 = vand.u32 %v1089, 4294901760
      %1091 = vmatmul.mubr.f32.gmra.mxu0 %v1090
      %v1092 = vpop.f32.mrf.mxu0
      %v1093 = vadd.f32 %v898, %v1092
      %v1094 = vpop.f32.mrf.mxu0
      %1095 = vmatprep.mubr.f32.mxu0 0.0
      %v1096 = vand.u32 %v315, 4294901760
      %v1097 = vsub.f32 %v315, %v1096
      %v1098 = vand.u32 %v1097, 4294901760
      %1099 = vmatmul.mubr.f32.gmra.mxu0 %v1098
      %v1100 = vpop.f32.mrf.mxu0
      %v1101 = vadd.f32 %v905, %v1100
      %v1102 = vpop.f32.mrf.mxu0
      %1103 = vmatprep.mubr.f32.mxu0 0.0
      %v1104 = vand.u32 %v318, 4294901760
      %v1105 = vsub.f32 %v318, %v1104
      %v1106 = vand.u32 %v1105, 4294901760
      %1107 = vmatmul.mubr.f32.gmra.mxu0 %v1106
      %v1108 = vpop.f32.mrf.mxu0
      %v1109 = vadd.f32 %v912, %v1108
      %v1110 = vpop.f32.mrf.mxu0
      %1111 = vdwg.mxu0
      %1112 = vmatprep.subr.mxu0 0.0
      %1113 = vmatpush1.msra.mxu0 0.0
      %1114 = vmatprep.subr.mxu0 0.0
      %1115 = vmatpush1.msra.mxu0 0.0
      %1116 = vmatprep.subr.mxu0 0.0
      %1117 = vmatpush1.msra.mxu0 0.0
      %1118 = vmatprep.subr.mxu0 0.0
      %1119 = vmatpush1.msra.mxu0 0.0
      %1120 = vmatprep.subr.mxu0 0.0
      %1121 = vmatpush1.msra.mxu0 0.0
      %1122 = vmatprep.subr.mxu0 0.0
      %1123 = vmatpush1.msra.mxu0 0.0
      %1124 = vmatprep.subr.mxu0 0.0
      %1125 = vmatpush1.msra.mxu0 0.0
      %1126 = vmatprep.subr.mxu0 0.0
      %1127 = vmatpush1.msra.mxu0 0.0
      %1128 = vmatprep.subr.mxu0 0.0
      %1129 = vmatpush1.msra.mxu0 0.0
      %1130 = vmatprep.subr.mxu0 0.0
      %1131 = vmatpush1.msra.mxu0 0.0
      %1132 = vmatprep.subr.mxu0 0.0
      %1133 = vmatpush1.msra.mxu0 0.0
      %1134 = vmatprep.subr.mxu0 0.0
      %1135 = vmatpush1.msra.mxu0 0.0
      %1136 = vmatprep.subr.mxu0 0.0
      %v1137 = vand.u32 %v231, 4294901760
      %v1138 = vsub.f32 %v231, %v1137
      %v1139 = vand.u32 %v1138, 4294901760
      %1140 = vmatpush1.msra.mxu0 %v1139
      %1141 = vmatprep.subr.mxu0 0.0
      %v1142 = vand.u32 %v230, 4294901760
      %v1143 = vsub.f32 %v230, %v1142
      %v1144 = vand.u32 %v1143, 4294901760
      %1145 = vmatpush1.msra.mxu0 %v1144
      %1146 = vmatprep.subr.mxu0 0.0
      %v1147 = vand.u32 %v229, 4294901760
      %v1148 = vsub.f32 %v229, %v1147
      %v1149 = vand.u32 %v1148, 4294901760
      %1150 = vmatpush1.msra.mxu0 %v1149
      %1151 = vmatprep.subr.mxu0 0.0
      %v1152 = vand.u32 %v228, 4294901760
      %v1153 = vsub.f32 %v228, %v1152
      %v1154 = vand.u32 %v1153, 4294901760
      %1155 = vmatpush1.msra.mxu0 %v1154
      %1156 = vmatprep.subr.mxu0 0.0
      %1157 = vmatpush2.msra.mxu0 0.0
      %1158 = vmatprep.subr.mxu0 0.0
      %1159 = vmatpush2.msra.mxu0 0.0
      %1160 = vmatprep.subr.mxu0 0.0
      %1161 = vmatpush2.msra.mxu0 0.0
      %1162 = vmatprep.subr.mxu0 0.0
      %1163 = vmatpush2.msra.mxu0 0.0
      %1164 = vmatprep.subr.mxu0 0.0
      %1165 = vmatpush2.msra.mxu0 0.0
      %1166 = vmatprep.subr.mxu0 0.0
      %1167 = vmatpush2.msra.mxu0 0.0
      %1168 = vmatprep.subr.mxu0 0.0
      %1169 = vmatpush2.msra.mxu0 0.0
      %1170 = vmatprep.subr.mxu0 0.0
      %1171 = vmatpush2.msra.mxu0 0.0
      %1172 = vmatprep.subr.mxu0 0.0
      %1173 = vmatpush2.msra.mxu0 0.0
      %1174 = vmatprep.subr.mxu0 0.0
      %1175 = vmatpush2.msra.mxu0 0.0
      %1176 = vmatprep.subr.mxu0 0.0
      %1177 = vmatpush2.msra.mxu0 0.0
      %1178 = vmatprep.subr.mxu0 0.0
      %1179 = vmatpush2.msra.mxu0 0.0
      %1180 = vmatprep.subr.mxu0 0.0
      %1181 = vmatpush2.msra.mxu0 0.0
      %1182 = vmatprep.subr.mxu0 0.0
      %1183 = vmatpush2.msra.mxu0 0.0
      %1184 = vmatprep.subr.mxu0 0.0
      %1185 = vmatpush2.msra.mxu0 0.0
      %1186 = vmatprep.subr.mxu0 0.0
      %1187 = vmatpush2.msra.mxu0 0.0
      %1188 = vmatprep.mubr.f32.mxu0 0.0
      %v1189 = vand.u32 %v273, 4294901760
      %1190 = vmatmul.mubr.f32.gmra.mxu0 %v1189
      %v1191 = vpop.f32.mrf.mxu0
      %v1192 = vadd.f32 %v989, %v1191
      %v1193 = vpop.f32.mrf.mxu0
      %1194 = vmatprep.mubr.f32.mxu0 0.0
      %v1195 = vand.u32 %v276, 4294901760
      %1196 = vmatmul.mubr.f32.gmra.mxu0 %v1195
      %v1197 = vpop.f32.mrf.mxu0
      %v1198 = vadd.f32 %v997, %v1197
      %v1199 = vpop.f32.mrf.mxu0
      %1200 = vmatprep.mubr.f32.mxu0 0.0
      %v1201 = vand.u32 %v279, 4294901760
      %1202 = vmatmul.mubr.f32.gmra.mxu0 %v1201
      %v1203 = vpop.f32.mrf.mxu0
      %v1204 = vadd.f32 %v1005, %v1203
      %v1205 = vpop.f32.mrf.mxu0
      %1206 = vmatprep.mubr.f32.mxu0 0.0
      %v1207 = vand.u32 %v282, 4294901760
      %1208 = vmatmul.mubr.f32.gmra.mxu0 %v1207
      %v1209 = vpop.f32.mrf.mxu0
      %v1210 = vadd.f32 %v1013, %v1209
      %v1211 = vpop.f32.mrf.mxu0
      %1212 = vmatprep.mubr.f32.mxu0 0.0
      %v1213 = vand.u32 %v285, 4294901760
      %1214 = vmatmul.mubr.f32.gmra.mxu0 %v1213
      %v1215 = vpop.f32.mrf.mxu0
      %v1216 = vadd.f32 %v1021, %v1215
      %v1217 = vpop.f32.mrf.mxu0
      %1218 = vmatprep.mubr.f32.mxu0 0.0
      %v1219 = vand.u32 %v288, 4294901760
      %1220 = vmatmul.mubr.f32.gmra.mxu0 %v1219
      %v1221 = vpop.f32.mrf.mxu0
      %v1222 = vadd.f32 %v1029, %v1221
      %v1223 = vpop.f32.mrf.mxu0
      %1224 = vmatprep.mubr.f32.mxu0 0.0
      %v1225 = vand.u32 %v291, 4294901760
      %1226 = vmatmul.mubr.f32.gmra.mxu0 %v1225
      %v1227 = vpop.f32.mrf.mxu0
      %v1228 = vadd.f32 %v1037, %v1227
      %v1229 = vpop.f32.mrf.mxu0
      %1230 = vmatprep.mubr.f32.mxu0 0.0
      %v1231 = vand.u32 %v294, 4294901760
      %1232 = vmatmul.mubr.f32.gmra.mxu0 %v1231
      %v1233 = vpop.f32.mrf.mxu0
      %v1234 = vadd.f32 %v1045, %v1233
      %v1235 = vpop.f32.mrf.mxu0
      %1236 = vmatprep.mubr.f32.mxu0 0.0
      %v1237 = vand.u32 %v297, 4294901760
      %1238 = vmatmul.mubr.f32.gmra.mxu0 %v1237
      %v1239 = vpop.f32.mrf.mxu0
      %v1240 = vadd.f32 %v1053, %v1239
      %v1241 = vpop.f32.mrf.mxu0
      %1242 = vmatprep.mubr.f32.mxu0 0.0
      %v1243 = vand.u32 %v300, 4294901760
      %1244 = vmatmul.mubr.f32.gmra.mxu0 %v1243
      %v1245 = vpop.f32.mrf.mxu0
      %v1246 = vadd.f32 %v1061, %v1245
      %v1247 = vpop.f32.mrf.mxu0
      %1248 = vmatprep.mubr.f32.mxu0 0.0
      %v1249 = vand.u32 %v303, 4294901760
      %1250 = vmatmul.mubr.f32.gmra.mxu0 %v1249
      %v1251 = vpop.f32.mrf.mxu0
      %v1252 = vadd.f32 %v1069, %v1251
      %v1253 = vpop.f32.mrf.mxu0
      %1254 = vmatprep.mubr.f32.mxu0 0.0
      %v1255 = vand.u32 %v306, 4294901760
      %1256 = vmatmul.mubr.f32.gmra.mxu0 %v1255
      %v1257 = vpop.f32.mrf.mxu0
      %v1258 = vadd.f32 %v1077, %v1257
      %v1259 = vpop.f32.mrf.mxu0
      %1260 = vmatprep.mubr.f32.mxu0 0.0
      %v1261 = vand.u32 %v309, 4294901760
      %1262 = vmatmul.mubr.f32.gmra.mxu0 %v1261
      %v1263 = vpop.f32.mrf.mxu0
      %v1264 = vadd.f32 %v1085, %v1263
      %v1265 = vpop.f32.mrf.mxu0
      %1266 = vmatprep.mubr.f32.mxu0 0.0
      %v1267 = vand.u32 %v312, 4294901760
      %1268 = vmatmul.mubr.f32.gmra.mxu0 %v1267
      %v1269 = vpop.f32.mrf.mxu0
      %v1270 = vadd.f32 %v1093, %v1269
      %v1271 = vpop.f32.mrf.mxu0
      %1272 = vmatprep.mubr.f32.mxu0 0.0
      %v1273 = vand.u32 %v315, 4294901760
      %1274 = vmatmul.mubr.f32.gmra.mxu0 %v1273
      %v1275 = vpop.f32.mrf.mxu0
      %v1276 = vadd.f32 %v1101, %v1275
      %v1277 = vpop.f32.mrf.mxu0
      %1278 = vmatprep.mubr.f32.mxu0 0.0
      %v1279 = vand.u32 %v318, 4294901760
      %1280 = vmatmul.mubr.f32.gmra.mxu0 %v1279
      %v1281 = vpop.f32.mrf.mxu0
      %v1282 = vadd.f32 %v1109, %v1281
      %v1283 = vpop.f32.mrf.mxu0
      %1284 = vdwg.mxu0
      %1285 = vmatprep.subr.mxu0 0.0
      %1286 = vmatpush1.msra.mxu0 0.0
      %1287 = vmatprep.subr.mxu0 0.0
      %1288 = vmatpush1.msra.mxu0 0.0
      %1289 = vmatprep.subr.mxu0 0.0
      %1290 = vmatpush1.msra.mxu0 0.0
      %1291 = vmatprep.subr.mxu0 0.0
      %1292 = vmatpush1.msra.mxu0 0.0
      %1293 = vmatprep.subr.mxu0 0.0
      %1294 = vmatpush1.msra.mxu0 0.0
      %1295 = vmatprep.subr.mxu0 0.0
      %1296 = vmatpush1.msra.mxu0 0.0
      %1297 = vmatprep.subr.mxu0 0.0
      %1298 = vmatpush1.msra.mxu0 0.0
      %1299 = vmatprep.subr.mxu0 0.0
      %1300 = vmatpush1.msra.mxu0 0.0
      %1301 = vmatprep.subr.mxu0 0.0
      %1302 = vmatpush1.msra.mxu0 0.0
      %1303 = vmatprep.subr.mxu0 0.0
      %1304 = vmatpush1.msra.mxu0 0.0
      %1305 = vmatprep.subr.mxu0 0.0
      %1306 = vmatpush1.msra.mxu0 0.0
      %1307 = vmatprep.subr.mxu0 0.0
      %1308 = vmatpush1.msra.mxu0 0.0
      %1309 = vmatprep.subr.mxu0 0.0
      %v1310 = vand.u32 %v231, 4294901760
      %1311 = vmatpush1.msra.mxu0 %v1310
      %1312 = vmatprep.subr.mxu0 0.0
      %v1313 = vand.u32 %v230, 4294901760
      %1314 = vmatpush1.msra.mxu0 %v1313
      %1315 = vmatprep.subr.mxu0 0.0
      %v1316 = vand.u32 %v229, 4294901760
      %1317 = vmatpush1.msra.mxu0 %v1316
      %1318 = vmatprep.subr.mxu0 0.0
      %v1319 = vand.u32 %v228, 4294901760
      %1320 = vmatpush1.msra.mxu0 %v1319
      %1321 = vmatprep.subr.mxu0 0.0
      %1322 = vmatpush2.msra.mxu0 0.0
      %1323 = vmatprep.subr.mxu0 0.0
      %1324 = vmatpush2.msra.mxu0 0.0
      %1325 = vmatprep.subr.mxu0 0.0
      %1326 = vmatpush2.msra.mxu0 0.0
      %1327 = vmatprep.subr.mxu0 0.0
      %1328 = vmatpush2.msra.mxu0 0.0
      %1329 = vmatprep.subr.mxu0 0.0
      %1330 = vmatpush2.msra.mxu0 0.0
      %1331 = vmatprep.subr.mxu0 0.0
      %1332 = vmatpush2.msra.mxu0 0.0
      %1333 = vmatprep.subr.mxu0 0.0
      %1334 = vmatpush2.msra.mxu0 0.0
      %1335 = vmatprep.subr.mxu0 0.0
      %1336 = vmatpush2.msra.mxu0 0.0
      %1337 = vmatprep.subr.mxu0 0.0
      %1338 = vmatpush2.msra.mxu0 0.0
      %1339 = vmatprep.subr.mxu0 0.0
      %1340 = vmatpush2.msra.mxu0 0.0
      %1341 = vmatprep.subr.mxu0 0.0
      %1342 = vmatpush2.msra.mxu0 0.0
      %1343 = vmatprep.subr.mxu0 0.0
      %1344 = vmatpush2.msra.mxu0 0.0
      %1345 = vmatprep.subr.mxu0 0.0
      %1346 = vmatpush2.msra.mxu0 0.0
      %1347 = vmatprep.subr.mxu0 0.0
      %1348 = vmatpush2.msra.mxu0 0.0
      %1349 = vmatprep.subr.mxu0 0.0
      %1350 = vmatpush2.msra.mxu0 0.0
      %1351 = vmatprep.subr.mxu0 0.0
      %1352 = vmatpush2.msra.mxu0 0.0
      %1353 = vmatprep.mubr.f32.mxu0 0.0
      %v1354 = vand.u32 %v273, 4294901760
      %1355 = vmatmul.mubr.f32.gmra.mxu0 %v1354
      %v1356 = vpop.f32.mrf.mxu0
      %v1357 = vadd.f32 %v1192, %v1356
      %v1358 = vpop.f32.mrf.mxu0
      %1359 = vmatprep.mubr.f32.mxu0 0.0
      %v1360 = vand.u32 %v276, 4294901760
      %1361 = vmatmul.mubr.f32.gmra.mxu0 %v1360
      %v1362 = vpop.f32.mrf.mxu0
      %v1363 = vadd.f32 %v1198, %v1362
      %v1364 = vpop.f32.mrf.mxu0
      %1365 = vmatprep.mubr.f32.mxu0 0.0
      %v1366 = vand.u32 %v279, 4294901760
      %1367 = vmatmul.mubr.f32.gmra.mxu0 %v1366
      %v1368 = vpop.f32.mrf.mxu0
      %v1369 = vadd.f32 %v1204, %v1368
      %v1370 = vpop.f32.mrf.mxu0
      %1371 = vmatprep.mubr.f32.mxu0 0.0
      %v1372 = vand.u32 %v282, 4294901760
      %1373 = vmatmul.mubr.f32.gmra.mxu0 %v1372
      %v1374 = vpop.f32.mrf.mxu0
      %v1375 = vadd.f32 %v1210, %v1374
      %v1376 = vpop.f32.mrf.mxu0
      %1377 = vmatprep.mubr.f32.mxu0 0.0
      %v1378 = vand.u32 %v285, 4294901760
      %1379 = vmatmul.mubr.f32.gmra.mxu0 %v1378
      %v1380 = vpop.f32.mrf.mxu0
      %v1381 = vadd.f32 %v1216, %v1380
      %v1382 = vpop.f32.mrf.mxu0
      %1383 = vmatprep.mubr.f32.mxu0 0.0
      %v1384 = vand.u32 %v288, 4294901760
      %1385 = vmatmul.mubr.f32.gmra.mxu0 %v1384
      %v1386 = vpop.f32.mrf.mxu0
      %v1387 = vadd.f32 %v1222, %v1386
      %v1388 = vpop.f32.mrf.mxu0
      %1389 = vmatprep.mubr.f32.mxu0 0.0
      %v1390 = vand.u32 %v291, 4294901760
      %1391 = vmatmul.mubr.f32.gmra.mxu0 %v1390
      %v1392 = vpop.f32.mrf.mxu0
      %v1393 = vadd.f32 %v1228, %v1392
      %v1394 = vpop.f32.mrf.mxu0
      %1395 = vmatprep.mubr.f32.mxu0 0.0
      %v1396 = vand.u32 %v294, 4294901760
      %1397 = vmatmul.mubr.f32.gmra.mxu0 %v1396
      %v1398 = vpop.f32.mrf.mxu0
      %v1399 = vadd.f32 %v1234, %v1398
      %v1400 = vpop.f32.mrf.mxu0
      %1401 = vmatprep.mubr.f32.mxu0 0.0
      %v1402 = vand.u32 %v297, 4294901760
      %1403 = vmatmul.mubr.f32.gmra.mxu0 %v1402
      %v1404 = vpop.f32.mrf.mxu0
      %v1405 = vadd.f32 %v1240, %v1404
      %v1406 = vpop.f32.mrf.mxu0
      %1407 = vmatprep.mubr.f32.mxu0 0.0
      %v1408 = vand.u32 %v300, 4294901760
      %1409 = vmatmul.mubr.f32.gmra.mxu0 %v1408
      %v1410 = vpop.f32.mrf.mxu0
      %v1411 = vadd.f32 %v1246, %v1410
      %v1412 = vpop.f32.mrf.mxu0
      %1413 = vmatprep.mubr.f32.mxu0 0.0
      %v1414 = vand.u32 %v303, 4294901760
      %1415 = vmatmul.mubr.f32.gmra.mxu0 %v1414
      %v1416 = vpop.f32.mrf.mxu0
      %v1417 = vadd.f32 %v1252, %v1416
      %v1418 = vpop.f32.mrf.mxu0
      %1419 = vmatprep.mubr.f32.mxu0 0.0
      %v1420 = vand.u32 %v306, 4294901760
      %1421 = vmatmul.mubr.f32.gmra.mxu0 %v1420
      %v1422 = vpop.f32.mrf.mxu0
      %v1423 = vadd.f32 %v1258, %v1422
      %v1424 = vpop.f32.mrf.mxu0
      %1425 = vmatprep.mubr.f32.mxu0 0.0
      %v1426 = vand.u32 %v309, 4294901760
      %1427 = vmatmul.mubr.f32.gmra.mxu0 %v1426
      %v1428 = vpop.f32.mrf.mxu0
      %v1429 = vadd.f32 %v1264, %v1428
      %v1430 = vpop.f32.mrf.mxu0
      %1431 = vmatprep.mubr.f32.mxu0 0.0
      %v1432 = vand.u32 %v312, 4294901760
      %1433 = vmatmul.mubr.f32.gmra.mxu0 %v1432
      %v1434 = vpop.f32.mrf.mxu0
      %v1435 = vadd.f32 %v1270, %v1434
      %v1436 = vpop.f32.mrf.mxu0
      %1437 = vmatprep.mubr.f32.mxu0 0.0
      %v1438 = vand.u32 %v315, 4294901760
      %1439 = vmatmul.mubr.f32.gmra.mxu0 %v1438
      %v1440 = vpop.f32.mrf.mxu0
      %v1441 = vadd.f32 %v1276, %v1440
      %v1442 = vpop.f32.mrf.mxu0
      %1443 = vmatprep.mubr.f32.mxu0 0.0
      %v1444 = vand.u32 %v318, 4294901760
      %1445 = vmatmul.mubr.f32.gmra.mxu0 %v1444
      %v1446 = vpop.f32.mrf.mxu0
      %v1447 = vadd.f32 %v1282, %v1446
      %v1448 = vpop.f32.mrf.mxu0
      %1449 = vdwg.mxu0
      %v1450 = vxor.u32 %v1357, 2147483648
      %v1451 = vxor.u32 %v1363, 2147483648
      %v1452 = vxor.u32 %v1369, 2147483648
      %v1453 = vxor.u32 %v1375, 2147483648
      %v1454 = vxor.u32 %v1381, 2147483648
      %v1455 = vxor.u32 %v1387, 2147483648
      %v1456 = vxor.u32 %v1393, 2147483648
      %v1457 = vxor.u32 %v1399, 2147483648
      %v1458 = vxor.u32 %v1405, 2147483648
      %v1459 = vxor.u32 %v1411, 2147483648
      %v1460 = vxor.u32 %v1417, 2147483648
      %v1461 = vxor.u32 %v1423, 2147483648
      %v1462 = vxor.u32 %v1429, 2147483648
      %v1463 = vxor.u32 %v1435, 2147483648
      %v1464 = vxor.u32 %v1441, 2147483648
      %v1465 = vxor.u32 %v1447, 2147483648
      %v1466 = vmul.f32 %v1450, 1.442695
      %v1467 = vpow.pop %v1466
      %v1468 = vmul.f32 %v1451, 1.442695
      %v1469 = vpow.pop %v1468
      %v1470 = vmul.f32 %v1452, 1.442695
      %v1471 = vpow.pop %v1470
      %v1472 = vmul.f32 %v1453, 1.442695
      %v1473 = vpow.pop %v1472
      %v1474 = vmul.f32 %v1454, 1.442695
      %v1475 = vpow.pop %v1474
      %v1476 = vmul.f32 %v1455, 1.442695
      %v1477 = vpow.pop %v1476
      %v1478 = vmul.f32 %v1456, 1.442695
      %v1479 = vpow.pop %v1478
      %v1480 = vmul.f32 %v1457, 1.442695
      %v1481 = vpow.pop %v1480
      %v1482 = vmul.f32 %v1458, 1.442695
      %v1483 = vpow.pop %v1482
      %v1484 = vmul.f32 %v1459, 1.442695
      %v1485 = vpow.pop %v1484
      %v1486 = vmul.f32 %v1460, 1.442695
      %v1487 = vpow.pop %v1486
      %v1488 = vmul.f32 %v1461, 1.442695
      %v1489 = vpow.pop %v1488
      %v1490 = vmul.f32 %v1462, 1.442695
      %v1491 = vpow.pop %v1490
      %v1492 = vmul.f32 %v1463, 1.442695
      %v1493 = vpow.pop %v1492
      %v1494 = vmul.f32 %v1464, 1.442695
      %v1495 = vpow.pop %v1494
      %v1496 = vmul.f32 %v1465, 1.442695
      %v1497 = vpow.pop %v1496
      %v1498 = vadd.f32 %v1467, 1.0
      %v1499 = vadd.f32 %v1469, 1.0
      %v1500 = vadd.f32 %v1471, 1.0
      %v1501 = vadd.f32 %v1473, 1.0
      %v1502 = vadd.f32 %v1475, 1.0
      %v1503 = vadd.f32 %v1477, 1.0
      %v1504 = vadd.f32 %v1479, 1.0
      %v1505 = vadd.f32 %v1481, 1.0
      %v1506 = vadd.f32 %v1483, 1.0
      %v1507 = vadd.f32 %v1485, 1.0
      %v1508 = vadd.f32 %v1487, 1.0
      %v1509 = vadd.f32 %v1489, 1.0
      %v1510 = vadd.f32 %v1491, 1.0
      %v1511 = vadd.f32 %v1493, 1.0
      %v1512 = vadd.f32 %v1495, 1.0
      %v1513 = vadd.f32 %v1497, 1.0
      %v1514 = vrcp.pop %v1498
      %v1515 = vmul.f32 1.0, %v1514
      %v1516 = vrcp.pop %v1499
      %v1517 = vmul.f32 1.0, %v1516
      %v1518 = vrcp.pop %v1500
      %v1519 = vmul.f32 1.0, %v1518
      %v1520 = vrcp.pop %v1501
      %v1521 = vmul.f32 1.0, %v1520
      %v1522 = vrcp.pop %v1502
      %v1523 = vmul.f32 1.0, %v1522
      %v1524 = vrcp.pop %v1503
      %v1525 = vmul.f32 1.0, %v1524
      %v1526 = vrcp.pop %v1504
      %v1527 = vmul.f32 1.0, %v1526
      %v1528 = vrcp.pop %v1505
      %v1529 = vmul.f32 1.0, %v1528
      %v1530 = vrcp.pop %v1506
      %v1531 = vmul.f32 1.0, %v1530
      %v1532 = vrcp.pop %v1507
      %v1533 = vmul.f32 1.0, %v1532
      %v1534 = vrcp.pop %v1508
      %v1535 = vmul.f32 1.0, %v1534
      %v1536 = vrcp.pop %v1509
      %v1537 = vmul.f32 1.0, %v1536
      %v1538 = vrcp.pop %v1510
      %v1539 = vmul.f32 1.0, %v1538
      %v1540 = vrcp.pop %v1511
      %v1541 = vmul.f32 1.0, %v1540
      %v1542 = vrcp.pop %v1512
      %v1543 = vmul.f32 1.0, %v1542
      %v1544 = vrcp.pop %v1513
      %v1545 = vmul.f32 1.0, %v1544
      %v1546 = vmul.f32 %v1357, %v1515
      %v1547 = vmul.f32 %v1363, %v1517
      %v1548 = vmul.f32 %v1369, %v1519
      %v1549 = vmul.f32 %v1375, %v1521
      %v1550 = vmul.f32 %v1381, %v1523
      %v1551 = vmul.f32 %v1387, %v1525
      %v1552 = vmul.f32 %v1393, %v1527
      %v1553 = vmul.f32 %v1399, %v1529
      %v1554 = vmul.f32 %v1405, %v1531
      %v1555 = vmul.f32 %v1411, %v1533
      %v1556 = vmul.f32 %v1417, %v1535
      %v1557 = vmul.f32 %v1423, %v1537
      %v1558 = vmul.f32 %v1429, %v1539
      %v1559 = vmul.f32 %v1435, %v1541
      %v1560 = vmul.f32 %v1441, %v1543
      %v1561 = vmul.f32 %v1447, %v1545
      %v1562 = vld [vmem:[%s4] sm:$0x1]
      %v1564 = vlaneseq
      %v1565 = vshrl.u32 %v1564, 7
      %v1566 = vsub.s32 0, %v1565
      %v1567 = vrot.slane %v1562, %v1566
      %1569 = vmatprep.subr.mxu0 0.0
      %v1570 = vand.u32 %v247, 4294901760
      %1571 = vmatpush1.msra.mxu0 %v1570
      %1572 = vmatprep.subr.mxu0 0.0
      %v1573 = vand.u32 %v246, 4294901760
      %1574 = vmatpush1.msra.mxu0 %v1573
      %1575 = vmatprep.subr.mxu0 0.0
      %v1576 = vand.u32 %v245, 4294901760
      %1577 = vmatpush1.msra.mxu0 %v1576
      %1578 = vmatprep.subr.mxu0 0.0
      %v1579 = vand.u32 %v244, 4294901760
      %1580 = vmatpush1.msra.mxu0 %v1579
      %1581 = vmatprep.subr.mxu0 0.0
      %v1582 = vand.u32 %v243, 4294901760
      %1583 = vmatpush1.msra.mxu0 %v1582
      %1584 = vmatprep.subr.mxu0 0.0
      %v1585 = vand.u32 %v242, 4294901760
      %1586 = vmatpush1.msra.mxu0 %v1585
      %1587 = vmatprep.subr.mxu0 0.0
      %v1588 = vand.u32 %v241, 4294901760
      %1589 = vmatpush1.msra.mxu0 %v1588
      %1590 = vmatprep.subr.mxu0 0.0
      %v1591 = vand.u32 %v240, 4294901760
      %1592 = vmatpush1.msra.mxu0 %v1591
      %1593 = vmatprep.subr.mxu0 0.0
      %v1594 = vand.u32 %v239, 4294901760
      %1595 = vmatpush1.msra.mxu0 %v1594
      %1596 = vmatprep.subr.mxu0 0.0
      %v1597 = vand.u32 %v238, 4294901760
      %1598 = vmatpush1.msra.mxu0 %v1597
      %1599 = vmatprep.subr.mxu0 0.0
      %v1600 = vand.u32 %v237, 4294901760
      %1601 = vmatpush1.msra.mxu0 %v1600
      %1602 = vmatprep.subr.mxu0 0.0
      %v1603 = vand.u32 %v236, 4294901760
      %1604 = vmatpush1.msra.mxu0 %v1603
      %1605 = vmatprep.subr.mxu0 0.0
      %v1606 = vand.u32 %v235, 4294901760
      %1607 = vmatpush1.msra.mxu0 %v1606
      %1608 = vmatprep.subr.mxu0 0.0
      %v1609 = vand.u32 %v234, 4294901760
      %1610 = vmatpush1.msra.mxu0 %v1609
      %1611 = vmatprep.subr.mxu0 0.0
      %v1612 = vand.u32 %v233, 4294901760
      %1613 = vmatpush1.msra.mxu0 %v1612
      %1614 = vmatprep.subr.mxu0 0.0
      %v1615 = vand.u32 %v232, 4294901760
      %1616 = vmatpush1.msra.mxu0 %v1615
      %1617 = vmatprep.subr.mxu0 0.0
      %1618 = vmatpush2.msra.mxu0 0.0
      %1619 = vmatprep.subr.mxu0 0.0
      %1620 = vmatpush2.msra.mxu0 0.0
      %1621 = vmatprep.subr.mxu0 0.0
      %1622 = vmatpush2.msra.mxu0 0.0
      %1623 = vmatprep.subr.mxu0 0.0
      %1624 = vmatpush2.msra.mxu0 0.0
      %1625 = vmatprep.subr.mxu0 0.0
      %1626 = vmatpush2.msra.mxu0 0.0
      %1627 = vmatprep.subr.mxu0 0.0
      %1628 = vmatpush2.msra.mxu0 0.0
      %1629 = vmatprep.subr.mxu0 0.0
      %1630 = vmatpush2.msra.mxu0 0.0
      %1631 = vmatprep.subr.mxu0 0.0
      %1632 = vmatpush2.msra.mxu0 0.0
      %1633 = vmatprep.subr.mxu0 0.0
      %1634 = vmatpush2.msra.mxu0 0.0
      %1635 = vmatprep.subr.mxu0 0.0
      %1636 = vmatpush2.msra.mxu0 0.0
      %1637 = vmatprep.subr.mxu0 0.0
      %1638 = vmatpush2.msra.mxu0 0.0
      %1639 = vmatprep.subr.mxu0 0.0
      %1640 = vmatpush2.msra.mxu0 0.0
      %1641 = vmatprep.subr.mxu0 0.0
      %1642 = vmatpush2.msra.mxu0 0.0
      %1643 = vmatprep.subr.mxu0 0.0
      %1644 = vmatpush2.msra.mxu0 0.0
      %1645 = vmatprep.subr.mxu0 0.0
      %1646 = vmatpush2.msra.mxu0 0.0
      %1647 = vmatprep.subr.mxu0 0.0
      %1648 = vmatpush2.msra.mxu0 0.0
      %1649 = vmatprep.mubr.f32.mxu0 0.0
      %v1650 = vand.u32 %v1546, 4294901760
      %v1651 = vsub.f32 %v1546, %v1650
      %v1652 = vand.u32 %v1651, 4294901760
      %v1653 = vsub.f32 %v1651, %v1652
      %v1654 = vand.u32 %v1653, 4294901760
      %1655 = vmatmul.mubr.f32.gmra.mxu0 %v1654
      %v1656 = vpop.f32.mrf.mxu0
      %v1657 = vadd.f32 %v1567, %v1656
      %v1658 = vpop.f32.mrf.mxu0
      %1659 = vmatprep.mubr.f32.mxu0 0.0
      %v1660 = vand.u32 %v1547, 4294901760
      %v1661 = vsub.f32 %v1547, %v1660
      %v1662 = vand.u32 %v1661, 4294901760
      %v1663 = vsub.f32 %v1661, %v1662
      %v1664 = vand.u32 %v1663, 4294901760
      %1665 = vmatmul.mubr.f32.gmra.mxu0 %v1664
      %v1666 = vpop.f32.mrf.mxu0
      %v1667 = vadd.f32 %v1567, %v1666
      %v1668 = vpop.f32.mrf.mxu0
      %1669 = vmatprep.mubr.f32.mxu0 0.0
      %v1670 = vand.u32 %v1548, 4294901760
      %v1671 = vsub.f32 %v1548, %v1670
      %v1672 = vand.u32 %v1671, 4294901760
      %v1673 = vsub.f32 %v1671, %v1672
      %v1674 = vand.u32 %v1673, 4294901760
      %1675 = vmatmul.mubr.f32.gmra.mxu0 %v1674
      %v1676 = vpop.f32.mrf.mxu0
      %v1677 = vadd.f32 %v1567, %v1676
      %v1678 = vpop.f32.mrf.mxu0
      %1679 = vmatprep.mubr.f32.mxu0 0.0
      %v1680 = vand.u32 %v1549, 4294901760
      %v1681 = vsub.f32 %v1549, %v1680
      %v1682 = vand.u32 %v1681, 4294901760
      %v1683 = vsub.f32 %v1681, %v1682
      %v1684 = vand.u32 %v1683, 4294901760
      %1685 = vmatmul.mubr.f32.gmra.mxu0 %v1684
      %v1686 = vpop.f32.mrf.mxu0
      %v1687 = vadd.f32 %v1567, %v1686
      %v1688 = vpop.f32.mrf.mxu0
      %1689 = vmatprep.mubr.f32.mxu0 0.0
      %v1690 = vand.u32 %v1550, 4294901760
      %v1691 = vsub.f32 %v1550, %v1690
      %v1692 = vand.u32 %v1691, 4294901760
      %v1693 = vsub.f32 %v1691, %v1692
      %v1694 = vand.u32 %v1693, 4294901760
      %1695 = vmatmul.mubr.f32.gmra.mxu0 %v1694
      %v1696 = vpop.f32.mrf.mxu0
      %v1697 = vadd.f32 %v1567, %v1696
      %v1698 = vpop.f32.mrf.mxu0
      %1699 = vmatprep.mubr.f32.mxu0 0.0
      %v1700 = vand.u32 %v1551, 4294901760
      %v1701 = vsub.f32 %v1551, %v1700
      %v1702 = vand.u32 %v1701, 4294901760
      %v1703 = vsub.f32 %v1701, %v1702
      %v1704 = vand.u32 %v1703, 4294901760
      %1705 = vmatmul.mubr.f32.gmra.mxu0 %v1704
      %v1706 = vpop.f32.mrf.mxu0
      %v1707 = vadd.f32 %v1567, %v1706
      %v1708 = vpop.f32.mrf.mxu0
      %1709 = vmatprep.mubr.f32.mxu0 0.0
      %v1710 = vand.u32 %v1552, 4294901760
      %v1711 = vsub.f32 %v1552, %v1710
      %v1712 = vand.u32 %v1711, 4294901760
      %v1713 = vsub.f32 %v1711, %v1712
      %v1714 = vand.u32 %v1713, 4294901760
      %1715 = vmatmul.mubr.f32.gmra.mxu0 %v1714
      %v1716 = vpop.f32.mrf.mxu0
      %v1717 = vadd.f32 %v1567, %v1716
      %v1718 = vpop.f32.mrf.mxu0
      %1719 = vmatprep.mubr.f32.mxu0 0.0
      %v1720 = vand.u32 %v1553, 4294901760
      %v1721 = vsub.f32 %v1553, %v1720
      %v1722 = vand.u32 %v1721, 4294901760
      %v1723 = vsub.f32 %v1721, %v1722
      %v1724 = vand.u32 %v1723, 4294901760
      %1725 = vmatmul.mubr.f32.gmra.mxu0 %v1724
      %v1726 = vpop.f32.mrf.mxu0
      %v1727 = vadd.f32 %v1567, %v1726
      %v1728 = vpop.f32.mrf.mxu0
      %1729 = vmatprep.mubr.f32.mxu0 0.0
      %v1730 = vand.u32 %v1554, 4294901760
      %v1731 = vsub.f32 %v1554, %v1730
      %v1732 = vand.u32 %v1731, 4294901760
      %v1733 = vsub.f32 %v1731, %v1732
      %v1734 = vand.u32 %v1733, 4294901760
      %1735 = vmatmul.mubr.f32.gmra.mxu0 %v1734
      %v1736 = vpop.f32.mrf.mxu0
      %v1737 = vadd.f32 %v1567, %v1736
      %v1738 = vpop.f32.mrf.mxu0
      %1739 = vmatprep.mubr.f32.mxu0 0.0
      %v1740 = vand.u32 %v1555, 4294901760
      %v1741 = vsub.f32 %v1555, %v1740
      %v1742 = vand.u32 %v1741, 4294901760
      %v1743 = vsub.f32 %v1741, %v1742
      %v1744 = vand.u32 %v1743, 4294901760
      %1745 = vmatmul.mubr.f32.gmra.mxu0 %v1744
      %v1746 = vpop.f32.mrf.mxu0
      %v1747 = vadd.f32 %v1567, %v1746
      %v1748 = vpop.f32.mrf.mxu0
      %1749 = vmatprep.mubr.f32.mxu0 0.0
      %v1750 = vand.u32 %v1556, 4294901760
      %v1751 = vsub.f32 %v1556, %v1750
      %v1752 = vand.u32 %v1751, 4294901760
      %v1753 = vsub.f32 %v1751, %v1752
      %v1754 = vand.u32 %v1753, 4294901760
      %1755 = vmatmul.mubr.f32.gmra.mxu0 %v1754
      %v1756 = vpop.f32.mrf.mxu0
      %v1757 = vadd.f32 %v1567, %v1756
      %v1758 = vpop.f32.mrf.mxu0
      %1759 = vmatprep.mubr.f32.mxu0 0.0
      %v1760 = vand.u32 %v1557, 4294901760
      %v1761 = vsub.f32 %v1557, %v1760
      %v1762 = vand.u32 %v1761, 4294901760
      %v1763 = vsub.f32 %v1761, %v1762
      %v1764 = vand.u32 %v1763, 4294901760
      %1765 = vmatmul.mubr.f32.gmra.mxu0 %v1764
      %v1766 = vpop.f32.mrf.mxu0
      %v1767 = vadd.f32 %v1567, %v1766
      %v1768 = vpop.f32.mrf.mxu0
      %1769 = vmatprep.mubr.f32.mxu0 0.0
      %v1770 = vand.u32 %v1558, 4294901760
      %v1771 = vsub.f32 %v1558, %v1770
      %v1772 = vand.u32 %v1771, 4294901760
      %v1773 = vsub.f32 %v1771, %v1772
      %v1774 = vand.u32 %v1773, 4294901760
      %1775 = vmatmul.mubr.f32.gmra.mxu0 %v1774
      %v1776 = vpop.f32.mrf.mxu0
      %v1777 = vadd.f32 %v1567, %v1776
      %v1778 = vpop.f32.mrf.mxu0
      %1779 = vmatprep.mubr.f32.mxu0 0.0
      %v1780 = vand.u32 %v1559, 4294901760
      %v1781 = vsub.f32 %v1559, %v1780
      %v1782 = vand.u32 %v1781, 4294901760
      %v1783 = vsub.f32 %v1781, %v1782
      %v1784 = vand.u32 %v1783, 4294901760
      %1785 = vmatmul.mubr.f32.gmra.mxu0 %v1784
      %v1786 = vpop.f32.mrf.mxu0
      %v1787 = vadd.f32 %v1567, %v1786
      %v1788 = vpop.f32.mrf.mxu0
      %1789 = vmatprep.mubr.f32.mxu0 0.0
      %v1790 = vand.u32 %v1560, 4294901760
      %v1791 = vsub.f32 %v1560, %v1790
      %v1792 = vand.u32 %v1791, 4294901760
      %v1793 = vsub.f32 %v1791, %v1792
      %v1794 = vand.u32 %v1793, 4294901760
      %1795 = vmatmul.mubr.f32.gmra.mxu0 %v1794
      %v1796 = vpop.f32.mrf.mxu0
      %v1797 = vadd.f32 %v1567, %v1796
      %v1798 = vpop.f32.mrf.mxu0
      %1799 = vmatprep.mubr.f32.mxu0 0.0
      %v1800 = vand.u32 %v1561, 4294901760
      %v1801 = vsub.f32 %v1561, %v1800
      %v1802 = vand.u32 %v1801, 4294901760
      %v1803 = vsub.f32 %v1801, %v1802
      %v1804 = vand.u32 %v1803, 4294901760
      %1805 = vmatmul.mubr.f32.gmra.mxu0 %v1804
      %v1806 = vpop.f32.mrf.mxu0
      %v1807 = vadd.f32 %v1567, %v1806
      %v1808 = vpop.f32.mrf.mxu0
      %1809 = vdwg.mxu0
      %1810 = vmatprep.subr.mxu0 0.0
      %v1811 = vand.u32 %v247, 4294901760
      %v1812 = vsub.f32 %v247, %v1811
      %v1813 = vand.u32 %v1812, 4294901760
      %v1814 = vsub.f32 %v1812, %v1813
      %v1815 = vand.u32 %v1814, 4294901760
      %1816 = vmatpush1.msra.mxu0 %v1815
      %1817 = vmatprep.subr.mxu0 0.0
      %v1818 = vand.u32 %v246, 4294901760
      %v1819 = vsub.f32 %v246, %v1818
      %v1820 = vand.u32 %v1819, 4294901760
      %v1821 = vsub.f32 %v1819, %v1820
      %v1822 = vand.u32 %v1821, 4294901760
      %1823 = vmatpush1.msra.mxu0 %v1822
      %1824 = vmatprep.subr.mxu0 0.0
      %v1825 = vand.u32 %v245, 4294901760
      %v1826 = vsub.f32 %v245, %v1825
      %v1827 = vand.u32 %v1826, 4294901760
      %v1828 = vsub.f32 %v1826, %v1827
      %v1829 = vand.u32 %v1828, 4294901760
      %1830 = vmatpush1.msra.mxu0 %v1829
      %1831 = vmatprep.subr.mxu0 0.0
      %v1832 = vand.u32 %v244, 4294901760
      %v1833 = vsub.f32 %v244, %v1832
      %v1834 = vand.u32 %v1833, 4294901760
      %v1835 = vsub.f32 %v1833, %v1834
      %v1836 = vand.u32 %v1835, 4294901760
      %1837 = vmatpush1.msra.mxu0 %v1836
      %1838 = vmatprep.subr.mxu0 0.0
      %v1839 = vand.u32 %v243, 4294901760
      %v1840 = vsub.f32 %v243, %v1839
      %v1841 = vand.u32 %v1840, 4294901760
      %v1842 = vsub.f32 %v1840, %v1841
      %v1843 = vand.u32 %v1842, 4294901760
      %1844 = vmatpush1.msra.mxu0 %v1843
      %1845 = vmatprep.subr.mxu0 0.0
      %v1846 = vand.u32 %v242, 4294901760
      %v1847 = vsub.f32 %v242, %v1846
      %v1848 = vand.u32 %v1847, 4294901760
      %v1849 = vsub.f32 %v1847, %v1848
      %v1850 = vand.u32 %v1849, 4294901760
      %1851 = vmatpush1.msra.mxu0 %v1850
      %1852 = vmatprep.subr.mxu0 0.0
      %v1853 = vand.u32 %v241, 4294901760
      %v1854 = vsub.f32 %v241, %v1853
      %v1855 = vand.u32 %v1854, 4294901760
      %v1856 = vsub.f32 %v1854, %v1855
      %v1857 = vand.u32 %v1856, 4294901760
      %1858 = vmatpush1.msra.mxu0 %v1857
      %1859 = vmatprep.subr.mxu0 0.0
      %v1860 = vand.u32 %v240, 4294901760
      %v1861 = vsub.f32 %v240, %v1860
      %v1862 = vand.u32 %v1861, 4294901760
      %v1863 = vsub.f32 %v1861, %v1862
      %v1864 = vand.u32 %v1863, 4294901760
      %1865 = vmatpush1.msra.mxu0 %v1864
      %1866 = vmatprep.subr.mxu0 0.0
      %v1867 = vand.u32 %v239, 4294901760
      %v1868 = vsub.f32 %v239, %v1867
      %v1869 = vand.u32 %v1868, 4294901760
      %v1870 = vsub.f32 %v1868, %v1869
      %v1871 = vand.u32 %v1870, 4294901760
      %1872 = vmatpush1.msra.mxu0 %v1871
      %1873 = vmatprep.subr.mxu0 0.0
      %v1874 = vand.u32 %v238, 4294901760
      %v1875 = vsub.f32 %v238, %v1874
      %v1876 = vand.u32 %v1875, 4294901760
      %v1877 = vsub.f32 %v1875, %v1876
      %v1878 = vand.u32 %v1877, 4294901760
      %1879 = vmatpush1.msra.mxu0 %v1878
      %1880 = vmatprep.subr.mxu0 0.0
      %v1881 = vand.u32 %v237, 4294901760
      %v1882 = vsub.f32 %v237, %v1881
      %v1883 = vand.u32 %v1882, 4294901760
      %v1884 = vsub.f32 %v1882, %v1883
      %v1885 = vand.u32 %v1884, 4294901760
      %1886 = vmatpush1.msra.mxu0 %v1885
      %1887 = vmatprep.subr.mxu0 0.0
      %v1888 = vand.u32 %v236, 4294901760
      %v1889 = vsub.f32 %v236, %v1888
      %v1890 = vand.u32 %v1889, 4294901760
      %v1891 = vsub.f32 %v1889, %v1890
      %v1892 = vand.u32 %v1891, 4294901760
      %1893 = vmatpush1.msra.mxu0 %v1892
      %1894 = vmatprep.subr.mxu0 0.0
      %v1895 = vand.u32 %v235, 4294901760
      %v1896 = vsub.f32 %v235, %v1895
      %v1897 = vand.u32 %v1896, 4294901760
      %v1898 = vsub.f32 %v1896, %v1897
      %v1899 = vand.u32 %v1898, 4294901760
      %1900 = vmatpush1.msra.mxu0 %v1899
      %1901 = vmatprep.subr.mxu0 0.0
      %v1902 = vand.u32 %v234, 4294901760
      %v1903 = vsub.f32 %v234, %v1902
      %v1904 = vand.u32 %v1903, 4294901760
      %v1905 = vsub.f32 %v1903, %v1904
      %v1906 = vand.u32 %v1905, 4294901760
      %1907 = vmatpush1.msra.mxu0 %v1906
      %1908 = vmatprep.subr.mxu0 0.0
      %v1909 = vand.u32 %v233, 4294901760
      %v1910 = vsub.f32 %v233, %v1909
      %v1911 = vand.u32 %v1910, 4294901760
      %v1912 = vsub.f32 %v1910, %v1911
      %v1913 = vand.u32 %v1912, 4294901760
      %1914 = vmatpush1.msra.mxu0 %v1913
      %1915 = vmatprep.subr.mxu0 0.0
      %v1916 = vand.u32 %v232, 4294901760
      %v1917 = vsub.f32 %v232, %v1916
      %v1918 = vand.u32 %v1917, 4294901760
      %v1919 = vsub.f32 %v1917, %v1918
      %v1920 = vand.u32 %v1919, 4294901760
      %1921 = vmatpush1.msra.mxu0 %v1920
      %1922 = vmatprep.subr.mxu0 0.0
      %1923 = vmatpush2.msra.mxu0 0.0
      %1924 = vmatprep.subr.mxu0 0.0
      %1925 = vmatpush2.msra.mxu0 0.0
      %1926 = vmatprep.subr.mxu0 0.0
      %1927 = vmatpush2.msra.mxu0 0.0
      %1928 = vmatprep.subr.mxu0 0.0
      %1929 = vmatpush2.msra.mxu0 0.0
      %1930 = vmatprep.subr.mxu0 0.0
      %1931 = vmatpush2.msra.mxu0 0.0
      %1932 = vmatprep.subr.mxu0 0.0
      %1933 = vmatpush2.msra.mxu0 0.0
      %1934 = vmatprep.subr.mxu0 0.0
      %1935 = vmatpush2.msra.mxu0 0.0
      %1936 = vmatprep.subr.mxu0 0.0
      %1937 = vmatpush2.msra.mxu0 0.0
      %1938 = vmatprep.subr.mxu0 0.0
      %1939 = vmatpush2.msra.mxu0 0.0
      %1940 = vmatprep.subr.mxu0 0.0
      %1941 = vmatpush2.msra.mxu0 0.0
      %1942 = vmatprep.subr.mxu0 0.0
      %1943 = vmatpush2.msra.mxu0 0.0
      %1944 = vmatprep.subr.mxu0 0.0
      %1945 = vmatpush2.msra.mxu0 0.0
      %1946 = vmatprep.subr.mxu0 0.0
      %1947 = vmatpush2.msra.mxu0 0.0
      %1948 = vmatprep.subr.mxu0 0.0
      %1949 = vmatpush2.msra.mxu0 0.0
      %1950 = vmatprep.subr.mxu0 0.0
      %1951 = vmatpush2.msra.mxu0 0.0
      %1952 = vmatprep.subr.mxu0 0.0
      %1953 = vmatpush2.msra.mxu0 0.0
      %1954 = vmatprep.mubr.f32.mxu0 0.0
      %v1955 = vand.u32 %v1546, 4294901760
      %1956 = vmatmul.mubr.f32.gmra.mxu0 %v1955
      %v1957 = vpop.f32.mrf.mxu0
      %v1958 = vadd.f32 %v1657, %v1957
      %v1959 = vpop.f32.mrf.mxu0
      %1960 = vmatprep.mubr.f32.mxu0 0.0
      %v1961 = vand.u32 %v1547, 4294901760
      %1962 = vmatmul.mubr.f32.gmra.mxu0 %v1961
      %v1963 = vpop.f32.mrf.mxu0
      %v1964 = vadd.f32 %v1667, %v1963
      %v1965 = vpop.f32.mrf.mxu0
      %1966 = vmatprep.mubr.f32.mxu0 0.0
      %v1967 = vand.u32 %v1548, 4294901760
      %1968 = vmatmul.mubr.f32.gmra.mxu0 %v1967
      %v1969 = vpop.f32.mrf.mxu0
      %v1970 = vadd.f32 %v1677, %v1969
      %v1971 = vpop.f32.mrf.mxu0
      %1972 = vmatprep.mubr.f32.mxu0 0.0
      %v1973 = vand.u32 %v1549, 4294901760
      %1974 = vmatmul.mubr.f32.gmra.mxu0 %v1973
      %v1975 = vpop.f32.mrf.mxu0
      %v1976 = vadd.f32 %v1687, %v1975
      %v1977 = vpop.f32.mrf.mxu0
      %1978 = vmatprep.mubr.f32.mxu0 0.0
      %v1979 = vand.u32 %v1550, 4294901760
      %1980 = vmatmul.mubr.f32.gmra.mxu0 %v1979
      %v1981 = vpop.f32.mrf.mxu0
      %v1982 = vadd.f32 %v1697, %v1981
      %v1983 = vpop.f32.mrf.mxu0
      %1984 = vmatprep.mubr.f32.mxu0 0.0
      %v1985 = vand.u32 %v1551, 4294901760
      %1986 = vmatmul.mubr.f32.gmra.mxu0 %v1985
      %v1987 = vpop.f32.mrf.mxu0
      %v1988 = vadd.f32 %v1707, %v1987
      %v1989 = vpop.f32.mrf.mxu0
      %1990 = vmatprep.mubr.f32.mxu0 0.0
      %v1991 = vand.u32 %v1552, 4294901760
      %1992 = vmatmul.mubr.f32.gmra.mxu0 %v1991
      %v1993 = vpop.f32.mrf.mxu0
      %v1994 = vadd.f32 %v1717, %v1993
      %v1995 = vpop.f32.mrf.mxu0
      %1996 = vmatprep.mubr.f32.mxu0 0.0
      %v1997 = vand.u32 %v1553, 4294901760
      %1998 = vmatmul.mubr.f32.gmra.mxu0 %v1997
      %v1999 = vpop.f32.mrf.mxu0
      %v2000 = vadd.f32 %v1727, %v1999
      %v2001 = vpop.f32.mrf.mxu0
      %2002 = vmatprep.mubr.f32.mxu0 0.0
      %v2003 = vand.u32 %v1554, 4294901760
      %2004 = vmatmul.mubr.f32.gmra.mxu0 %v2003
      %v2005 = vpop.f32.mrf.mxu0
      %v2006 = vadd.f32 %v1737, %v2005
      %v2007 = vpop.f32.mrf.mxu0
      %2008 = vmatprep.mubr.f32.mxu0 0.0
      %v2009 = vand.u32 %v1555, 4294901760
      %2010 = vmatmul.mubr.f32.gmra.mxu0 %v2009
      %v2011 = vpop.f32.mrf.mxu0
      %v2012 = vadd.f32 %v1747, %v2011
      %v2013 = vpop.f32.mrf.mxu0
      %2014 = vmatprep.mubr.f32.mxu0 0.0
      %v2015 = vand.u32 %v1556, 4294901760
      %2016 = vmatmul.mubr.f32.gmra.mxu0 %v2015
      %v2017 = vpop.f32.mrf.mxu0
      %v2018 = vadd.f32 %v1757, %v2017
      %v2019 = vpop.f32.mrf.mxu0
      %2020 = vmatprep.mubr.f32.mxu0 0.0
      %v2021 = vand.u32 %v1557, 4294901760
      %2022 = vmatmul.mubr.f32.gmra.mxu0 %v2021
      %v2023 = vpop.f32.mrf.mxu0
      %v2024 = vadd.f32 %v1767, %v2023
      %v2025 = vpop.f32.mrf.mxu0
      %2026 = vmatprep.mubr.f32.mxu0 0.0
      %v2027 = vand.u32 %v1558, 4294901760
      %2028 = vmatmul.mubr.f32.gmra.mxu0 %v2027
      %v2029 = vpop.f32.mrf.mxu0
      %v2030 = vadd.f32 %v1777, %v2029
      %v2031 = vpop.f32.mrf.mxu0
      %2032 = vmatprep.mubr.f32.mxu0 0.0
      %v2033 = vand.u32 %v1559, 4294901760
      %2034 = vmatmul.mubr.f32.gmra.mxu0 %v2033
      %v2035 = vpop.f32.mrf.mxu0
      %v2036 = vadd.f32 %v1787, %v2035
      %v2037 = vpop.f32.mrf.mxu0
      %2038 = vmatprep.mubr.f32.mxu0 0.0
      %v2039 = vand.u32 %v1560, 4294901760
      %2040 = vmatmul.mubr.f32.gmra.mxu0 %v2039
      %v2041 = vpop.f32.mrf.mxu0
      %v2042 = vadd.f32 %v1797, %v2041
      %v2043 = vpop.f32.mrf.mxu0
      %2044 = vmatprep.mubr.f32.mxu0 0.0
      %v2045 = vand.u32 %v1561, 4294901760
      %2046 = vmatmul.mubr.f32.gmra.mxu0 %v2045
      %v2047 = vpop.f32.mrf.mxu0
      %v2048 = vadd.f32 %v1807, %v2047
      %v2049 = vpop.f32.mrf.mxu0
      %2050 = vdwg.mxu0
      %2051 = vmatprep.subr.mxu0 0.0
      %v2052 = vand.u32 %v247, 4294901760
      %v2053 = vsub.f32 %v247, %v2052
      %2054 = vmatpush1.msra.mxu0 %v2053
      %2055 = vmatprep.subr.mxu0 0.0
      %v2056 = vand.u32 %v246, 4294901760
      %v2057 = vsub.f32 %v246, %v2056
      %2058 = vmatpush1.msra.mxu0 %v2057
      %2059 = vmatprep.subr.mxu0 0.0
      %v2060 = vand.u32 %v245, 4294901760
      %v2061 = vsub.f32 %v245, %v2060
      %2062 = vmatpush1.msra.mxu0 %v2061
      %2063 = vmatprep.subr.mxu0 0.0
      %v2064 = vand.u32 %v244, 4294901760
      %v2065 = vsub.f32 %v244, %v2064
      %2066 = vmatpush1.msra.mxu0 %v2065
      %2067 = vmatprep.subr.mxu0 0.0
      %v2068 = vand.u32 %v243, 4294901760
      %v2069 = vsub.f32 %v243, %v2068
      %2070 = vmatpush1.msra.mxu0 %v2069
      %2071 = vmatprep.subr.mxu0 0.0
      %v2072 = vand.u32 %v242, 4294901760
      %v2073 = vsub.f32 %v242, %v2072
      %2074 = vmatpush1.msra.mxu0 %v2073
      %2075 = vmatprep.subr.mxu0 0.0
      %v2076 = vand.u32 %v241, 4294901760
      %v2077 = vsub.f32 %v241, %v2076
      %2078 = vmatpush1.msra.mxu0 %v2077
      %2079 = vmatprep.subr.mxu0 0.0
      %v2080 = vand.u32 %v240, 4294901760
      %v2081 = vsub.f32 %v240, %v2080
      %2082 = vmatpush1.msra.mxu0 %v2081
      %2083 = vmatprep.subr.mxu0 0.0
      %v2084 = vand.u32 %v239, 4294901760
      %v2085 = vsub.f32 %v239, %v2084
      %2086 = vmatpush1.msra.mxu0 %v2085
      %2087 = vmatprep.subr.mxu0 0.0
      %v2088 = vand.u32 %v238, 4294901760
      %v2089 = vsub.f32 %v238, %v2088
      %2090 = vmatpush1.msra.mxu0 %v2089
      %2091 = vmatprep.subr.mxu0 0.0
      %v2092 = vand.u32 %v237, 4294901760
      %v2093 = vsub.f32 %v237, %v2092
      %2094 = vmatpush1.msra.mxu0 %v2093
      %2095 = vmatprep.subr.mxu0 0.0
      %v2096 = vand.u32 %v236, 4294901760
      %v2097 = vsub.f32 %v236, %v2096
      %2098 = vmatpush1.msra.mxu0 %v2097
      %2099 = vmatprep.subr.mxu0 0.0
      %v2100 = vand.u32 %v235, 4294901760
      %v2101 = vsub.f32 %v235, %v2100
      %2102 = vmatpush1.msra.mxu0 %v2101
      %2103 = vmatprep.subr.mxu0 0.0
      %v2104 = vand.u32 %v234, 4294901760
      %v2105 = vsub.f32 %v234, %v2104
      %2106 = vmatpush1.msra.mxu0 %v2105
      %2107 = vmatprep.subr.mxu0 0.0
      %v2108 = vand.u32 %v233, 4294901760
      %v2109 = vsub.f32 %v233, %v2108
      %2110 = vmatpush1.msra.mxu0 %v2109
      %2111 = vmatprep.subr.mxu0 0.0
      %v2112 = vand.u32 %v232, 4294901760
      %v2113 = vsub.f32 %v232, %v2112
      %2114 = vmatpush1.msra.mxu0 %v2113
      %2115 = vmatprep.subr.mxu0 0.0
      %2116 = vmatpush2.msra.mxu0 0.0
      %2117 = vmatprep.subr.mxu0 0.0
      %2118 = vmatpush2.msra.mxu0 0.0
      %2119 = vmatprep.subr.mxu0 0.0
      %2120 = vmatpush2.msra.mxu0 0.0
      %2121 = vmatprep.subr.mxu0 0.0
      %2122 = vmatpush2.msra.mxu0 0.0
      %2123 = vmatprep.subr.mxu0 0.0
      %2124 = vmatpush2.msra.mxu0 0.0
      %2125 = vmatprep.subr.mxu0 0.0
      %2126 = vmatpush2.msra.mxu0 0.0
      %2127 = vmatprep.subr.mxu0 0.0
      %2128 = vmatpush2.msra.mxu0 0.0
      %2129 = vmatprep.subr.mxu0 0.0
      %2130 = vmatpush2.msra.mxu0 0.0
      %2131 = vmatprep.subr.mxu0 0.0
      %2132 = vmatpush2.msra.mxu0 0.0
      %2133 = vmatprep.subr.mxu0 0.0
      %2134 = vmatpush2.msra.mxu0 0.0
      %2135 = vmatprep.subr.mxu0 0.0
      %2136 = vmatpush2.msra.mxu0 0.0
      %2137 = vmatprep.subr.mxu0 0.0
      %2138 = vmatpush2.msra.mxu0 0.0
      %2139 = vmatprep.subr.mxu0 0.0
      %2140 = vmatpush2.msra.mxu0 0.0
      %2141 = vmatprep.subr.mxu0 0.0
      %2142 = vmatpush2.msra.mxu0 0.0
      %2143 = vmatprep.subr.mxu0 0.0
      %2144 = vmatpush2.msra.mxu0 0.0
      %2145 = vmatprep.subr.mxu0 0.0
      %2146 = vmatpush2.msra.mxu0 0.0
      %2147 = vmatprep.mubr.f32.mxu0 0.0
      %v2148 = vand.u32 %v1546, 4294901760
      %v2149 = vsub.f32 %v1546, %v2148
      %2150 = vmatmul.mubr.f32.gmra.mxu0 %v2149
      %v2151 = vpop.f32.mrf.mxu0
      %v2152 = vadd.f32 %v1958, %v2151
      %v2153 = vpop.f32.mrf.mxu0
      %2154 = vmatprep.mubr.f32.mxu0 0.0
      %v2155 = vand.u32 %v1547, 4294901760
      %v2156 = vsub.f32 %v1547, %v2155
      %2157 = vmatmul.mubr.f32.gmra.mxu0 %v2156
      %v2158 = vpop.f32.mrf.mxu0
      %v2159 = vadd.f32 %v1964, %v2158
      %v2160 = vpop.f32.mrf.mxu0
      %2161 = vmatprep.mubr.f32.mxu0 0.0
      %v2162 = vand.u32 %v1548, 4294901760
      %v2163 = vsub.f32 %v1548, %v2162
      %2164 = vmatmul.mubr.f32.gmra.mxu0 %v2163
      %v2165 = vpop.f32.mrf.mxu0
      %v2166 = vadd.f32 %v1970, %v2165
      %v2167 = vpop.f32.mrf.mxu0
      %2168 = vmatprep.mubr.f32.mxu0 0.0
      %v2169 = vand.u32 %v1549, 4294901760
      %v2170 = vsub.f32 %v1549, %v2169
      %2171 = vmatmul.mubr.f32.gmra.mxu0 %v2170
      %v2172 = vpop.f32.mrf.mxu0
      %v2173 = vadd.f32 %v1976, %v2172
      %v2174 = vpop.f32.mrf.mxu0
      %2175 = vmatprep.mubr.f32.mxu0 0.0
      %v2176 = vand.u32 %v1550, 4294901760
      %v2177 = vsub.f32 %v1550, %v2176
      %2178 = vmatmul.mubr.f32.gmra.mxu0 %v2177
      %v2179 = vpop.f32.mrf.mxu0
      %v2180 = vadd.f32 %v1982, %v2179
      %v2181 = vpop.f32.mrf.mxu0
      %2182 = vmatprep.mubr.f32.mxu0 0.0
      %v2183 = vand.u32 %v1551, 4294901760
      %v2184 = vsub.f32 %v1551, %v2183
      %2185 = vmatmul.mubr.f32.gmra.mxu0 %v2184
      %v2186 = vpop.f32.mrf.mxu0
      %v2187 = vadd.f32 %v1988, %v2186
      %v2188 = vpop.f32.mrf.mxu0
      %2189 = vmatprep.mubr.f32.mxu0 0.0
      %v2190 = vand.u32 %v1552, 4294901760
      %v2191 = vsub.f32 %v1552, %v2190
      %2192 = vmatmul.mubr.f32.gmra.mxu0 %v2191
      %v2193 = vpop.f32.mrf.mxu0
      %v2194 = vadd.f32 %v1994, %v2193
      %v2195 = vpop.f32.mrf.mxu0
      %2196 = vmatprep.mubr.f32.mxu0 0.0
      %v2197 = vand.u32 %v1553, 4294901760
      %v2198 = vsub.f32 %v1553, %v2197
      %2199 = vmatmul.mubr.f32.gmra.mxu0 %v2198
      %v2200 = vpop.f32.mrf.mxu0
      %v2201 = vadd.f32 %v2000, %v2200
      %v2202 = vpop.f32.mrf.mxu0
      %2203 = vmatprep.mubr.f32.mxu0 0.0
      %v2204 = vand.u32 %v1554, 4294901760
      %v2205 = vsub.f32 %v1554, %v2204
      %2206 = vmatmul.mubr.f32.gmra.mxu0 %v2205
      %v2207 = vpop.f32.mrf.mxu0
      %v2208 = vadd.f32 %v2006, %v2207
      %v2209 = vpop.f32.mrf.mxu0
      %2210 = vmatprep.mubr.f32.mxu0 0.0
      %v2211 = vand.u32 %v1555, 4294901760
      %v2212 = vsub.f32 %v1555, %v2211
      %2213 = vmatmul.mubr.f32.gmra.mxu0 %v2212
      %v2214 = vpop.f32.mrf.mxu0
      %v2215 = vadd.f32 %v2012, %v2214
      %v2216 = vpop.f32.mrf.mxu0
      %2217 = vmatprep.mubr.f32.mxu0 0.0
      %v2218 = vand.u32 %v1556, 4294901760
      %v2219 = vsub.f32 %v1556, %v2218
      %2220 = vmatmul.mubr.f32.gmra.mxu0 %v2219
      %v2221 = vpop.f32.mrf.mxu0
      %v2222 = vadd.f32 %v2018, %v2221
      %v2223 = vpop.f32.mrf.mxu0
      %2224 = vmatprep.mubr.f32.mxu0 0.0
      %v2225 = vand.u32 %v1557, 4294901760
      %v2226 = vsub.f32 %v1557, %v2225
      %2227 = vmatmul.mubr.f32.gmra.mxu0 %v2226
      %v2228 = vpop.f32.mrf.mxu0
      %v2229 = vadd.f32 %v2024, %v2228
      %v2230 = vpop.f32.mrf.mxu0
      %2231 = vmatprep.mubr.f32.mxu0 0.0
      %v2232 = vand.u32 %v1558, 4294901760
      %v2233 = vsub.f32 %v1558, %v2232
      %2234 = vmatmul.mubr.f32.gmra.mxu0 %v2233
      %v2235 = vpop.f32.mrf.mxu0
      %v2236 = vadd.f32 %v2030, %v2235
      %v2237 = vpop.f32.mrf.mxu0
      %2238 = vmatprep.mubr.f32.mxu0 0.0
      %v2239 = vand.u32 %v1559, 4294901760
      %v2240 = vsub.f32 %v1559, %v2239
      %2241 = vmatmul.mubr.f32.gmra.mxu0 %v2240
      %v2242 = vpop.f32.mrf.mxu0
      %v2243 = vadd.f32 %v2036, %v2242
      %v2244 = vpop.f32.mrf.mxu0
      %2245 = vmatprep.mubr.f32.mxu0 0.0
      %v2246 = vand.u32 %v1560, 4294901760
      %v2247 = vsub.f32 %v1560, %v2246
      %2248 = vmatmul.mubr.f32.gmra.mxu0 %v2247
      %v2249 = vpop.f32.mrf.mxu0
      %v2250 = vadd.f32 %v2042, %v2249
      %v2251 = vpop.f32.mrf.mxu0
      %2252 = vmatprep.mubr.f32.mxu0 0.0
      %v2253 = vand.u32 %v1561, 4294901760
      %v2254 = vsub.f32 %v1561, %v2253
      %2255 = vmatmul.mubr.f32.gmra.mxu0 %v2254
      %v2256 = vpop.f32.mrf.mxu0
      %v2257 = vadd.f32 %v2048, %v2256
      %v2258 = vpop.f32.mrf.mxu0
      %2259 = vdwg.mxu0
      %2260 = vmatprep.subr.mxu0 0.0
      %v2261 = vand.u32 %v247, 4294901760
      %2262 = vmatpush1.msra.mxu0 %v2261
      %2263 = vmatprep.subr.mxu0 0.0
      %v2264 = vand.u32 %v246, 4294901760
      %2265 = vmatpush1.msra.mxu0 %v2264
      %2266 = vmatprep.subr.mxu0 0.0
      %v2267 = vand.u32 %v245, 4294901760
      %2268 = vmatpush1.msra.mxu0 %v2267
      %2269 = vmatprep.subr.mxu0 0.0
      %v2270 = vand.u32 %v244, 4294901760
      %2271 = vmatpush1.msra.mxu0 %v2270
      %2272 = vmatprep.subr.mxu0 0.0
      %v2273 = vand.u32 %v243, 4294901760
      %2274 = vmatpush1.msra.mxu0 %v2273
      %2275 = vmatprep.subr.mxu0 0.0
      %v2276 = vand.u32 %v242, 4294901760
      %2277 = vmatpush1.msra.mxu0 %v2276
      %2278 = vmatprep.subr.mxu0 0.0
      %v2279 = vand.u32 %v241, 4294901760
      %2280 = vmatpush1.msra.mxu0 %v2279
      %2281 = vmatprep.subr.mxu0 0.0
      %v2282 = vand.u32 %v240, 4294901760
      %2283 = vmatpush1.msra.mxu0 %v2282
      %2284 = vmatprep.subr.mxu0 0.0
      %v2285 = vand.u32 %v239, 4294901760
      %2286 = vmatpush1.msra.mxu0 %v2285
      %2287 = vmatprep.subr.mxu0 0.0
      %v2288 = vand.u32 %v238, 4294901760
      %2289 = vmatpush1.msra.mxu0 %v2288
      %2290 = vmatprep.subr.mxu0 0.0
      %v2291 = vand.u32 %v237, 4294901760
      %2292 = vmatpush1.msra.mxu0 %v2291
      %2293 = vmatprep.subr.mxu0 0.0
      %v2294 = vand.u32 %v236, 4294901760
      %2295 = vmatpush1.msra.mxu0 %v2294
      %2296 = vmatprep.subr.mxu0 0.0
      %v2297 = vand.u32 %v235, 4294901760
      %2298 = vmatpush1.msra.mxu0 %v2297
      %2299 = vmatprep.subr.mxu0 0.0
      %v2300 = vand.u32 %v234, 4294901760
      %2301 = vmatpush1.msra.mxu0 %v2300
      %2302 = vmatprep.subr.mxu0 0.0
      %v2303 = vand.u32 %v233, 4294901760
      %2304 = vmatpush1.msra.mxu0 %v2303
      %2305 = vmatprep.subr.mxu0 0.0
      %v2306 = vand.u32 %v232, 4294901760
      %2307 = vmatpush1.msra.mxu0 %v2306
      %2308 = vmatprep.subr.mxu0 0.0
      %2309 = vmatpush2.msra.mxu0 0.0
      %2310 = vmatprep.subr.mxu0 0.0
      %2311 = vmatpush2.msra.mxu0 0.0
      %2312 = vmatprep.subr.mxu0 0.0
      %2313 = vmatpush2.msra.mxu0 0.0
      %2314 = vmatprep.subr.mxu0 0.0
      %2315 = vmatpush2.msra.mxu0 0.0
      %2316 = vmatprep.subr.mxu0 0.0
      %2317 = vmatpush2.msra.mxu0 0.0
      %2318 = vmatprep.subr.mxu0 0.0
      %2319 = vmatpush2.msra.mxu0 0.0
      %2320 = vmatprep.subr.mxu0 0.0
      %2321 = vmatpush2.msra.mxu0 0.0
      %2322 = vmatprep.subr.mxu0 0.0
      %2323 = vmatpush2.msra.mxu0 0.0
      %2324 = vmatprep.subr.mxu0 0.0
      %2325 = vmatpush2.msra.mxu0 0.0
      %2326 = vmatprep.subr.mxu0 0.0
      %2327 = vmatpush2.msra.mxu0 0.0
      %2328 = vmatprep.subr.mxu0 0.0
      %2329 = vmatpush2.msra.mxu0 0.0
      %2330 = vmatprep.subr.mxu0 0.0
      %2331 = vmatpush2.msra.mxu0 0.0
      %2332 = vmatprep.subr.mxu0 0.0
      %2333 = vmatpush2.msra.mxu0 0.0
      %2334 = vmatprep.subr.mxu0 0.0
      %2335 = vmatpush2.msra.mxu0 0.0
      %2336 = vmatprep.subr.mxu0 0.0
      %2337 = vmatpush2.msra.mxu0 0.0
      %2338 = vmatprep.subr.mxu0 0.0
      %2339 = vmatpush2.msra.mxu0 0.0
      %2340 = vmatprep.mubr.f32.mxu0 0.0
      %v2341 = vand.u32 %v1546, 4294901760
      %v2342 = vsub.f32 %v1546, %v2341
      %v2343 = vand.u32 %v2342, 4294901760
      %2344 = vmatmul.mubr.f32.gmra.mxu0 %v2343
      %v2345 = vpop.f32.mrf.mxu0
      %v2346 = vadd.f32 %v2152, %v2345
      %v2347 = vpop.f32.mrf.mxu0
      %2348 = vmatprep.mubr.f32.mxu0 0.0
      %v2349 = vand.u32 %v1547, 4294901760
      %v2350 = vsub.f32 %v1547, %v2349
      %v2351 = vand.u32 %v2350, 4294901760
      %2352 = vmatmul.mubr.f32.gmra.mxu0 %v2351
      %v2353 = vpop.f32.mrf.mxu0
      %v2354 = vadd.f32 %v2159, %v2353
      %v2355 = vpop.f32.mrf.mxu0
      %2356 = vmatprep.mubr.f32.mxu0 0.0
      %v2357 = vand.u32 %v1548, 4294901760
      %v2358 = vsub.f32 %v1548, %v2357
      %v2359 = vand.u32 %v2358, 4294901760
      %2360 = vmatmul.mubr.f32.gmra.mxu0 %v2359
      %v2361 = vpop.f32.mrf.mxu0
      %v2362 = vadd.f32 %v2166, %v2361
      %v2363 = vpop.f32.mrf.mxu0
      %2364 = vmatprep.mubr.f32.mxu0 0.0
      %v2365 = vand.u32 %v1549, 4294901760
      %v2366 = vsub.f32 %v1549, %v2365
      %v2367 = vand.u32 %v2366, 4294901760
      %2368 = vmatmul.mubr.f32.gmra.mxu0 %v2367
      %v2369 = vpop.f32.mrf.mxu0
      %v2370 = vadd.f32 %v2173, %v2369
      %v2371 = vpop.f32.mrf.mxu0
      %2372 = vmatprep.mubr.f32.mxu0 0.0
      %v2373 = vand.u32 %v1550, 4294901760
      %v2374 = vsub.f32 %v1550, %v2373
      %v2375 = vand.u32 %v2374, 4294901760
      %2376 = vmatmul.mubr.f32.gmra.mxu0 %v2375
      %v2377 = vpop.f32.mrf.mxu0
      %v2378 = vadd.f32 %v2180, %v2377
      %v2379 = vpop.f32.mrf.mxu0
      %2380 = vmatprep.mubr.f32.mxu0 0.0
      %v2381 = vand.u32 %v1551, 4294901760
      %v2382 = vsub.f32 %v1551, %v2381
      %v2383 = vand.u32 %v2382, 4294901760
      %2384 = vmatmul.mubr.f32.gmra.mxu0 %v2383
      %v2385 = vpop.f32.mrf.mxu0
      %v2386 = vadd.f32 %v2187, %v2385
      %v2387 = vpop.f32.mrf.mxu0
      %2388 = vmatprep.mubr.f32.mxu0 0.0
      %v2389 = vand.u32 %v1552, 4294901760
      %v2390 = vsub.f32 %v1552, %v2389
      %v2391 = vand.u32 %v2390, 4294901760
      %2392 = vmatmul.mubr.f32.gmra.mxu0 %v2391
      %v2393 = vpop.f32.mrf.mxu0
      %v2394 = vadd.f32 %v2194, %v2393
      %v2395 = vpop.f32.mrf.mxu0
      %2396 = vmatprep.mubr.f32.mxu0 0.0
      %v2397 = vand.u32 %v1553, 4294901760
      %v2398 = vsub.f32 %v1553, %v2397
      %v2399 = vand.u32 %v2398, 4294901760
      %2400 = vmatmul.mubr.f32.gmra.mxu0 %v2399
      %v2401 = vpop.f32.mrf.mxu0
      %v2402 = vadd.f32 %v2201, %v2401
      %v2403 = vpop.f32.mrf.mxu0
      %2404 = vmatprep.mubr.f32.mxu0 0.0
      %v2405 = vand.u32 %v1554, 4294901760
      %v2406 = vsub.f32 %v1554, %v2405
      %v2407 = vand.u32 %v2406, 4294901760
      %2408 = vmatmul.mubr.f32.gmra.mxu0 %v2407
      %v2409 = vpop.f32.mrf.mxu0
      %v2410 = vadd.f32 %v2208, %v2409
      %v2411 = vpop.f32.mrf.mxu0
      %2412 = vmatprep.mubr.f32.mxu0 0.0
      %v2413 = vand.u32 %v1555, 4294901760
      %v2414 = vsub.f32 %v1555, %v2413
      %v2415 = vand.u32 %v2414, 4294901760
      %2416 = vmatmul.mubr.f32.gmra.mxu0 %v2415
      %v2417 = vpop.f32.mrf.mxu0
      %v2418 = vadd.f32 %v2215, %v2417
      %v2419 = vpop.f32.mrf.mxu0
      %2420 = vmatprep.mubr.f32.mxu0 0.0
      %v2421 = vand.u32 %v1556, 4294901760
      %v2422 = vsub.f32 %v1556, %v2421
      %v2423 = vand.u32 %v2422, 4294901760
      %2424 = vmatmul.mubr.f32.gmra.mxu0 %v2423
      %v2425 = vpop.f32.mrf.mxu0
      %v2426 = vadd.f32 %v2222, %v2425
      %v2427 = vpop.f32.mrf.mxu0
      %2428 = vmatprep.mubr.f32.mxu0 0.0
      %v2429 = vand.u32 %v1557, 4294901760
      %v2430 = vsub.f32 %v1557, %v2429
      %v2431 = vand.u32 %v2430, 4294901760
      %2432 = vmatmul.mubr.f32.gmra.mxu0 %v2431
      %v2433 = vpop.f32.mrf.mxu0
      %v2434 = vadd.f32 %v2229, %v2433
      %v2435 = vpop.f32.mrf.mxu0
      %2436 = vmatprep.mubr.f32.mxu0 0.0
      %v2437 = vand.u32 %v1558, 4294901760
      %v2438 = vsub.f32 %v1558, %v2437
      %v2439 = vand.u32 %v2438, 4294901760
      %2440 = vmatmul.mubr.f32.gmra.mxu0 %v2439
      %v2441 = vpop.f32.mrf.mxu0
      %v2442 = vadd.f32 %v2236, %v2441
      %v2443 = vpop.f32.mrf.mxu0
      %2444 = vmatprep.mubr.f32.mxu0 0.0
      %v2445 = vand.u32 %v1559, 4294901760
      %v2446 = vsub.f32 %v1559, %v2445
      %v2447 = vand.u32 %v2446, 4294901760
      %2448 = vmatmul.mubr.f32.gmra.mxu0 %v2447
      %v2449 = vpop.f32.mrf.mxu0
      %v2450 = vadd.f32 %v2243, %v2449
      %v2451 = vpop.f32.mrf.mxu0
      %2452 = vmatprep.mubr.f32.mxu0 0.0
      %v2453 = vand.u32 %v1560, 4294901760
      %v2454 = vsub.f32 %v1560, %v2453
      %v2455 = vand.u32 %v2454, 4294901760
      %2456 = vmatmul.mubr.f32.gmra.mxu0 %v2455
      %v2457 = vpop.f32.mrf.mxu0
      %v2458 = vadd.f32 %v2250, %v2457
      %v2459 = vpop.f32.mrf.mxu0
      %2460 = vmatprep.mubr.f32.mxu0 0.0
      %v2461 = vand.u32 %v1561, 4294901760
      %v2462 = vsub.f32 %v1561, %v2461
      %v2463 = vand.u32 %v2462, 4294901760
      %2464 = vmatmul.mubr.f32.gmra.mxu0 %v2463
      %v2465 = vpop.f32.mrf.mxu0
      %v2466 = vadd.f32 %v2257, %v2465
      %v2467 = vpop.f32.mrf.mxu0
      %2468 = vdwg.mxu0
      %2469 = vmatprep.subr.mxu0 0.0
      %v2470 = vand.u32 %v247, 4294901760
      %v2471 = vsub.f32 %v247, %v2470
      %v2472 = vand.u32 %v2471, 4294901760
      %2473 = vmatpush1.msra.mxu0 %v2472
      %2474 = vmatprep.subr.mxu0 0.0
      %v2475 = vand.u32 %v246, 4294901760
      %v2476 = vsub.f32 %v246, %v2475
      %v2477 = vand.u32 %v2476, 4294901760
      %2478 = vmatpush1.msra.mxu0 %v2477
      %2479 = vmatprep.subr.mxu0 0.0
      %v2480 = vand.u32 %v245, 4294901760
      %v2481 = vsub.f32 %v245, %v2480
      %v2482 = vand.u32 %v2481, 4294901760
      %2483 = vmatpush1.msra.mxu0 %v2482
      %2484 = vmatprep.subr.mxu0 0.0
      %v2485 = vand.u32 %v244, 4294901760
      %v2486 = vsub.f32 %v244, %v2485
      %v2487 = vand.u32 %v2486, 4294901760
      %2488 = vmatpush1.msra.mxu0 %v2487
      %2489 = vmatprep.subr.mxu0 0.0
      %v2490 = vand.u32 %v243, 4294901760
      %v2491 = vsub.f32 %v243, %v2490
      %v2492 = vand.u32 %v2491, 4294901760
      %2493 = vmatpush1.msra.mxu0 %v2492
      %2494 = vmatprep.subr.mxu0 0.0
      %v2495 = vand.u32 %v242, 4294901760
      %v2496 = vsub.f32 %v242, %v2495
      %v2497 = vand.u32 %v2496, 4294901760
      %2498 = vmatpush1.msra.mxu0 %v2497
      %2499 = vmatprep.subr.mxu0 0.0
      %v2500 = vand.u32 %v241, 4294901760
      %v2501 = vsub.f32 %v241, %v2500
      %v2502 = vand.u32 %v2501, 4294901760
      %2503 = vmatpush1.msra.mxu0 %v2502
      %2504 = vmatprep.subr.mxu0 0.0
      %v2505 = vand.u32 %v240, 4294901760
      %v2506 = vsub.f32 %v240, %v2505
      %v2507 = vand.u32 %v2506, 4294901760
      %2508 = vmatpush1.msra.mxu0 %v2507
      %2509 = vmatprep.subr.mxu0 0.0
      %v2510 = vand.u32 %v239, 4294901760
      %v2511 = vsub.f32 %v239, %v2510
      %v2512 = vand.u32 %v2511, 4294901760
      %2513 = vmatpush1.msra.mxu0 %v2512
      %2514 = vmatprep.subr.mxu0 0.0
      %v2515 = vand.u32 %v238, 4294901760
      %v2516 = vsub.f32 %v238, %v2515
      %v2517 = vand.u32 %v2516, 4294901760
      %2518 = vmatpush1.msra.mxu0 %v2517
      %2519 = vmatprep.subr.mxu0 0.0
      %v2520 = vand.u32 %v237, 4294901760
      %v2521 = vsub.f32 %v237, %v2520
      %v2522 = vand.u32 %v2521, 4294901760
      %2523 = vmatpush1.msra.mxu0 %v2522
      %2524 = vmatprep.subr.mxu0 0.0
      %v2525 = vand.u32 %v236, 4294901760
      %v2526 = vsub.f32 %v236, %v2525
      %v2527 = vand.u32 %v2526, 4294901760
      %2528 = vmatpush1.msra.mxu0 %v2527
      %2529 = vmatprep.subr.mxu0 0.0
      %v2530 = vand.u32 %v235, 4294901760
      %v2531 = vsub.f32 %v235, %v2530
      %v2532 = vand.u32 %v2531, 4294901760
      %2533 = vmatpush1.msra.mxu0 %v2532
      %2534 = vmatprep.subr.mxu0 0.0
      %v2535 = vand.u32 %v234, 4294901760
      %v2536 = vsub.f32 %v234, %v2535
      %v2537 = vand.u32 %v2536, 4294901760
      %2538 = vmatpush1.msra.mxu0 %v2537
      %2539 = vmatprep.subr.mxu0 0.0
      %v2540 = vand.u32 %v233, 4294901760
      %v2541 = vsub.f32 %v233, %v2540
      %v2542 = vand.u32 %v2541, 4294901760
      %2543 = vmatpush1.msra.mxu0 %v2542
      %2544 = vmatprep.subr.mxu0 0.0
      %v2545 = vand.u32 %v232, 4294901760
      %v2546 = vsub.f32 %v232, %v2545
      %v2547 = vand.u32 %v2546, 4294901760
      %2548 = vmatpush1.msra.mxu0 %v2547
      %2549 = vmatprep.subr.mxu0 0.0
      %2550 = vmatpush2.msra.mxu0 0.0
      %2551 = vmatprep.subr.mxu0 0.0
      %2552 = vmatpush2.msra.mxu0 0.0
      %2553 = vmatprep.subr.mxu0 0.0
      %2554 = vmatpush2.msra.mxu0 0.0
      %2555 = vmatprep.subr.mxu0 0.0
      %2556 = vmatpush2.msra.mxu0 0.0
      %2557 = vmatprep.subr.mxu0 0.0
      %2558 = vmatpush2.msra.mxu0 0.0
      %2559 = vmatprep.subr.mxu0 0.0
      %2560 = vmatpush2.msra.mxu0 0.0
      %2561 = vmatprep.subr.mxu0 0.0
      %2562 = vmatpush2.msra.mxu0 0.0
      %2563 = vmatprep.subr.mxu0 0.0
      %2564 = vmatpush2.msra.mxu0 0.0
      %2565 = vmatprep.subr.mxu0 0.0
      %2566 = vmatpush2.msra.mxu0 0.0
      %2567 = vmatprep.subr.mxu0 0.0
      %2568 = vmatpush2.msra.mxu0 0.0
      %2569 = vmatprep.subr.mxu0 0.0
      %2570 = vmatpush2.msra.mxu0 0.0
      %2571 = vmatprep.subr.mxu0 0.0
      %2572 = vmatpush2.msra.mxu0 0.0
      %2573 = vmatprep.subr.mxu0 0.0
      %2574 = vmatpush2.msra.mxu0 0.0
      %2575 = vmatprep.subr.mxu0 0.0
      %2576 = vmatpush2.msra.mxu0 0.0
      %2577 = vmatprep.subr.mxu0 0.0
      %2578 = vmatpush2.msra.mxu0 0.0
      %2579 = vmatprep.subr.mxu0 0.0
      %2580 = vmatpush2.msra.mxu0 0.0
      %2581 = vmatprep.mubr.f32.mxu0 0.0
      %v2582 = vand.u32 %v1546, 4294901760
      %2583 = vmatmul.mubr.f32.gmra.mxu0 %v2582
      %v2584 = vpop.f32.mrf.mxu0
      %v2585 = vadd.f32 %v2346, %v2584
      %v2586 = vpop.f32.mrf.mxu0
      %2587 = vmatprep.mubr.f32.mxu0 0.0
      %v2588 = vand.u32 %v1547, 4294901760
      %2589 = vmatmul.mubr.f32.gmra.mxu0 %v2588
      %v2590 = vpop.f32.mrf.mxu0
      %v2591 = vadd.f32 %v2354, %v2590
      %v2592 = vpop.f32.mrf.mxu0
      %2593 = vmatprep.mubr.f32.mxu0 0.0
      %v2594 = vand.u32 %v1548, 4294901760
      %2595 = vmatmul.mubr.f32.gmra.mxu0 %v2594
      %v2596 = vpop.f32.mrf.mxu0
      %v2597 = vadd.f32 %v2362, %v2596
      %v2598 = vpop.f32.mrf.mxu0
      %2599 = vmatprep.mubr.f32.mxu0 0.0
      %v2600 = vand.u32 %v1549, 4294901760
      %2601 = vmatmul.mubr.f32.gmra.mxu0 %v2600
      %v2602 = vpop.f32.mrf.mxu0
      %v2603 = vadd.f32 %v2370, %v2602
      %v2604 = vpop.f32.mrf.mxu0
      %2605 = vmatprep.mubr.f32.mxu0 0.0
      %v2606 = vand.u32 %v1550, 4294901760
      %2607 = vmatmul.mubr.f32.gmra.mxu0 %v2606
      %v2608 = vpop.f32.mrf.mxu0
      %v2609 = vadd.f32 %v2378, %v2608
      %v2610 = vpop.f32.mrf.mxu0
      %2611 = vmatprep.mubr.f32.mxu0 0.0
      %v2612 = vand.u32 %v1551, 4294901760
      %2613 = vmatmul.mubr.f32.gmra.mxu0 %v2612
      %v2614 = vpop.f32.mrf.mxu0
      %v2615 = vadd.f32 %v2386, %v2614
      %v2616 = vpop.f32.mrf.mxu0
      %2617 = vmatprep.mubr.f32.mxu0 0.0
      %v2618 = vand.u32 %v1552, 4294901760
      %2619 = vmatmul.mubr.f32.gmra.mxu0 %v2618
      %v2620 = vpop.f32.mrf.mxu0
      %v2621 = vadd.f32 %v2394, %v2620
      %v2622 = vpop.f32.mrf.mxu0
      %2623 = vmatprep.mubr.f32.mxu0 0.0
      %v2624 = vand.u32 %v1553, 4294901760
      %2625 = vmatmul.mubr.f32.gmra.mxu0 %v2624
      %v2626 = vpop.f32.mrf.mxu0
      %v2627 = vadd.f32 %v2402, %v2626
      %v2628 = vpop.f32.mrf.mxu0
      %2629 = vmatprep.mubr.f32.mxu0 0.0
      %v2630 = vand.u32 %v1554, 4294901760
      %2631 = vmatmul.mubr.f32.gmra.mxu0 %v2630
      %v2632 = vpop.f32.mrf.mxu0
      %v2633 = vadd.f32 %v2410, %v2632
      %v2634 = vpop.f32.mrf.mxu0
      %2635 = vmatprep.mubr.f32.mxu0 0.0
      %v2636 = vand.u32 %v1555, 4294901760
      %2637 = vmatmul.mubr.f32.gmra.mxu0 %v2636
      %v2638 = vpop.f32.mrf.mxu0
      %v2639 = vadd.f32 %v2418, %v2638
      %v2640 = vpop.f32.mrf.mxu0
      %2641 = vmatprep.mubr.f32.mxu0 0.0
      %v2642 = vand.u32 %v1556, 4294901760
      %2643 = vmatmul.mubr.f32.gmra.mxu0 %v2642
      %v2644 = vpop.f32.mrf.mxu0
      %v2645 = vadd.f32 %v2426, %v2644
      %v2646 = vpop.f32.mrf.mxu0
      %2647 = vmatprep.mubr.f32.mxu0 0.0
      %v2648 = vand.u32 %v1557, 4294901760
      %2649 = vmatmul.mubr.f32.gmra.mxu0 %v2648
      %v2650 = vpop.f32.mrf.mxu0
      %v2651 = vadd.f32 %v2434, %v2650
      %v2652 = vpop.f32.mrf.mxu0
      %2653 = vmatprep.mubr.f32.mxu0 0.0
      %v2654 = vand.u32 %v1558, 4294901760
      %2655 = vmatmul.mubr.f32.gmra.mxu0 %v2654
      %v2656 = vpop.f32.mrf.mxu0
      %v2657 = vadd.f32 %v2442, %v2656
      %v2658 = vpop.f32.mrf.mxu0
      %2659 = vmatprep.mubr.f32.mxu0 0.0
      %v2660 = vand.u32 %v1559, 4294901760
      %2661 = vmatmul.mubr.f32.gmra.mxu0 %v2660
      %v2662 = vpop.f32.mrf.mxu0
      %v2663 = vadd.f32 %v2450, %v2662
      %v2664 = vpop.f32.mrf.mxu0
      %2665 = vmatprep.mubr.f32.mxu0 0.0
      %v2666 = vand.u32 %v1560, 4294901760
      %2667 = vmatmul.mubr.f32.gmra.mxu0 %v2666
      %v2668 = vpop.f32.mrf.mxu0
      %v2669 = vadd.f32 %v2458, %v2668
      %v2670 = vpop.f32.mrf.mxu0
      %2671 = vmatprep.mubr.f32.mxu0 0.0
      %v2672 = vand.u32 %v1561, 4294901760
      %2673 = vmatmul.mubr.f32.gmra.mxu0 %v2672
      %v2674 = vpop.f32.mrf.mxu0
      %v2675 = vadd.f32 %v2466, %v2674
      %v2676 = vpop.f32.mrf.mxu0
      %2677 = vdwg.mxu0
      %2678 = vmatprep.subr.mxu0 0.0
      %v2679 = vand.u32 %v247, 4294901760
      %2680 = vmatpush1.msra.mxu0 %v2679
      %2681 = vmatprep.subr.mxu0 0.0
      %v2682 = vand.u32 %v246, 4294901760
      %2683 = vmatpush1.msra.mxu0 %v2682
      %2684 = vmatprep.subr.mxu0 0.0
      %v2685 = vand.u32 %v245, 4294901760
      %2686 = vmatpush1.msra.mxu0 %v2685
      %2687 = vmatprep.subr.mxu0 0.0
      %v2688 = vand.u32 %v244, 4294901760
      %2689 = vmatpush1.msra.mxu0 %v2688
      %2690 = vmatprep.subr.mxu0 0.0
      %v2691 = vand.u32 %v243, 4294901760
      %2692 = vmatpush1.msra.mxu0 %v2691
      %2693 = vmatprep.subr.mxu0 0.0
      %v2694 = vand.u32 %v242, 4294901760
      %2695 = vmatpush1.msra.mxu0 %v2694
      %2696 = vmatprep.subr.mxu0 0.0
      %v2697 = vand.u32 %v241, 4294901760
      %2698 = vmatpush1.msra.mxu0 %v2697
      %2699 = vmatprep.subr.mxu0 0.0
      %v2700 = vand.u32 %v240, 4294901760
      %2701 = vmatpush1.msra.mxu0 %v2700
      %2702 = vmatprep.subr.mxu0 0.0
      %v2703 = vand.u32 %v239, 4294901760
      %2704 = vmatpush1.msra.mxu0 %v2703
      %2705 = vmatprep.subr.mxu0 0.0
      %v2706 = vand.u32 %v238, 4294901760
      %2707 = vmatpush1.msra.mxu0 %v2706
      %2708 = vmatprep.subr.mxu0 0.0
      %v2709 = vand.u32 %v237, 4294901760
      %2710 = vmatpush1.msra.mxu0 %v2709
      %2711 = vmatprep.subr.mxu0 0.0
      %v2712 = vand.u32 %v236, 4294901760
      %2713 = vmatpush1.msra.mxu0 %v2712
      %2714 = vmatprep.subr.mxu0 0.0
      %v2715 = vand.u32 %v235, 4294901760
      %2716 = vmatpush1.msra.mxu0 %v2715
      %2717 = vmatprep.subr.mxu0 0.0
      %v2718 = vand.u32 %v234, 4294901760
      %2719 = vmatpush1.msra.mxu0 %v2718
      %2720 = vmatprep.subr.mxu0 0.0
      %v2721 = vand.u32 %v233, 4294901760
      %2722 = vmatpush1.msra.mxu0 %v2721
      %2723 = vmatprep.subr.mxu0 0.0
      %v2724 = vand.u32 %v232, 4294901760
      %2725 = vmatpush1.msra.mxu0 %v2724
      %2726 = vmatprep.subr.mxu0 0.0
      %2727 = vmatpush2.msra.mxu0 0.0
      %2728 = vmatprep.subr.mxu0 0.0
      %2729 = vmatpush2.msra.mxu0 0.0
      %2730 = vmatprep.subr.mxu0 0.0
      %2731 = vmatpush2.msra.mxu0 0.0
      %2732 = vmatprep.subr.mxu0 0.0
      %2733 = vmatpush2.msra.mxu0 0.0
      %2734 = vmatprep.subr.mxu0 0.0
      %2735 = vmatpush2.msra.mxu0 0.0
      %2736 = vmatprep.subr.mxu0 0.0
      %2737 = vmatpush2.msra.mxu0 0.0
      %2738 = vmatprep.subr.mxu0 0.0
      %2739 = vmatpush2.msra.mxu0 0.0
      %2740 = vmatprep.subr.mxu0 0.0
      %2741 = vmatpush2.msra.mxu0 0.0
      %2742 = vmatprep.subr.mxu0 0.0
      %2743 = vmatpush2.msra.mxu0 0.0
      %2744 = vmatprep.subr.mxu0 0.0
      %2745 = vmatpush2.msra.mxu0 0.0
      %2746 = vmatprep.subr.mxu0 0.0
      %2747 = vmatpush2.msra.mxu0 0.0
      %2748 = vmatprep.subr.mxu0 0.0
      %2749 = vmatpush2.msra.mxu0 0.0
      %2750 = vmatprep.subr.mxu0 0.0
      %2751 = vmatpush2.msra.mxu0 0.0
      %2752 = vmatprep.subr.mxu0 0.0
      %2753 = vmatpush2.msra.mxu0 0.0
      %2754 = vmatprep.subr.mxu0 0.0
      %2755 = vmatpush2.msra.mxu0 0.0
      %2756 = vmatprep.subr.mxu0 0.0
      %2757 = vmatpush2.msra.mxu0 0.0
      %2758 = vmatprep.mubr.f32.mxu0 0.0
      %v2759 = vand.u32 %v1546, 4294901760
      %2760 = vmatmul.mubr.f32.gmra.mxu0 %v2759
      %v2761 = vpop.f32.mrf.mxu0
      %v2762 = vadd.f32 %v2585, %v2761
      %v2763 = vpop.f32.mrf.mxu0
      %2764 = vmatprep.mubr.f32.mxu0 0.0
      %v2765 = vand.u32 %v1547, 4294901760
      %2766 = vmatmul.mubr.f32.gmra.mxu0 %v2765
      %v2767 = vpop.f32.mrf.mxu0
      %v2768 = vadd.f32 %v2591, %v2767
      %v2769 = vpop.f32.mrf.mxu0
      %2770 = vmatprep.mubr.f32.mxu0 0.0
      %v2771 = vand.u32 %v1548, 4294901760
      %2772 = vmatmul.mubr.f32.gmra.mxu0 %v2771
      %v2773 = vpop.f32.mrf.mxu0
      %v2774 = vadd.f32 %v2597, %v2773
      %v2775 = vpop.f32.mrf.mxu0
      %2776 = vmatprep.mubr.f32.mxu0 0.0
      %v2777 = vand.u32 %v1549, 4294901760
      %2778 = vmatmul.mubr.f32.gmra.mxu0 %v2777
      %v2779 = vpop.f32.mrf.mxu0
      %v2780 = vadd.f32 %v2603, %v2779
      %v2781 = vpop.f32.mrf.mxu0
      %2782 = vmatprep.mubr.f32.mxu0 0.0
      %v2783 = vand.u32 %v1550, 4294901760
      %2784 = vmatmul.mubr.f32.gmra.mxu0 %v2783
      %v2785 = vpop.f32.mrf.mxu0
      %v2786 = vadd.f32 %v2609, %v2785
      %v2787 = vpop.f32.mrf.mxu0
      %2788 = vmatprep.mubr.f32.mxu0 0.0
      %v2789 = vand.u32 %v1551, 4294901760
      %2790 = vmatmul.mubr.f32.gmra.mxu0 %v2789
      %v2791 = vpop.f32.mrf.mxu0
      %v2792 = vadd.f32 %v2615, %v2791
      %v2793 = vpop.f32.mrf.mxu0
      %2794 = vmatprep.mubr.f32.mxu0 0.0
      %v2795 = vand.u32 %v1552, 4294901760
      %2796 = vmatmul.mubr.f32.gmra.mxu0 %v2795
      %v2797 = vpop.f32.mrf.mxu0
      %v2798 = vadd.f32 %v2621, %v2797
      %v2799 = vpop.f32.mrf.mxu0
      %2800 = vmatprep.mubr.f32.mxu0 0.0
      %v2801 = vand.u32 %v1553, 4294901760
      %2802 = vmatmul.mubr.f32.gmra.mxu0 %v2801
      %v2803 = vpop.f32.mrf.mxu0
      %v2804 = vadd.f32 %v2627, %v2803
      %v2805 = vpop.f32.mrf.mxu0
      %2806 = vmatprep.mubr.f32.mxu0 0.0
      %v2807 = vand.u32 %v1554, 4294901760
      %2808 = vmatmul.mubr.f32.gmra.mxu0 %v2807
      %v2809 = vpop.f32.mrf.mxu0
      %v2810 = vadd.f32 %v2633, %v2809
      %v2811 = vpop.f32.mrf.mxu0
      %2812 = vmatprep.mubr.f32.mxu0 0.0
      %v2813 = vand.u32 %v1555, 4294901760
      %2814 = vmatmul.mubr.f32.gmra.mxu0 %v2813
      %v2815 = vpop.f32.mrf.mxu0
      %v2816 = vadd.f32 %v2639, %v2815
      %v2817 = vpop.f32.mrf.mxu0
      %2818 = vmatprep.mubr.f32.mxu0 0.0
      %v2819 = vand.u32 %v1556, 4294901760
      %2820 = vmatmul.mubr.f32.gmra.mxu0 %v2819
      %v2821 = vpop.f32.mrf.mxu0
      %v2822 = vadd.f32 %v2645, %v2821
      %v2823 = vpop.f32.mrf.mxu0
      %2824 = vmatprep.mubr.f32.mxu0 0.0
      %v2825 = vand.u32 %v1557, 4294901760
      %2826 = vmatmul.mubr.f32.gmra.mxu0 %v2825
      %v2827 = vpop.f32.mrf.mxu0
      %v2828 = vadd.f32 %v2651, %v2827
      %v2829 = vpop.f32.mrf.mxu0
      %2830 = vmatprep.mubr.f32.mxu0 0.0
      %v2831 = vand.u32 %v1558, 4294901760
      %2832 = vmatmul.mubr.f32.gmra.mxu0 %v2831
      %v2833 = vpop.f32.mrf.mxu0
      %v2834 = vadd.f32 %v2657, %v2833
      %v2835 = vpop.f32.mrf.mxu0
      %2836 = vmatprep.mubr.f32.mxu0 0.0
      %v2837 = vand.u32 %v1559, 4294901760
      %2838 = vmatmul.mubr.f32.gmra.mxu0 %v2837
      %v2839 = vpop.f32.mrf.mxu0
      %v2840 = vadd.f32 %v2663, %v2839
      %v2841 = vpop.f32.mrf.mxu0
      %2842 = vmatprep.mubr.f32.mxu0 0.0
      %v2843 = vand.u32 %v1560, 4294901760
      %2844 = vmatmul.mubr.f32.gmra.mxu0 %v2843
      %v2845 = vpop.f32.mrf.mxu0
      %v2846 = vadd.f32 %v2669, %v2845
      %v2847 = vpop.f32.mrf.mxu0
      %2848 = vmatprep.mubr.f32.mxu0 0.0
      %v2849 = vand.u32 %v1561, 4294901760
      %2850 = vmatmul.mubr.f32.gmra.mxu0 %v2849
      %v2851 = vpop.f32.mrf.mxu0
      %v2852 = vadd.f32 %v2675, %v2851
      %v2853 = vpop.f32.mrf.mxu0
      %2854 = vdwg.mxu0
      %vm2855 = vcmask 130048
      %2856 = vst.msk [vmem:[%s226] sm:$0xff] %vm2855, %v2762
      %2857 = vst.msk [vmem:[%s226 + $0x8] sm:$0xff] %vm2855, %v2768
      %2858 = vst.msk [vmem:[%s226 + $0x10] sm:$0xff] %vm2855, %v2774
      %2859 = vst.msk [vmem:[%s226 + $0x18] sm:$0xff] %vm2855, %v2780
      %2860 = vst.msk [vmem:[%s226 + $0x20] sm:$0xff] %vm2855, %v2786
      %2861 = vst.msk [vmem:[%s226 + $0x28] sm:$0xff] %vm2855, %v2792
      %2862 = vst.msk [vmem:[%s226 + $0x30] sm:$0xff] %vm2855, %v2798
      %2863 = vst.msk [vmem:[%s226 + $0x38] sm:$0xff] %vm2855, %v2804
      %2864 = vst.msk [vmem:[%s226 + $0x40] sm:$0xff] %vm2855, %v2810
      %2865 = vst.msk [vmem:[%s226 + $0x48] sm:$0xff] %vm2855, %v2816
      %2866 = vst.msk [vmem:[%s226 + $0x50] sm:$0xff] %vm2855, %v2822
      %2867 = vst.msk [vmem:[%s226 + $0x58] sm:$0xff] %vm2855, %v2828
      %2868 = vst.msk [vmem:[%s226 + $0x60] sm:$0xff] %vm2855, %v2834
      %2869 = vst.msk [vmem:[%s226 + $0x68] sm:$0xff] %vm2855, %v2840
      %2870 = vst.msk [vmem:[%s226 + $0x70] sm:$0xff] %vm2855, %v2846
      %2871 = vst.msk [vmem:[%s226 + $0x78] sm:$0xff] %vm2855, %v2852
      %s2872 = smul.u32 16, %s16
      %p2873 = scmp.lt.s32.totalorder %s2872, 31
      %s2874 = scalar_select %p2873, %s2872, 31
      %s2875 = smul.addr %s2874, 8
      %s2876 = scalar_lea.vmem %s5, %s2875
      // Predicated region
      $region41: #{_mlp_forward.1} parent=39 // pred_check
        %p2877 = pneg %p144
      $region42: #{_mlp_forward.1} parent=39 // pred_check_branch
        %2879 = sbr.rel (%p2877) target = $region44
      $region43: #{_mlp_forward.1} parent=39 // pred_region
        %s2880 = smul.u32 16, %s16
      $region44: #{_mlp_forward.1} parent=39 // pred_fallthru
        _
    $region40: #{_mlp_forward.1} parent=5 // pred_fallthru
      _
    %p2881 = scmp.le.s32.totalorder 2, %s11
    // Predicated region
    $region45: #{_mlp_forward.1} parent=5 // pred_check
      %p2882 = pneg %p2881
    $region46: #{_mlp_forward.1} parent=5 // pred_check_branch
      %2884 = sbr.rel (%p2882) target = $region48
    $region47: #{_mlp_forward.1} parent=5 // pred_region
      %s2885 = ssub.s32 %s11, 2
      // Predicated region
      $region49: #{_mlp_forward.1} parent=47 // pred_check
        %p2886 = pneg %p150
      $region50: #{_mlp_forward.1} parent=47 // pred_check_branch
        %2888 = sbr.rel (%p2886) target = $region52
      $region51: #{_mlp_forward.1} parent=47 // pred_region
        %s2889 = smul.u32 16, %s17
        %p2890 = scmp.lt.s32.totalorder %s2889, 31
        %s2891 = scalar_select %p2890, %s2889, 31
        %s2892 = smul.addr %s2891, 8
        %s2893 = scalar_lea.vmem %s5, %s2892
      $region52: #{_mlp_forward.1} parent=47 // pred_fallthru
        _
    $region48: #{_mlp_forward.1} parent=5 // pred_fallthru
      _
  $region6: #{_mlp_forward.1} parent=0 // loop_footer
    %s15 = sadd.s32 1, %s11
  $region7: #{_mlp_forward.1} parent=0 // loop_footer_branch
    %10 = sbr.rel target = $region3
  $region8: #{_mlp_forward.1} parent=0 // loop_exit
    _

</llo_original>
